<compile_context>
chip_gen: v5e
topology: v5e:2x2
jax: 0.10.0
libtpu: 0.0.40
codegen_flags: <defaults>
</compile_context>

<pallas_src>
import jax
import jax.numpy as jnp
from jax import lax
from jax.experimental import pallas as pl
from jax.experimental.pallas import tpu as pltpu

# ----------------------------- small CLIP-text config ------------------------
VOCAB = 128        # vocabulary size (synthetic)
MAX_LEN = 16       # max_length of the tokenized prompt (padded)
D = 32             # hidden size
H = 4              # attention heads
HD = D // H        # head dim
FF = 4 * D         # MLP intermediate size (= 128, already lane-dense)
NL = 2             # number of transformer layers
EPS = 1e-5
NEG = -1e30        # large negative (avoids -inf arithmetic in masked rows)

# lane-dense padded sizes
DP = 128           # padded hidden size (lane-dense)
HDP = 128          # padded per-head slot width (each head gets a full vreg)
QKVW = 3 * H * HDP # fused QKV output width
CTXW = H * HDP     # concatenated per-head context width


# ----------------------------- kernel helpers --------------------------------
def _layer_norm(x, w, b):
    """LayerNorm over the D valid features of a DP-lane-padded activation.
    Invariant: padded lanes of x are zero; padded lanes of w/b are zero, so
    padded lanes of the output stay zero."""
    inv_d = 1.0 / D
    mu = jnp.sum(x, axis=-1, keepdims=True) * inv_d
    var = jnp.sum(x * x, axis=-1, keepdims=True) * inv_d - mu * mu
    return (x - mu) * lax.rsqrt(var + EPS) * w + b


# ----------------------------- Pallas kernel ---------------------------------
def clip_text_encoder_kernel(ids_ref, tok_ref, pos_ref,
                             ln1w_ref, ln1b_ref,
                             wqkv_ref, bqkv_ref, wo_ref, bo_ref,
                             ln2w_ref, ln2b_ref,
                             w1_ref, b1_ref, w2_ref, b2_ref,
                             lnfw_ref, lnfb_ref,
                             o_ref, x_scr):
    # ---- fused token + position embedding (token ids live in SMEM) ----
    for i in range(MAX_LEN):                                  # small static loop
        x_scr[pl.ds(i, 1), :] = tok_ref[pl.ds(ids_ref[i], 1), :]
    x = x_scr[...] + pos_ref[...]                             # (L, DP) f32

    # causal mask, built once per call (single gridless invocation)
    row = lax.broadcasted_iota(jnp.int32, (MAX_LEN, MAX_LEN), 0)
    col = lax.broadcasted_iota(jnp.int32, (MAX_LEN, MAX_LEN), 1)
    causal = col <= row
    scale = float(HD) ** -0.5

    for l in range(NL):   # TODO(synk): layer grid axis at real CLIP sizes (NL=12+)
        # ---- self-attention block (pre-LN) ----
        res = x
        hb = _layer_norm(x, ln1w_ref[l], ln1b_ref[l]).astype(jnp.bfloat16)

        # one fused QKV matmul (bf16 operands, f32 accumulation) + one bias add
        qkv = jnp.dot(hb, wqkv_ref[l],
                      preferred_element_type=jnp.float32) + bqkv_ref[l]  # (L, QKVW)

        heads = []
        for hh in range(H):          # 128-lane-aligned static views, no relayout
            q = qkv[:, hh * HDP:(hh + 1) * HDP].astype(jnp.bfloat16)
            k = qkv[:, (H + hh) * HDP:(H + hh + 1) * HDP].astype(jnp.bfloat16)
            v = qkv[:, (2 * H + hh) * HDP:(2 * H + hh + 1) * HDP].astype(jnp.bfloat16)

            # scores: q @ k^T (padded lanes are zero and contribute nothing)
            s = lax.dot_general(q, k, (((1,), (1,)), ((), ())),
                                preferred_element_type=jnp.float32) * scale
            s = jnp.where(causal, s, NEG)
            m = jnp.max(s, axis=-1, keepdims=True)
            e = jnp.exp(s - m)
            inv = pl.reciprocal(jnp.sum(e, axis=-1, keepdims=True), approx=True)
            p = (e * inv).astype(jnp.bfloat16)
            heads.append(jnp.dot(p, v, preferred_element_type=jnp.float32))

        # single output projection against the block-padded Wo
        ctx = jnp.concatenate(heads, axis=-1).astype(jnp.bfloat16)       # (L, CTXW)
        attn = jnp.dot(ctx, wo_ref[l], preferred_element_type=jnp.float32)
        x = res + attn + bo_ref[l]

        # ---- MLP block (pre-LN, quick_gelu) ----
        res = x
        hn = _layer_norm(x, ln2w_ref[l], ln2b_ref[l])
        h1 = jnp.dot(hn.astype(jnp.bfloat16), w1_ref[l],
                     preferred_element_type=jnp.float32) + b1_ref[l]     # (L, FF)
        h1 = h1 * jax.nn.sigmoid(1.702 * h1)
        h2 = jnp.dot(h1.astype(jnp.bfloat16), w2_ref[l],
                     preferred_element_type=jnp.float32) + b2_ref[l]
        x = res + h2

    # final LayerNorm, lane-dense (L, DP) store
    o_ref[...] = _layer_norm(x, lnfw_ref[...], lnfb_ref[...])


# ----------------------------- wrapper ---------------------------------------
def clip_text_encoder(ids, tok_emb_p, pos_emb_p, prep_params):
    """ids: (MAX_LEN,) int32 token ids of ONE prompt -> padded hidden (L, DP)."""
    n_inputs = 3 + len(prep_params)
    return pl.pallas_call(
        clip_text_encoder_kernel,
        out_shape=jax.ShapeDtypeStruct((MAX_LEN, DP), jnp.float32),
        in_specs=[pl.BlockSpec(memory_space=pltpu.MemorySpace.SMEM)]       # ids
                + [pl.BlockSpec(memory_space=pltpu.MemorySpace.VMEM)] * (n_inputs - 1),
        out_specs=pl.BlockSpec(memory_space=pltpu.MemorySpace.VMEM),
        scratch_shapes=[pltpu.VMEM((MAX_LEN, DP), jnp.float32)],
        compiler_params=pltpu.CompilerParams(vmem_limit_bytes=32 * 1024 * 1024),
    )(ids, tok_emb_p, pos_emb_p, *prep_params)


# ----------------------------- parameter init & prep -------------------------
def init_params(key):
    std = 0.02
    keys = jax.random.split(key, 16)

    def nrm(k, shape):
        return (jax.random.normal(k, shape) * std).astype(jnp.float32)

    tok_emb = nrm(keys[0], (VOCAB, D))
    pos_emb = nrm(keys[1], (MAX_LEN, D))

    ln1w = jnp.ones((NL, D), jnp.float32); ln1b = jnp.zeros((NL, D), jnp.float32)
    ln2w = jnp.ones((NL, D), jnp.float32); ln2b = jnp.zeros((NL, D), jnp.float32)
    lnfw = jnp.ones((D,), jnp.float32);    lnfb = jnp.zeros((D,), jnp.float32)

    wq = nrm(keys[2], (NL, D, D));  bq = nrm(keys[3], (NL, D))
    wk = nrm(keys[4], (NL, D, D));  bk = nrm(keys[5], (NL, D))
    wv = nrm(keys[6], (NL, D, D));  bv = nrm(keys[7], (NL, D))
    wo = nrm(keys[8], (NL, D, D));  bo = nrm(keys[9], (NL, D))
    w1 = nrm(keys[10], (NL, D, FF)); b1 = nrm(keys[11], (NL, FF))
    w2 = nrm(keys[12], (NL, FF, D)); b2 = nrm(keys[13], (NL, D))

    raw = (ln1w, ln1b, wq, bq, wk, bk, wv, bv, wo, bo,
           ln2w, ln2b, w1, b1, w2, b2, lnfw, lnfb)
    return tok_emb, pos_emb, raw


def prepare_embeddings(tok_emb, pos_emb):
    """Zero-pad the embedding tables from D to DP lanes."""
    tok_p = jnp.zeros((VOCAB, DP), jnp.float32).at[:, :D].set(tok_emb)
    pos_p = jnp.zeros((MAX_LEN, DP), jnp.float32).at[:, :D].set(pos_emb)
    return tok_p, pos_p


def prepare_params(raw):
    """Lane-pad D->DP, fuse Q|K|V into one weight/bias, block-pad Wo so a
    single matmul consumes the concatenated per-head contexts, cast matmul
    weights to bf16 (f32 accumulation in-kernel).  All padded lanes are zero,
    including LayerNorm gamma/beta, so padded activation lanes stay zero."""
    (ln1w, ln1b, wq, bq, wk, bk, wv, bv, wo, bo,
     ln2w, ln2b, w1, b1, w2, b2, lnfw, lnfb) = raw
    bf16, f32 = jnp.bfloat16, jnp.float32

    def pad_heads_w(w):   # (NL, D, D) -> (NL, DP, H*HDP), head h in lanes [h*HDP, h*HDP+HD)
        w4 = w.reshape(NL, D, H, HD)
        out = jnp.zeros((NL, DP, H, HDP), f32).at[:, :D, :, :HD].set(w4)
        return out.reshape(NL, DP, H * HDP)

    def pad_heads_b(b):   # (NL, D) -> (NL, H*HDP)
        b3 = b.reshape(NL, H, HD)
        out = jnp.zeros((NL, H, HDP), f32).at[:, :, :HD].set(b3)
        return out.reshape(NL, H * HDP)

    wqkv = jnp.concatenate([pad_heads_w(wq), pad_heads_w(wk), pad_heads_w(wv)],
                           axis=-1).astype(bf16)                          # (NL, DP, QKVW)
    bqkv = jnp.concatenate([pad_heads_b(bq), pad_heads_b(bk), pad_heads_b(bv)],
                           axis=-1).reshape(NL, 1, QKVW).astype(f32)

    wo4 = wo.reshape(NL, H, HD, D)
    wo_big = jnp.zeros((NL, H, HDP, DP), f32).at[:, :, :HD, :D].set(wo4)
    wo_big = wo_big.reshape(NL, CTXW, DP).astype(bf16)                    # (NL, CTXW, DP)
    bo_p = jnp.zeros((NL, 1, DP), f32).at[:, :, :D].set(bo.reshape(NL, 1, D))

    def pad_vec(v):       # (NL, D) -> (NL, 1, DP), zero-padded
        return jnp.zeros((NL, 1, DP), f32).at[:, :, :D].set(v.reshape(NL, 1, D))

    w1_p = jnp.zeros((NL, DP, FF), f32).at[:, :D, :].set(w1).astype(bf16)
    b1_p = b1.reshape(NL, 1, FF).astype(f32)                              # FF==128, no pad
    w2_p = jnp.zeros((NL, FF, DP), f32).at[:, :, :D].set(w2).astype(bf16)
    b2_p = pad_vec(b2)

    lnfw_p = jnp.zeros((1, DP), f32).at[:, :D].set(lnfw.reshape(1, D))
    lnfb_p = jnp.zeros((1, DP), f32).at[:, :D].set(lnfb.reshape(1, D))

    return (pad_vec(ln1w), pad_vec(ln1b),
            wqkv, bqkv, wo_big, bo_p,
            pad_vec(ln2w), pad_vec(ln2b),
            w1_p, b1_p, w2_p, b2_p,
            lnfw_p, lnfb_p)


# ----------------------------- pure-JAX reference ----------------------------
def ref_encoder(ids, tok_emb, pos_emb, raw):
    """Independent plain-JAX implementation from the RAW (unpadded, unfused)
    parameters, with the same bf16-operand / f32-accumulate precision policy."""
    (ln1w, ln1b, wq, bq, wk, bk, wv, bv, wo, bo,
     ln2w, ln2b, w1, b1, w2, b2, lnfw, lnfb) = raw
    bf16 = jnp.bfloat16
    x = tok_emb[ids] + pos_emb[:ids.shape[0]]
    L = x.shape[0]
    causal = jnp.arange(L)[None, :] <= jnp.arange(L)[:, None]
    scale = float(HD) ** -0.5

    def ln(x_, w, b):
        mu = jnp.mean(x_, axis=-1, keepdims=True)
        var = jnp.mean((x_ - mu) ** 2, axis=-1, keepdims=True)
        return (x_ - mu) * lax.rsqrt(var + EPS) * w + b

    for l in range(NL):
        res = x
        hb = ln(x, ln1w[l], ln1b[l]).astype(bf16)
        q = jnp.dot(hb, wq[l].astype(bf16), preferred_element_type=jnp.float32) + bq[l]
        k = jnp.dot(hb, wk[l].astype(bf16), preferred_element_type=jnp.float32) + bk[l]
        v = jnp.dot(hb, wv[l].astype(bf16), preferred_element_type=jnp.float32) + bv[l]
        q = q.reshape(L, H, HD).transpose(1, 0, 2)
        k = k.reshape(L, H, HD).transpose(1, 0, 2)
        v = v.reshape(L, H, HD).transpose(1, 0, 2)
        s = jnp.einsum('hlk,hmk->hlm', q.astype(bf16), k.astype(bf16),
                       preferred_element_type=jnp.float32) * scale
        s = jnp.where(causal[None], s, NEG)
        p = jax.nn.softmax(s, axis=-1)
        ctx = jnp.einsum('hlm,hmk->hlk', p.astype(bf16), v.astype(bf16),
                         preferred_element_type=jnp.float32)
        ctx = ctx.transpose(1, 0, 2).reshape(L, D)
        attn = jnp.dot(ctx.astype(bf16), wo[l].astype(bf16),
                       preferred_element_type=jnp.float32) + bo[l]
        x = res + attn

        res = x
        hn = ln(x, ln2w[l], ln2b[l])
        h1 = jnp.dot(hn.astype(bf16), w1[l].astype(bf16),
                     preferred_element_type=jnp.float32) + b1[l]
        h1 = h1 * jax.nn.sigmoid(1.702 * h1)
        h2 = jnp.dot(h1.astype(bf16), w2[l].astype(bf16),
                     preferred_element_type=jnp.float32) + b2[l]
        x = res + h2

    return ln(x, lnfw, lnfb)


# ----------------------------- forward (module equivalent) -------------------
def clip_text_embedder_forward(tokens, tok_emb_p, pos_emb_p, prep_params):
    """tokens: (B, MAX_LEN) int32.  Returns feature[0]: (MAX_LEN, D).

    The module returns last_hidden_state[0], which depends only on prompt 0,
    so only that sequence is embedded and encoded."""
    ids = tokens[0].astype(jnp.int32)                     # (MAX_LEN,)
    out = clip_text_encoder(ids, tok_emb_p, pos_emb_p, prep_params)  # (L, DP)
    return out[:, :D]                                     # strip lane padding


if __name__ == "__main__":
    key = jax.random.PRNGKey(0)
    pkey, tkey = jax.random.split(key)
    tok_emb, pos_emb, raw_params = init_params(pkey)
    tok_emb_p, pos_emb_p = prepare_embeddings(tok_emb, pos_emb)
    prep_params = prepare_params(raw_params)

    # synthetic "tokenized prompts": batch of 2 prompts, padded to MAX_LEN
    tokens = jax.random.randint(tkey, (2, MAX_LEN), 0, VOCAB, dtype=jnp.int32)

    feature = clip_text_embedder_forward(tokens, tok_emb_p, pos_emb_p, prep_params)
    feature = jax.block_until_ready(feature)
    assert feature.shape == (MAX_LEN, D), feature.shape

    # correctness check vs an independent pure-JAX reference built from the
    # raw (unpadded, unfused) parameters.  Tolerance leaves room for the
    # approx EUP reciprocal in the softmax; any logic/layout/padding bug would
    # show up at O(0.1) after the final LayerNorm.
    ref = ref_encoder(tokens[0], tok_emb, pos_emb, raw_params)
    max_err = float(jnp.max(jnp.abs(feature - ref)))
    assert jnp.allclose(feature, ref, atol=5e-3, rtol=5e-3), max_err

    print("KERNEL_OK")
</pallas_src>

<mosaic_0001>
module attributes {stable_mosaic.version = 11 : i64} {
  func.func @clip_text_encoder_kernel(%arg0: memref<16xi32, #tpu.memory_space<smem>>, %arg1: memref<128x128xf32, #tpu.memory_space<vmem>>, %arg2: memref<16x128xf32, #tpu.memory_space<vmem>>, %arg3: memref<2x1x128xf32, #tpu.memory_space<vmem>>, %arg4: memref<2x1x128xf32, #tpu.memory_space<vmem>>, %arg5: memref<2x128x1536xbf16, #tpu.memory_space<vmem>>, %arg6: memref<2x1x1536xf32, #tpu.memory_space<vmem>>, %arg7: memref<2x512x128xbf16, #tpu.memory_space<vmem>>, %arg8: memref<2x1x128xf32, #tpu.memory_space<vmem>>, %arg9: memref<2x1x128xf32, #tpu.memory_space<vmem>>, %arg10: memref<2x1x128xf32, #tpu.memory_space<vmem>>, %arg11: memref<2x128x128xbf16, #tpu.memory_space<vmem>>, %arg12: memref<2x1x128xf32, #tpu.memory_space<vmem>>, %arg13: memref<2x128x128xbf16, #tpu.memory_space<vmem>>, %arg14: memref<2x1x128xf32, #tpu.memory_space<vmem>>, %arg15: memref<1x128xf32, #tpu.memory_space<vmem>>, %arg16: memref<1x128xf32, #tpu.memory_space<vmem>>, %arg17: memref<16x128xf32, #tpu.memory_space<vmem>>, %arg18: memref<16x128xf32, #tpu.memory_space<vmem>>) attributes {dimension_semantics = [], scalar_prefetch = 0 : i64, scratch_operands = 1 : i64, tpu.core_type = #tpu.core_type<tc>} {
    %c0 = arith.constant 0 : index
    %0 = memref.load %arg0[%c0] : memref<16xi32, #tpu.memory_space<smem>>
    %1 = arith.index_cast %0 : i32 to index
    %c0_0 = arith.constant 0 : index
    %2 = vector.load %arg1[%1, %c0_0] : memref<128x128xf32, #tpu.memory_space<vmem>>, vector<1x128xf32>
    %c0_1 = arith.constant 0 : index
    %c0_2 = arith.constant 0 : index
    %3 = vector.load %arg18[%c0_1, %c0_2] : memref<16x128xf32, #tpu.memory_space<vmem>>, vector<1x128xf32>
    tpu.vector_store %arg18[%c0_1, %c0_2], %2 {strides = array<i32>} : memref<16x128xf32, #tpu.memory_space<vmem>>, vector<1x128xf32>,
    %c1 = arith.constant 1 : index
    %4 = memref.load %arg0[%c1] : memref<16xi32, #tpu.memory_space<smem>>
    %5 = arith.index_cast %4 : i32 to index
    %c0_3 = arith.constant 0 : index
    %6 = vector.load %arg1[%5, %c0_3] : memref<128x128xf32, #tpu.memory_space<vmem>>, vector<1x128xf32>
    %c1_4 = arith.constant 1 : index
    %c0_5 = arith.constant 0 : index
    %7 = vector.load %arg18[%c1_4, %c0_5] : memref<16x128xf32, #tpu.memory_space<vmem>>, vector<1x128xf32>
    tpu.vector_store %arg18[%c1_4, %c0_5], %6 {strides = array<i32>} : memref<16x128xf32, #tpu.memory_space<vmem>>, vector<1x128xf32>,
    %c2 = arith.constant 2 : index
    %8 = memref.load %arg0[%c2] : memref<16xi32, #tpu.memory_space<smem>>
    %9 = arith.index_cast %8 : i32 to index
    %c0_6 = arith.constant 0 : index
    %10 = vector.load %arg1[%9, %c0_6] : memref<128x128xf32, #tpu.memory_space<vmem>>, vector<1x128xf32>
    %c2_7 = arith.constant 2 : index
    %c0_8 = arith.constant 0 : index
    %11 = vector.load %arg18[%c2_7, %c0_8] : memref<16x128xf32, #tpu.memory_space<vmem>>, vector<1x128xf32>
    tpu.vector_store %arg18[%c2_7, %c0_8], %10 {strides = array<i32>} : memref<16x128xf32, #tpu.memory_space<vmem>>, vector<1x128xf32>,
    %c3 = arith.constant 3 : index
    %12 = memref.load %arg0[%c3] : memref<16xi32, #tpu.memory_space<smem>>
    %13 = arith.index_cast %12 : i32 to index
    %c0_9 = arith.constant 0 : index
    %14 = vector.load %arg1[%13, %c0_9] : memref<128x128xf32, #tpu.memory_space<vmem>>, vector<1x128xf32>
    %c3_10 = arith.constant 3 : index
    %c0_11 = arith.constant 0 : index
    %15 = vector.load %arg18[%c3_10, %c0_11] : memref<16x128xf32, #tpu.memory_space<vmem>>, vector<1x128xf32>
    tpu.vector_store %arg18[%c3_10, %c0_11], %14 {strides = array<i32>} : memref<16x128xf32, #tpu.memory_space<vmem>>, vector<1x128xf32>,
    %c4 = arith.constant 4 : index
    %16 = memref.load %arg0[%c4] : memref<16xi32, #tpu.memory_space<smem>>
    %17 = arith.index_cast %16 : i32 to index
    %c0_12 = arith.constant 0 : index
    %18 = vector.load %arg1[%17, %c0_12] : memref<128x128xf32, #tpu.memory_space<vmem>>, vector<1x128xf32>
    %c4_13 = arith.constant 4 : index
    %c0_14 = arith.constant 0 : index
    %19 = vector.load %arg18[%c4_13, %c0_14] : memref<16x128xf32, #tpu.memory_space<vmem>>, vector<1x128xf32>
    tpu.vector_store %arg18[%c4_13, %c0_14], %18 {strides = array<i32>} : memref<16x128xf32, #tpu.memory_space<vmem>>, vector<1x128xf32>,
    %c5 = arith.constant 5 : index
    %20 = memref.load %arg0[%c5] : memref<16xi32, #tpu.memory_space<smem>>
    %21 = arith.index_cast %20 : i32 to index
    %c0_15 = arith.constant 0 : index
    %22 = vector.load %arg1[%21, %c0_15] : memref<128x128xf32, #tpu.memory_space<vmem>>, vector<1x128xf32>
    %c5_16 = arith.constant 5 : index
    %c0_17 = arith.constant 0 : index
    %23 = vector.load %arg18[%c5_16, %c0_17] : memref<16x128xf32, #tpu.memory_space<vmem>>, vector<1x128xf32>
    tpu.vector_store %arg18[%c5_16, %c0_17], %22 {strides = array<i32>} : memref<16x128xf32, #tpu.memory_space<vmem>>, vector<1x128xf32>,
    %c6 = arith.constant 6 : index
    %24 = memref.load %arg0[%c6] : memref<16xi32, #tpu.memory_space<smem>>
    %25 = arith.index_cast %24 : i32 to index
    %c0_18 = arith.constant 0 : index
    %26 = vector.load %arg1[%25, %c0_18] : memref<128x128xf32, #tpu.memory_space<vmem>>, vector<1x128xf32>
    %c6_19 = arith.constant 6 : index
    %c0_20 = arith.constant 0 : index
    %27 = vector.load %arg18[%c6_19, %c0_20] : memref<16x128xf32, #tpu.memory_space<vmem>>, vector<1x128xf32>
    tpu.vector_store %arg18[%c6_19, %c0_20], %26 {strides = array<i32>} : memref<16x128xf32, #tpu.memory_space<vmem>>, vector<1x128xf32>,
    %c7 = arith.constant 7 : index
    %28 = memref.load %arg0[%c7] : memref<16xi32, #tpu.memory_space<smem>>
    %29 = arith.index_cast %28 : i32 to index
    %c0_21 = arith.constant 0 : index
    %30 = vector.load %arg1[%29, %c0_21] : memref<128x128xf32, #tpu.memory_space<vmem>>, vector<1x128xf32>
    %c7_22 = arith.constant 7 : index
    %c0_23 = arith.constant 0 : index
    %31 = vector.load %arg18[%c7_22, %c0_23] : memref<16x128xf32, #tpu.memory_space<vmem>>, vector<1x128xf32>
    tpu.vector_store %arg18[%c7_22, %c0_23], %30 {strides = array<i32>} : memref<16x128xf32, #tpu.memory_space<vmem>>, vector<1x128xf32>,
    %c8 = arith.constant 8 : index
    %32 = memref.load %arg0[%c8] : memref<16xi32, #tpu.memory_space<smem>>
    %33 = arith.index_cast %32 : i32 to index
    %c0_24 = arith.constant 0 : index
    %34 = vector.load %arg1[%33, %c0_24] : memref<128x128xf32, #tpu.memory_space<vmem>>, vector<1x128xf32>
    %c8_25 = arith.constant 8 : index
    %c0_26 = arith.constant 0 : index
    %35 = vector.load %arg18[%c8_25, %c0_26] : memref<16x128xf32, #tpu.memory_space<vmem>>, vector<1x128xf32>
    tpu.vector_store %arg18[%c8_25, %c0_26], %34 {strides = array<i32>} : memref<16x128xf32, #tpu.memory_space<vmem>>, vector<1x128xf32>,
    %c9 = arith.constant 9 : index
    %36 = memref.load %arg0[%c9] : memref<16xi32, #tpu.memory_space<smem>>
    %37 = arith.index_cast %36 : i32 to index
    %c0_27 = arith.constant 0 : index
    %38 = vector.load %arg1[%37, %c0_27] : memref<128x128xf32, #tpu.memory_space<vmem>>, vector<1x128xf32>
    %c9_28 = arith.constant 9 : index
    %c0_29 = arith.constant 0 : index
    %39 = vector.load %arg18[%c9_28, %c0_29] : memref<16x128xf32, #tpu.memory_space<vmem>>, vector<1x128xf32>
    tpu.vector_store %arg18[%c9_28, %c0_29], %38 {strides = array<i32>} : memref<16x128xf32, #tpu.memory_space<vmem>>, vector<1x128xf32>,
    %c10 = arith.constant 10 : index
    %40 = memref.load %arg0[%c10] : memref<16xi32, #tpu.memory_space<smem>>
    %41 = arith.index_cast %40 : i32 to index
    %c0_30 = arith.constant 0 : index
    %42 = vector.load %arg1[%41, %c0_30] : memref<128x128xf32, #tpu.memory_space<vmem>>, vector<1x128xf32>
    %c10_31 = arith.constant 10 : index
    %c0_32 = arith.constant 0 : index
    %43 = vector.load %arg18[%c10_31, %c0_32] : memref<16x128xf32, #tpu.memory_space<vmem>>, vector<1x128xf32>
    tpu.vector_store %arg18[%c10_31, %c0_32], %42 {strides = array<i32>} : memref<16x128xf32, #tpu.memory_space<vmem>>, vector<1x128xf32>,
    %c11 = arith.constant 11 : index
    %44 = memref.load %arg0[%c11] : memref<16xi32, #tpu.memory_space<smem>>
    %45 = arith.index_cast %44 : i32 to index
    %c0_33 = arith.constant 0 : index
    %46 = vector.load %arg1[%45, %c0_33] : memref<128x128xf32, #tpu.memory_space<vmem>>, vector<1x128xf32>
    %c11_34 = arith.constant 11 : index
    %c0_35 = arith.constant 0 : index
    %47 = vector.load %arg18[%c11_34, %c0_35] : memref<16x128xf32, #tpu.memory_space<vmem>>, vector<1x128xf32>
    tpu.vector_store %arg18[%c11_34, %c0_35], %46 {strides = array<i32>} : memref<16x128xf32, #tpu.memory_space<vmem>>, vector<1x128xf32>,
    %c12 = arith.constant 12 : index
    %48 = memref.load %arg0[%c12] : memref<16xi32, #tpu.memory_space<smem>>
    %49 = arith.index_cast %48 : i32 to index
    %c0_36 = arith.constant 0 : index
    %50 = vector.load %arg1[%49, %c0_36] : memref<128x128xf32, #tpu.memory_space<vmem>>, vector<1x128xf32>
    %c12_37 = arith.constant 12 : index
    %c0_38 = arith.constant 0 : index
    %51 = vector.load %arg18[%c12_37, %c0_38] : memref<16x128xf32, #tpu.memory_space<vmem>>, vector<1x128xf32>
    tpu.vector_store %arg18[%c12_37, %c0_38], %50 {strides = array<i32>} : memref<16x128xf32, #tpu.memory_space<vmem>>, vector<1x128xf32>,
    %c13 = arith.constant 13 : index
    %52 = memref.load %arg0[%c13] : memref<16xi32, #tpu.memory_space<smem>>
    %53 = arith.index_cast %52 : i32 to index
    %c0_39 = arith.constant 0 : index
    %54 = vector.load %arg1[%53, %c0_39] : memref<128x128xf32, #tpu.memory_space<vmem>>, vector<1x128xf32>
    %c13_40 = arith.constant 13 : index
    %c0_41 = arith.constant 0 : index
    %55 = vector.load %arg18[%c13_40, %c0_41] : memref<16x128xf32, #tpu.memory_space<vmem>>, vector<1x128xf32>
    tpu.vector_store %arg18[%c13_40, %c0_41], %54 {strides = array<i32>} : memref<16x128xf32, #tpu.memory_space<vmem>>, vector<1x128xf32>,
    %c14 = arith.constant 14 : index
    %56 = memref.load %arg0[%c14] : memref<16xi32, #tpu.memory_space<smem>>
    %57 = arith.index_cast %56 : i32 to index
    %c0_42 = arith.constant 0 : index
    %58 = vector.load %arg1[%57, %c0_42] : memref<128x128xf32, #tpu.memory_space<vmem>>, vector<1x128xf32>
    %c14_43 = arith.constant 14 : index
    %c0_44 = arith.constant 0 : index
    %59 = vector.load %arg18[%c14_43, %c0_44] : memref<16x128xf32, #tpu.memory_space<vmem>>, vector<1x128xf32>
    tpu.vector_store %arg18[%c14_43, %c0_44], %58 {strides = array<i32>} : memref<16x128xf32, #tpu.memory_space<vmem>>, vector<1x128xf32>,
    %c15 = arith.constant 15 : index
    %60 = memref.load %arg0[%c15] : memref<16xi32, #tpu.memory_space<smem>>
    %61 = arith.index_cast %60 : i32 to index
    %c0_45 = arith.constant 0 : index
    %62 = vector.load %arg1[%61, %c0_45] : memref<128x128xf32, #tpu.memory_space<vmem>>, vector<1x128xf32>
    %c15_46 = arith.constant 15 : index
    %c0_47 = arith.constant 0 : index
    %63 = vector.load %arg18[%c15_46, %c0_47] : memref<16x128xf32, #tpu.memory_space<vmem>>, vector<1x128xf32>
    tpu.vector_store %arg18[%c15_46, %c0_47], %62 {strides = array<i32>} : memref<16x128xf32, #tpu.memory_space<vmem>>, vector<1x128xf32>,
    %c0_48 = arith.constant 0 : index
    %c0_49 = arith.constant 0 : index
    %64 = vector.load %arg18[%c0_48, %c0_49] : memref<16x128xf32, #tpu.memory_space<vmem>>, vector<16x128xf32>
    %c0_50 = arith.constant 0 : index
    %c0_51 = arith.constant 0 : index
    %65 = vector.load %arg2[%c0_50, %c0_51] : memref<16x128xf32, #tpu.memory_space<vmem>>, vector<16x128xf32>
    %66 = arith.addf %64, %65 : vector<16x128xf32>
    %67 = tpu.iota {dimensions = array<i32: 0>} : vector<16x16xi32>
    %68 = tpu.iota {dimensions = array<i32: 1>} : vector<16x16xi32>
    %69 = arith.cmpi sle, %68, %67 : vector<16x16xi32>
    %c0_52 = arith.constant 0 : index
    %c0_53 = arith.constant 0 : index
    %c0_54 = arith.constant 0 : index
    %70 = vector.load %arg3[%c0_52, %c0_53, %c0_54] : memref<2x1x128xf32, #tpu.memory_space<vmem>>, vector<1x1x128xf32>
    %71 = vector.shape_cast %70 : vector<1x1x128xf32> to vector<1x128xf32>
    %c0_55 = arith.constant 0 : index
    %c0_56 = arith.constant 0 : index
    %c0_57 = arith.constant 0 : index
    %72 = vector.load %arg4[%c0_55, %c0_56, %c0_57] : memref<2x1x128xf32, #tpu.memory_space<vmem>>, vector<1x1x128xf32>
    %73 = vector.shape_cast %72 : vector<1x1x128xf32> to vector<1x128xf32>
    %cst = arith.constant dense<0.000000e+00> : vector<16xf32>
    %74 = vector.multi_reduction <add>, %66, %cst [1] : vector<16x128xf32> to vector<16xf32>
    %75 = vector.shape_cast %74 : vector<16xf32> to vector<16x1xf32>
    %cst_58 = arith.constant 3.125000e-02 : f32
    %76 = vector.broadcast %cst_58 : f32 to vector<16x1xf32>
    %77 = arith.mulf %75, %76 : vector<16x1xf32>
    %78 = arith.mulf %66, %66 : vector<16x128xf32>
    %cst_59 = arith.constant dense<0.000000e+00> : vector<16xf32>
    %79 = vector.multi_reduction <add>, %78, %cst_59 [1] : vector<16x128xf32> to vector<16xf32>
    %80 = vector.shape_cast %79 : vector<16xf32> to vector<16x1xf32>
    %cst_60 = arith.constant 3.125000e-02 : f32
    %81 = vector.broadcast %cst_60 : f32 to vector<16x1xf32>
    %82 = arith.mulf %80, %81 : vector<16x1xf32>
    %83 = arith.mulf %77, %77 : vector<16x1xf32>
    %84 = arith.subf %82, %83 : vector<16x1xf32>
    %85 = vector.broadcast %77 : vector<16x1xf32> to vector<16x128xf32>
    %86 = arith.subf %66, %85 : vector<16x128xf32>
    %cst_61 = arith.constant 9.99999974E-6 : f32
    %87 = vector.broadcast %cst_61 : f32 to vector<16x1xf32>
    %88 = arith.addf %84, %87 : vector<16x1xf32>
    %89 = math.rsqrt %88 : vector<16x1xf32>
    %90 = vector.broadcast %89 : vector<16x1xf32> to vector<16x128xf32>
    %91 = arith.mulf %86, %90 : vector<16x128xf32>
    %92 = vector.broadcast %71 : vector<1x128xf32> to vector<16x128xf32>
    %93 = arith.mulf %91, %92 : vector<16x128xf32>
    %94 = vector.broadcast %73 : vector<1x128xf32> to vector<16x128xf32>
    %95 = arith.addf %93, %94 : vector<16x128xf32>
    %96 = arith.truncf %95 : vector<16x128xf32> to vector<16x128xbf16>
    %c0_62 = arith.constant 0 : index
    %c0_63 = arith.constant 0 : index
    %c0_64 = arith.constant 0 : index
    %97 = vector.load %arg5[%c0_62, %c0_63, %c0_64] : memref<2x128x1536xbf16, #tpu.memory_space<vmem>>, vector<1x128x1536xbf16>
    %98 = vector.shape_cast %97 : vector<1x128x1536xbf16> to vector<128x1536xbf16>
    %cst_65 = arith.constant dense<0.000000e+00> : vector<16x1536xf32>
    %99 = tpu.matmul %96, %98, %cst_65 {dimension_numbers = #tpu.dot_dimension_numbers<[1], [0], [0], [1], [0, 0, 1, 1], [], []>} : vector<16x128xbf16>, vector<128x1536xbf16>, vector<16x1536xf32> -> vector<16x1536xf32>
    %c0_66 = arith.constant 0 : index
    %c0_67 = arith.constant 0 : index
    %c0_68 = arith.constant 0 : index
    %100 = vector.load %arg6[%c0_66, %c0_67, %c0_68] : memref<2x1x1536xf32, #tpu.memory_space<vmem>>, vector<1x1x1536xf32>
    %101 = vector.shape_cast %100 : vector<1x1x1536xf32> to vector<1x1536xf32>
    %102 = vector.broadcast %101 : vector<1x1536xf32> to vector<16x1536xf32>
    %103 = arith.addf %99, %102 : vector<16x1536xf32>
    %104 = vector.extract_strided_slice %103 {offsets = [0, 0], sizes = [16, 128], strides = [1, 1]} : vector<16x1536xf32> to vector<16x128xf32>
    %105 = arith.truncf %104 : vector<16x128xf32> to vector<16x128xbf16>
    %106 = vector.extract_strided_slice %103 {offsets = [0, 512], sizes = [16, 128], strides = [1, 1]} : vector<16x1536xf32> to vector<16x128xf32>
    %107 = arith.truncf %106 : vector<16x128xf32> to vector<16x128xbf16>
    %108 = vector.extract_strided_slice %103 {offsets = [0, 1024], sizes = [16, 128], strides = [1, 1]} : vector<16x1536xf32> to vector<16x128xf32>
    %109 = arith.truncf %108 : vector<16x128xf32> to vector<16x128xbf16>
    %cst_69 = arith.constant dense<0.000000e+00> : vector<16x16xf32>
    %110 = tpu.matmul %105, %107, %cst_69 {dimension_numbers = #tpu.dot_dimension_numbers<[1], [1], [0], [0], [0, 0, 1, 0], [], []>} : vector<16x128xbf16>, vector<16x128xbf16>, vector<16x16xf32> -> vector<16x16xf32>
    %cst_70 = arith.constant 0.353553385 : f32
    %111 = vector.broadcast %cst_70 : f32 to vector<16x16xf32>
    %112 = arith.mulf %110, %111 : vector<16x16xf32>
    %cst_71 = arith.constant -1.000000e+30 : f32
    %113 = vector.broadcast %cst_71 : f32 to vector<16x16xf32>
    %114 = arith.select %69, %112, %113 : vector<16x16xi1>, vector<16x16xf32>
    %cst_72 = arith.constant dense<0xFF800000> : vector<16xf32>
    %115 = vector.multi_reduction <maximumf>, %114, %cst_72 [1] : vector<16x16xf32> to vector<16xf32>
    %116 = vector.shape_cast %115 : vector<16xf32> to vector<16x1xf32>
    %117 = vector.broadcast %116 : vector<16x1xf32> to vector<16x16xf32>
    %118 = arith.subf %114, %117 : vector<16x16xf32>
    %119 = math.exp %118 : vector<16x16xf32>
    %cst_73 = arith.constant dense<0.000000e+00> : vector<16xf32>
    %120 = vector.multi_reduction <add>, %119, %cst_73 [1] : vector<16x16xf32> to vector<16xf32>
    %121 = vector.shape_cast %120 : vector<16xf32> to vector<16x1xf32>
    %122 = tpu.reciprocal %121 {approx = true} : vector<16x1xf32> -> vector<16x1xf32>
    %123 = vector.broadcast %122 : vector<16x1xf32> to vector<16x16xf32>
    %124 = arith.mulf %119, %123 : vector<16x16xf32>
    %125 = arith.truncf %124 : vector<16x16xf32> to vector<16x16xbf16>
    %cst_74 = arith.constant dense<0.000000e+00> : vector<16x128xf32>
    %126 = tpu.matmul %125, %109, %cst_74 {dimension_numbers = #tpu.dot_dimension_numbers<[1], [0], [0], [1], [0, 0, 1, 1], [], []>} : vector<16x16xbf16>, vector<16x128xbf16>, vector<16x128xf32> -> vector<16x128xf32>
    %127 = vector.extract_strided_slice %103 {offsets = [0, 128], sizes = [16, 128], strides = [1, 1]} : vector<16x1536xf32> to vector<16x128xf32>
    %128 = arith.truncf %127 : vector<16x128xf32> to vector<16x128xbf16>
    %129 = vector.extract_strided_slice %103 {offsets = [0, 640], sizes = [16, 128], strides = [1, 1]} : vector<16x1536xf32> to vector<16x128xf32>
    %130 = arith.truncf %129 : vector<16x128xf32> to vector<16x128xbf16>
    %131 = vector.extract_strided_slice %103 {offsets = [0, 1152], sizes = [16, 128], strides = [1, 1]} : vector<16x1536xf32> to vector<16x128xf32>
    %132 = arith.truncf %131 : vector<16x128xf32> to vector<16x128xbf16>
    %cst_75 = arith.constant dense<0.000000e+00> : vector<16x16xf32>
    %133 = tpu.matmul %128, %130, %cst_75 {dimension_numbers = #tpu.dot_dimension_numbers<[1], [1], [0], [0], [0, 0, 1, 0], [], []>} : vector<16x128xbf16>, vector<16x128xbf16>, vector<16x16xf32> -> vector<16x16xf32>
    %cst_76 = arith.constant 0.353553385 : f32
    %134 = vector.broadcast %cst_76 : f32 to vector<16x16xf32>
    %135 = arith.mulf %133, %134 : vector<16x16xf32>
    %cst_77 = arith.constant -1.000000e+30 : f32
    %136 = vector.broadcast %cst_77 : f32 to vector<16x16xf32>
    %137 = arith.select %69, %135, %136 : vector<16x16xi1>, vector<16x16xf32>
    %cst_78 = arith.constant dense<0xFF800000> : vector<16xf32>
    %138 = vector.multi_reduction <maximumf>, %137, %cst_78 [1] : vector<16x16xf32> to vector<16xf32>
    %139 = vector.shape_cast %138 : vector<16xf32> to vector<16x1xf32>
    %140 = vector.broadcast %139 : vector<16x1xf32> to vector<16x16xf32>
    %141 = arith.subf %137, %140 : vector<16x16xf32>
    %142 = math.exp %141 : vector<16x16xf32>
    %cst_79 = arith.constant dense<0.000000e+00> : vector<16xf32>
    %143 = vector.multi_reduction <add>, %142, %cst_79 [1] : vector<16x16xf32> to vector<16xf32>
    %144 = vector.shape_cast %143 : vector<16xf32> to vector<16x1xf32>
    %145 = tpu.reciprocal %144 {approx = true} : vector<16x1xf32> -> vector<16x1xf32>
    %146 = vector.broadcast %145 : vector<16x1xf32> to vector<16x16xf32>
    %147 = arith.mulf %142, %146 : vector<16x16xf32>
    %148 = arith.truncf %147 : vector<16x16xf32> to vector<16x16xbf16>
    %cst_80 = arith.constant dense<0.000000e+00> : vector<16x128xf32>
    %149 = tpu.matmul %148, %132, %cst_80 {dimension_numbers = #tpu.dot_dimension_numbers<[1], [0], [0], [1], [0, 0, 1, 1], [], []>} : vector<16x16xbf16>, vector<16x128xbf16>, vector<16x128xf32> -> vector<16x128xf32>
    %150 = vector.extract_strided_slice %103 {offsets = [0, 256], sizes = [16, 128], strides = [1, 1]} : vector<16x1536xf32> to vector<16x128xf32>
    %151 = arith.truncf %150 : vector<16x128xf32> to vector<16x128xbf16>
    %152 = vector.extract_strided_slice %103 {offsets = [0, 768], sizes = [16, 128], strides = [1, 1]} : vector<16x1536xf32> to vector<16x128xf32>
    %153 = arith.truncf %152 : vector<16x128xf32> to vector<16x128xbf16>
    %154 = vector.extract_strided_slice %103 {offsets = [0, 1280], sizes = [16, 128], strides = [1, 1]} : vector<16x1536xf32> to vector<16x128xf32>
    %155 = arith.truncf %154 : vector<16x128xf32> to vector<16x128xbf16>
    %cst_81 = arith.constant dense<0.000000e+00> : vector<16x16xf32>
    %156 = tpu.matmul %151, %153, %cst_81 {dimension_numbers = #tpu.dot_dimension_numbers<[1], [1], [0], [0], [0, 0, 1, 0], [], []>} : vector<16x128xbf16>, vector<16x128xbf16>, vector<16x16xf32> -> vector<16x16xf32>
    %cst_82 = arith.constant 0.353553385 : f32
    %157 = vector.broadcast %cst_82 : f32 to vector<16x16xf32>
    %158 = arith.mulf %156, %157 : vector<16x16xf32>
    %cst_83 = arith.constant -1.000000e+30 : f32
    %159 = vector.broadcast %cst_83 : f32 to vector<16x16xf32>
    %160 = arith.select %69, %158, %159 : vector<16x16xi1>, vector<16x16xf32>
    %cst_84 = arith.constant dense<0xFF800000> : vector<16xf32>
    %161 = vector.multi_reduction <maximumf>, %160, %cst_84 [1] : vector<16x16xf32> to vector<16xf32>
    %162 = vector.shape_cast %161 : vector<16xf32> to vector<16x1xf32>
    %163 = vector.broadcast %162 : vector<16x1xf32> to vector<16x16xf32>
    %164 = arith.subf %160, %163 : vector<16x16xf32>
    %165 = math.exp %164 : vector<16x16xf32>
    %cst_85 = arith.constant dense<0.000000e+00> : vector<16xf32>
    %166 = vector.multi_reduction <add>, %165, %cst_85 [1] : vector<16x16xf32> to vector<16xf32>
    %167 = vector.shape_cast %166 : vector<16xf32> to vector<16x1xf32>
    %168 = tpu.reciprocal %167 {approx = true} : vector<16x1xf32> -> vector<16x1xf32>
    %169 = vector.broadcast %168 : vector<16x1xf32> to vector<16x16xf32>
    %170 = arith.mulf %165, %169 : vector<16x16xf32>
    %171 = arith.truncf %170 : vector<16x16xf32> to vector<16x16xbf16>
    %cst_86 = arith.constant dense<0.000000e+00> : vector<16x128xf32>
    %172 = tpu.matmul %171, %155, %cst_86 {dimension_numbers = #tpu.dot_dimension_numbers<[1], [0], [0], [1], [0, 0, 1, 1], [], []>} : vector<16x16xbf16>, vector<16x128xbf16>, vector<16x128xf32> -> vector<16x128xf32>
    %173 = vector.extract_strided_slice %103 {offsets = [0, 384], sizes = [16, 128], strides = [1, 1]} : vector<16x1536xf32> to vector<16x128xf32>
    %174 = arith.truncf %173 : vector<16x128xf32> to vector<16x128xbf16>
    %175 = vector.extract_strided_slice %103 {offsets = [0, 896], sizes = [16, 128], strides = [1, 1]} : vector<16x1536xf32> to vector<16x128xf32>
    %176 = arith.truncf %175 : vector<16x128xf32> to vector<16x128xbf16>
    %177 = vector.extract_strided_slice %103 {offsets = [0, 1408], sizes = [16, 128], strides = [1, 1]} : vector<16x1536xf32> to vector<16x128xf32>
    %178 = arith.truncf %177 : vector<16x128xf32> to vector<16x128xbf16>
    %cst_87 = arith.constant dense<0.000000e+00> : vector<16x16xf32>
    %179 = tpu.matmul %174, %176, %cst_87 {dimension_numbers = #tpu.dot_dimension_numbers<[1], [1], [0], [0], [0, 0, 1, 0], [], []>} : vector<16x128xbf16>, vector<16x128xbf16>, vector<16x16xf32> -> vector<16x16xf32>
    %cst_88 = arith.constant 0.353553385 : f32
    %180 = vector.broadcast %cst_88 : f32 to vector<16x16xf32>
    %181 = arith.mulf %179, %180 : vector<16x16xf32>
    %cst_89 = arith.constant -1.000000e+30 : f32
    %182 = vector.broadcast %cst_89 : f32 to vector<16x16xf32>
    %183 = arith.select %69, %181, %182 : vector<16x16xi1>, vector<16x16xf32>
    %cst_90 = arith.constant dense<0xFF800000> : vector<16xf32>
    %184 = vector.multi_reduction <maximumf>, %183, %cst_90 [1] : vector<16x16xf32> to vector<16xf32>
    %185 = vector.shape_cast %184 : vector<16xf32> to vector<16x1xf32>
    %186 = vector.broadcast %185 : vector<16x1xf32> to vector<16x16xf32>
    %187 = arith.subf %183, %186 : vector<16x16xf32>
    %188 = math.exp %187 : vector<16x16xf32>
    %cst_91 = arith.constant dense<0.000000e+00> : vector<16xf32>
    %189 = vector.multi_reduction <add>, %188, %cst_91 [1] : vector<16x16xf32> to vector<16xf32>
    %190 = vector.shape_cast %189 : vector<16xf32> to vector<16x1xf32>
    %191 = tpu.reciprocal %190 {approx = true} : vector<16x1xf32> -> vector<16x1xf32>
    %192 = vector.broadcast %191 : vector<16x1xf32> to vector<16x16xf32>
    %193 = arith.mulf %188, %192 : vector<16x16xf32>
    %194 = arith.truncf %193 : vector<16x16xf32> to vector<16x16xbf16>
    %cst_92 = arith.constant dense<0.000000e+00> : vector<16x128xf32>
    %195 = tpu.matmul %194, %178, %cst_92 {dimension_numbers = #tpu.dot_dimension_numbers<[1], [0], [0], [1], [0, 0, 1, 1], [], []>} : vector<16x16xbf16>, vector<16x128xbf16>, vector<16x128xf32> -> vector<16x128xf32>
    %196 = tpu.concatenate %126, %149, %172, %195 in 1 : vector<16x128xf32>, vector<16x128xf32>, vector<16x128xf32>, vector<16x128xf32> -> vector<16x512xf32>
    %197 = arith.truncf %196 : vector<16x512xf32> to vector<16x512xbf16>
    %c0_93 = arith.constant 0 : index
    %c0_94 = arith.constant 0 : index
    %c0_95 = arith.constant 0 : index
    %198 = vector.load %arg7[%c0_93, %c0_94, %c0_95] : memref<2x512x128xbf16, #tpu.memory_space<vmem>>, vector<1x512x128xbf16>
    %199 = vector.shape_cast %198 : vector<1x512x128xbf16> to vector<512x128xbf16>
    %cst_96 = arith.constant dense<0.000000e+00> : vector<16x128xf32>
    %200 = tpu.matmul %197, %199, %cst_96 {dimension_numbers = #tpu.dot_dimension_numbers<[1], [0], [0], [1], [0, 0, 1, 1], [], []>} : vector<16x512xbf16>, vector<512x128xbf16>, vector<16x128xf32> -> vector<16x128xf32>
    %201 = arith.addf %66, %200 : vector<16x128xf32>
    %c0_97 = arith.constant 0 : index
    %c0_98 = arith.constant 0 : index
    %c0_99 = arith.constant 0 : index
    %202 = vector.load %arg8[%c0_97, %c0_98, %c0_99] : memref<2x1x128xf32, #tpu.memory_space<vmem>>, vector<1x1x128xf32>
    %203 = vector.shape_cast %202 : vector<1x1x128xf32> to vector<1x128xf32>
    %204 = vector.broadcast %203 : vector<1x128xf32> to vector<16x128xf32>
    %205 = arith.addf %201, %204 : vector<16x128xf32>
    %c0_100 = arith.constant 0 : index
    %c0_101 = arith.constant 0 : index
    %c0_102 = arith.constant 0 : index
    %206 = vector.load %arg9[%c0_100, %c0_101, %c0_102] : memref<2x1x128xf32, #tpu.memory_space<vmem>>, vector<1x1x128xf32>
    %207 = vector.shape_cast %206 : vector<1x1x128xf32> to vector<1x128xf32>
    %c0_103 = arith.constant 0 : index
    %c0_104 = arith.constant 0 : index
    %c0_105 = arith.constant 0 : index
    %208 = vector.load %arg10[%c0_103, %c0_104, %c0_105] : memref<2x1x128xf32, #tpu.memory_space<vmem>>, vector<1x1x128xf32>
    %209 = vector.shape_cast %208 : vector<1x1x128xf32> to vector<1x128xf32>
    %cst_106 = arith.constant dense<0.000000e+00> : vector<16xf32>
    %210 = vector.multi_reduction <add>, %205, %cst_106 [1] : vector<16x128xf32> to vector<16xf32>
    %211 = vector.shape_cast %210 : vector<16xf32> to vector<16x1xf32>
    %cst_107 = arith.constant 3.125000e-02 : f32
    %212 = vector.broadcast %cst_107 : f32 to vector<16x1xf32>
    %213 = arith.mulf %211, %212 : vector<16x1xf32>
    %214 = arith.mulf %205, %205 : vector<16x128xf32>
    %cst_108 = arith.constant dense<0.000000e+00> : vector<16xf32>
    %215 = vector.multi_reduction <add>, %214, %cst_108 [1] : vector<16x128xf32> to vector<16xf32>
    %216 = vector.shape_cast %215 : vector<16xf32> to vector<16x1xf32>
    %cst_109 = arith.constant 3.125000e-02 : f32
    %217 = vector.broadcast %cst_109 : f32 to vector<16x1xf32>
    %218 = arith.mulf %216, %217 : vector<16x1xf32>
    %219 = arith.mulf %213, %213 : vector<16x1xf32>
    %220 = arith.subf %218, %219 : vector<16x1xf32>
    %221 = vector.broadcast %213 : vector<16x1xf32> to vector<16x128xf32>
    %222 = arith.subf %205, %221 : vector<16x128xf32>
    %cst_110 = arith.constant 9.99999974E-6 : f32
    %223 = vector.broadcast %cst_110 : f32 to vector<16x1xf32>
    %224 = arith.addf %220, %223 : vector<16x1xf32>
    %225 = math.rsqrt %224 : vector<16x1xf32>
    %226 = vector.broadcast %225 : vector<16x1xf32> to vector<16x128xf32>
    %227 = arith.mulf %222, %226 : vector<16x128xf32>
    %228 = vector.broadcast %207 : vector<1x128xf32> to vector<16x128xf32>
    %229 = arith.mulf %227, %228 : vector<16x128xf32>
    %230 = vector.broadcast %209 : vector<1x128xf32> to vector<16x128xf32>
    %231 = arith.addf %229, %230 : vector<16x128xf32>
    %232 = arith.truncf %231 : vector<16x128xf32> to vector<16x128xbf16>
    %c0_111 = arith.constant 0 : index
    %c0_112 = arith.constant 0 : index
    %c0_113 = arith.constant 0 : index
    %233 = vector.load %arg11[%c0_111, %c0_112, %c0_113] : memref<2x128x128xbf16, #tpu.memory_space<vmem>>, vector<1x128x128xbf16>
    %234 = vector.shape_cast %233 : vector<1x128x128xbf16> to vector<128x128xbf16>
    %cst_114 = arith.constant dense<0.000000e+00> : vector<16x128xf32>
    %235 = tpu.matmul %232, %234, %cst_114 {dimension_numbers = #tpu.dot_dimension_numbers<[1], [0], [0], [1], [0, 0, 1, 1], [], []>} : vector<16x128xbf16>, vector<128x128xbf16>, vector<16x128xf32> -> vector<16x128xf32>
    %c0_115 = arith.constant 0 : index
    %c0_116 = arith.constant 0 : index
    %c0_117 = arith.constant 0 : index
    %236 = vector.load %arg12[%c0_115, %c0_116, %c0_117] : memref<2x1x128xf32, #tpu.memory_space<vmem>>, vector<1x1x128xf32>
    %237 = vector.shape_cast %236 : vector<1x1x128xf32> to vector<1x128xf32>
    %238 = vector.broadcast %237 : vector<1x128xf32> to vector<16x128xf32>
    %239 = arith.addf %235, %238 : vector<16x128xf32>
    %cst_118 = arith.constant 1.702000e+00 : f32
    %240 = vector.broadcast %cst_118 : f32 to vector<16x128xf32>
    %241 = arith.mulf %240, %239 : vector<16x128xf32>
    %242 = arith.negf %241 : vector<16x128xf32>
    %243 = math.exp %242 : vector<16x128xf32>
    %cst_119 = arith.constant 1.000000e+00 : f32
    %244 = vector.broadcast %cst_119 : f32 to vector<16x128xf32>
    %245 = arith.addf %244, %243 : vector<16x128xf32>
    %246 = arith.divf %244, %245 : vector<16x128xf32>
    %247 = arith.mulf %239, %246 : vector<16x128xf32>
    %248 = arith.truncf %247 : vector<16x128xf32> to vector<16x128xbf16>
    %c0_120 = arith.constant 0 : index
    %c0_121 = arith.constant 0 : index
    %c0_122 = arith.constant 0 : index
    %249 = vector.load %arg13[%c0_120, %c0_121, %c0_122] : memref<2x128x128xbf16, #tpu.memory_space<vmem>>, vector<1x128x128xbf16>
    %250 = vector.shape_cast %249 : vector<1x128x128xbf16> to vector<128x128xbf16>
    %cst_123 = arith.constant dense<0.000000e+00> : vector<16x128xf32>
    %251 = tpu.matmul %248, %250, %cst_123 {dimension_numbers = #tpu.dot_dimension_numbers<[1], [0], [0], [1], [0, 0, 1, 1], [], []>} : vector<16x128xbf16>, vector<128x128xbf16>, vector<16x128xf32> -> vector<16x128xf32>
    %c0_124 = arith.constant 0 : index
    %c0_125 = arith.constant 0 : index
    %c0_126 = arith.constant 0 : index
    %252 = vector.load %arg14[%c0_124, %c0_125, %c0_126] : memref<2x1x128xf32, #tpu.memory_space<vmem>>, vector<1x1x128xf32>
    %253 = vector.shape_cast %252 : vector<1x1x128xf32> to vector<1x128xf32>
    %254 = vector.broadcast %253 : vector<1x128xf32> to vector<16x128xf32>
    %255 = arith.addf %251, %254 : vector<16x128xf32>
    %256 = arith.addf %205, %255 : vector<16x128xf32>
    %c1_127 = arith.constant 1 : index
    %c0_128 = arith.constant 0 : index
    %c0_129 = arith.constant 0 : index
    %257 = vector.load %arg3[%c1_127, %c0_128, %c0_129] : memref<2x1x128xf32, #tpu.memory_space<vmem>>, vector<1x1x128xf32>
    %258 = vector.shape_cast %257 : vector<1x1x128xf32> to vector<1x128xf32>
    %c1_130 = arith.constant 1 : index
    %c0_131 = arith.constant 0 : index
    %c0_132 = arith.constant 0 : index
    %259 = vector.load %arg4[%c1_130, %c0_131, %c0_132] : memref<2x1x128xf32, #tpu.memory_space<vmem>>, vector<1x1x128xf32>
    %260 = vector.shape_cast %259 : vector<1x1x128xf32> to vector<1x128xf32>
    %cst_133 = arith.constant dense<0.000000e+00> : vector<16xf32>
    %261 = vector.multi_reduction <add>, %256, %cst_133 [1] : vector<16x128xf32> to vector<16xf32>
    %262 = vector.shape_cast %261 : vector<16xf32> to vector<16x1xf32>
    %cst_134 = arith.constant 3.125000e-02 : f32
    %263 = vector.broadcast %cst_134 : f32 to vector<16x1xf32>
    %264 = arith.mulf %262, %263 : vector<16x1xf32>
    %265 = arith.mulf %256, %256 : vector<16x128xf32>
    %cst_135 = arith.constant dense<0.000000e+00> : vector<16xf32>
    %266 = vector.multi_reduction <add>, %265, %cst_135 [1] : vector<16x128xf32> to vector<16xf32>
    %267 = vector.shape_cast %266 : vector<16xf32> to vector<16x1xf32>
    %cst_136 = arith.constant 3.125000e-02 : f32
    %268 = vector.broadcast %cst_136 : f32 to vector<16x1xf32>
    %269 = arith.mulf %267, %268 : vector<16x1xf32>
    %270 = arith.mulf %264, %264 : vector<16x1xf32>
    %271 = arith.subf %269, %270 : vector<16x1xf32>
    %272 = vector.broadcast %264 : vector<16x1xf32> to vector<16x128xf32>
    %273 = arith.subf %256, %272 : vector<16x128xf32>
    %cst_137 = arith.constant 9.99999974E-6 : f32
    %274 = vector.broadcast %cst_137 : f32 to vector<16x1xf32>
    %275 = arith.addf %271, %274 : vector<16x1xf32>
    %276 = math.rsqrt %275 : vector<16x1xf32>
    %277 = vector.broadcast %276 : vector<16x1xf32> to vector<16x128xf32>
    %278 = arith.mulf %273, %277 : vector<16x128xf32>
    %279 = vector.broadcast %258 : vector<1x128xf32> to vector<16x128xf32>
    %280 = arith.mulf %278, %279 : vector<16x128xf32>
    %281 = vector.broadcast %260 : vector<1x128xf32> to vector<16x128xf32>
    %282 = arith.addf %280, %281 : vector<16x128xf32>
    %283 = arith.truncf %282 : vector<16x128xf32> to vector<16x128xbf16>
    %c1_138 = arith.constant 1 : index
    %c0_139 = arith.constant 0 : index
    %c0_140 = arith.constant 0 : index
    %284 = vector.load %arg5[%c1_138, %c0_139, %c0_140] : memref<2x128x1536xbf16, #tpu.memory_space<vmem>>, vector<1x128x1536xbf16>
    %285 = vector.shape_cast %284 : vector<1x128x1536xbf16> to vector<128x1536xbf16>
    %cst_141 = arith.constant dense<0.000000e+00> : vector<16x1536xf32>
    %286 = tpu.matmul %283, %285, %cst_141 {dimension_numbers = #tpu.dot_dimension_numbers<[1], [0], [0], [1], [0, 0, 1, 1], [], []>} : vector<16x128xbf16>, vector<128x1536xbf16>, vector<16x1536xf32> -> vector<16x1536xf32>
    %c1_142 = arith.constant 1 : index
    %c0_143 = arith.constant 0 : index
    %c0_144 = arith.constant 0 : index
    %287 = vector.load %arg6[%c1_142, %c0_143, %c0_144] : memref<2x1x1536xf32, #tpu.memory_space<vmem>>, vector<1x1x1536xf32>
    %288 = vector.shape_cast %287 : vector<1x1x1536xf32> to vector<1x1536xf32>
    %289 = vector.broadcast %288 : vector<1x1536xf32> to vector<16x1536xf32>
    %290 = arith.addf %286, %289 : vector<16x1536xf32>
    %291 = vector.extract_strided_slice %290 {offsets = [0, 0], sizes = [16, 128], strides = [1, 1]} : vector<16x1536xf32> to vector<16x128xf32>
    %292 = arith.truncf %291 : vector<16x128xf32> to vector<16x128xbf16>
    %293 = vector.extract_strided_slice %290 {offsets = [0, 512], sizes = [16, 128], strides = [1, 1]} : vector<16x1536xf32> to vector<16x128xf32>
    %294 = arith.truncf %293 : vector<16x128xf32> to vector<16x128xbf16>
    %295 = vector.extract_strided_slice %290 {offsets = [0, 1024], sizes = [16, 128], strides = [1, 1]} : vector<16x1536xf32> to vector<16x128xf32>
    %296 = arith.truncf %295 : vector<16x128xf32> to vector<16x128xbf16>
    %cst_145 = arith.constant dense<0.000000e+00> : vector<16x16xf32>
    %297 = tpu.matmul %292, %294, %cst_145 {dimension_numbers = #tpu.dot_dimension_numbers<[1], [1], [0], [0], [0, 0, 1, 0], [], []>} : vector<16x128xbf16>, vector<16x128xbf16>, vector<16x16xf32> -> vector<16x16xf32>
    %cst_146 = arith.constant 0.353553385 : f32
    %298 = vector.broadcast %cst_146 : f32 to vector<16x16xf32>
    %299 = arith.mulf %297, %298 : vector<16x16xf32>
    %cst_147 = arith.constant -1.000000e+30 : f32
    %300 = vector.broadcast %cst_147 : f32 to vector<16x16xf32>
    %301 = arith.select %69, %299, %300 : vector<16x16xi1>, vector<16x16xf32>
    %cst_148 = arith.constant dense<0xFF800000> : vector<16xf32>
    %302 = vector.multi_reduction <maximumf>, %301, %cst_148 [1] : vector<16x16xf32> to vector<16xf32>
    %303 = vector.shape_cast %302 : vector<16xf32> to vector<16x1xf32>
    %304 = vector.broadcast %303 : vector<16x1xf32> to vector<16x16xf32>
    %305 = arith.subf %301, %304 : vector<16x16xf32>
    %306 = math.exp %305 : vector<16x16xf32>
    %cst_149 = arith.constant dense<0.000000e+00> : vector<16xf32>
    %307 = vector.multi_reduction <add>, %306, %cst_149 [1] : vector<16x16xf32> to vector<16xf32>
    %308 = vector.shape_cast %307 : vector<16xf32> to vector<16x1xf32>
    %309 = tpu.reciprocal %308 {approx = true} : vector<16x1xf32> -> vector<16x1xf32>
    %310 = vector.broadcast %309 : vector<16x1xf32> to vector<16x16xf32>
    %311 = arith.mulf %306, %310 : vector<16x16xf32>
    %312 = arith.truncf %311 : vector<16x16xf32> to vector<16x16xbf16>
    %cst_150 = arith.constant dense<0.000000e+00> : vector<16x128xf32>
    %313 = tpu.matmul %312, %296, %cst_150 {dimension_numbers = #tpu.dot_dimension_numbers<[1], [0], [0], [1], [0, 0, 1, 1], [], []>} : vector<16x16xbf16>, vector<16x128xbf16>, vector<16x128xf32> -> vector<16x128xf32>
    %314 = vector.extract_strided_slice %290 {offsets = [0, 128], sizes = [16, 128], strides = [1, 1]} : vector<16x1536xf32> to vector<16x128xf32>
    %315 = arith.truncf %314 : vector<16x128xf32> to vector<16x128xbf16>
    %316 = vector.extract_strided_slice %290 {offsets = [0, 640], sizes = [16, 128], strides = [1, 1]} : vector<16x1536xf32> to vector<16x128xf32>
    %317 = arith.truncf %316 : vector<16x128xf32> to vector<16x128xbf16>
    %318 = vector.extract_strided_slice %290 {offsets = [0, 1152], sizes = [16, 128], strides = [1, 1]} : vector<16x1536xf32> to vector<16x128xf32>
    %319 = arith.truncf %318 : vector<16x128xf32> to vector<16x128xbf16>
    %cst_151 = arith.constant dense<0.000000e+00> : vector<16x16xf32>
    %320 = tpu.matmul %315, %317, %cst_151 {dimension_numbers = #tpu.dot_dimension_numbers<[1], [1], [0], [0], [0, 0, 1, 0], [], []>} : vector<16x128xbf16>, vector<16x128xbf16>, vector<16x16xf32> -> vector<16x16xf32>
    %cst_152 = arith.constant 0.353553385 : f32
    %321 = vector.broadcast %cst_152 : f32 to vector<16x16xf32>
    %322 = arith.mulf %320, %321 : vector<16x16xf32>
    %cst_153 = arith.constant -1.000000e+30 : f32
    %323 = vector.broadcast %cst_153 : f32 to vector<16x16xf32>
    %324 = arith.select %69, %322, %323 : vector<16x16xi1>, vector<16x16xf32>
    %cst_154 = arith.constant dense<0xFF800000> : vector<16xf32>
    %325 = vector.multi_reduction <maximumf>, %324, %cst_154 [1] : vector<16x16xf32> to vector<16xf32>
    %326 = vector.shape_cast %325 : vector<16xf32> to vector<16x1xf32>
    %327 = vector.broadcast %326 : vector<16x1xf32> to vector<16x16xf32>
    %328 = arith.subf %324, %327 : vector<16x16xf32>
    %329 = math.exp %328 : vector<16x16xf32>
    %cst_155 = arith.constant dense<0.000000e+00> : vector<16xf32>
    %330 = vector.multi_reduction <add>, %329, %cst_155 [1] : vector<16x16xf32> to vector<16xf32>
    %331 = vector.shape_cast %330 : vector<16xf32> to vector<16x1xf32>
    %332 = tpu.reciprocal %331 {approx = true} : vector<16x1xf32> -> vector<16x1xf32>
    %333 = vector.broadcast %332 : vector<16x1xf32> to vector<16x16xf32>
    %334 = arith.mulf %329, %333 : vector<16x16xf32>
    %335 = arith.truncf %334 : vector<16x16xf32> to vector<16x16xbf16>
    %cst_156 = arith.constant dense<0.000000e+00> : vector<16x128xf32>
    %336 = tpu.matmul %335, %319, %cst_156 {dimension_numbers = #tpu.dot_dimension_numbers<[1], [0], [0], [1], [0, 0, 1, 1], [], []>} : vector<16x16xbf16>, vector<16x128xbf16>, vector<16x128xf32> -> vector<16x128xf32>
    %337 = vector.extract_strided_slice %290 {offsets = [0, 256], sizes = [16, 128], strides = [1, 1]} : vector<16x1536xf32> to vector<16x128xf32>
    %338 = arith.truncf %337 : vector<16x128xf32> to vector<16x128xbf16>
    %339 = vector.extract_strided_slice %290 {offsets = [0, 768], sizes = [16, 128], strides = [1, 1]} : vector<16x1536xf32> to vector<16x128xf32>
    %340 = arith.truncf %339 : vector<16x128xf32> to vector<16x128xbf16>
    %341 = vector.extract_strided_slice %290 {offsets = [0, 1280], sizes = [16, 128], strides = [1, 1]} : vector<16x1536xf32> to vector<16x128xf32>
    %342 = arith.truncf %341 : vector<16x128xf32> to vector<16x128xbf16>
    %cst_157 = arith.constant dense<0.000000e+00> : vector<16x16xf32>
    %343 = tpu.matmul %338, %340, %cst_157 {dimension_numbers = #tpu.dot_dimension_numbers<[1], [1], [0], [0], [0, 0, 1, 0], [], []>} : vector<16x128xbf16>, vector<16x128xbf16>, vector<16x16xf32> -> vector<16x16xf32>
    %cst_158 = arith.constant 0.353553385 : f32
    %344 = vector.broadcast %cst_158 : f32 to vector<16x16xf32>
    %345 = arith.mulf %343, %344 : vector<16x16xf32>
    %cst_159 = arith.constant -1.000000e+30 : f32
    %346 = vector.broadcast %cst_159 : f32 to vector<16x16xf32>
    %347 = arith.select %69, %345, %346 : vector<16x16xi1>, vector<16x16xf32>
    %cst_160 = arith.constant dense<0xFF800000> : vector<16xf32>
    %348 = vector.multi_reduction <maximumf>, %347, %cst_160 [1] : vector<16x16xf32> to vector<16xf32>
    %349 = vector.shape_cast %348 : vector<16xf32> to vector<16x1xf32>
    %350 = vector.broadcast %349 : vector<16x1xf32> to vector<16x16xf32>
    %351 = arith.subf %347, %350 : vector<16x16xf32>
    %352 = math.exp %351 : vector<16x16xf32>
    %cst_161 = arith.constant dense<0.000000e+00> : vector<16xf32>
    %353 = vector.multi_reduction <add>, %352, %cst_161 [1] : vector<16x16xf32> to vector<16xf32>
    %354 = vector.shape_cast %353 : vector<16xf32> to vector<16x1xf32>
    %355 = tpu.reciprocal %354 {approx = true} : vector<16x1xf32> -> vector<16x1xf32>
    %356 = vector.broadcast %355 : vector<16x1xf32> to vector<16x16xf32>
    %357 = arith.mulf %352, %356 : vector<16x16xf32>
    %358 = arith.truncf %357 : vector<16x16xf32> to vector<16x16xbf16>
    %cst_162 = arith.constant dense<0.000000e+00> : vector<16x128xf32>
    %359 = tpu.matmul %358, %342, %cst_162 {dimension_numbers = #tpu.dot_dimension_numbers<[1], [0], [0], [1], [0, 0, 1, 1], [], []>} : vector<16x16xbf16>, vector<16x128xbf16>, vector<16x128xf32> -> vector<16x128xf32>
    %360 = vector.extract_strided_slice %290 {offsets = [0, 384], sizes = [16, 128], strides = [1, 1]} : vector<16x1536xf32> to vector<16x128xf32>
    %361 = arith.truncf %360 : vector<16x128xf32> to vector<16x128xbf16>
    %362 = vector.extract_strided_slice %290 {offsets = [0, 896], sizes = [16, 128], strides = [1, 1]} : vector<16x1536xf32> to vector<16x128xf32>
    %363 = arith.truncf %362 : vector<16x128xf32> to vector<16x128xbf16>
    %364 = vector.extract_strided_slice %290 {offsets = [0, 1408], sizes = [16, 128], strides = [1, 1]} : vector<16x1536xf32> to vector<16x128xf32>
    %365 = arith.truncf %364 : vector<16x128xf32> to vector<16x128xbf16>
    %cst_163 = arith.constant dense<0.000000e+00> : vector<16x16xf32>
    %366 = tpu.matmul %361, %363, %cst_163 {dimension_numbers = #tpu.dot_dimension_numbers<[1], [1], [0], [0], [0, 0, 1, 0], [], []>} : vector<16x128xbf16>, vector<16x128xbf16>, vector<16x16xf32> -> vector<16x16xf32>
    %cst_164 = arith.constant 0.353553385 : f32
    %367 = vector.broadcast %cst_164 : f32 to vector<16x16xf32>
    %368 = arith.mulf %366, %367 : vector<16x16xf32>
    %cst_165 = arith.constant -1.000000e+30 : f32
    %369 = vector.broadcast %cst_165 : f32 to vector<16x16xf32>
    %370 = arith.select %69, %368, %369 : vector<16x16xi1>, vector<16x16xf32>
    %cst_166 = arith.constant dense<0xFF800000> : vector<16xf32>
    %371 = vector.multi_reduction <maximumf>, %370, %cst_166 [1] : vector<16x16xf32> to vector<16xf32>
    %372 = vector.shape_cast %371 : vector<16xf32> to vector<16x1xf32>
    %373 = vector.broadcast %372 : vector<16x1xf32> to vector<16x16xf32>
    %374 = arith.subf %370, %373 : vector<16x16xf32>
    %375 = math.exp %374 : vector<16x16xf32>
    %cst_167 = arith.constant dense<0.000000e+00> : vector<16xf32>
    %376 = vector.multi_reduction <add>, %375, %cst_167 [1] : vector<16x16xf32> to vector<16xf32>
    %377 = vector.shape_cast %376 : vector<16xf32> to vector<16x1xf32>
    %378 = tpu.reciprocal %377 {approx = true} : vector<16x1xf32> -> vector<16x1xf32>
    %379 = vector.broadcast %378 : vector<16x1xf32> to vector<16x16xf32>
    %380 = arith.mulf %375, %379 : vector<16x16xf32>
    %381 = arith.truncf %380 : vector<16x16xf32> to vector<16x16xbf16>
    %cst_168 = arith.constant dense<0.000000e+00> : vector<16x128xf32>
    %382 = tpu.matmul %381, %365, %cst_168 {dimension_numbers = #tpu.dot_dimension_numbers<[1], [0], [0], [1], [0, 0, 1, 1], [], []>} : vector<16x16xbf16>, vector<16x128xbf16>, vector<16x128xf32> -> vector<16x128xf32>
    %383 = tpu.concatenate %313, %336, %359, %382 in 1 : vector<16x128xf32>, vector<16x128xf32>, vector<16x128xf32>, vector<16x128xf32> -> vector<16x512xf32>
    %384 = arith.truncf %383 : vector<16x512xf32> to vector<16x512xbf16>
    %c1_169 = arith.constant 1 : index
    %c0_170 = arith.constant 0 : index
    %c0_171 = arith.constant 0 : index
    %385 = vector.load %arg7[%c1_169, %c0_170, %c0_171] : memref<2x512x128xbf16, #tpu.memory_space<vmem>>, vector<1x512x128xbf16>
    %386 = vector.shape_cast %385 : vector<1x512x128xbf16> to vector<512x128xbf16>
    %cst_172 = arith.constant dense<0.000000e+00> : vector<16x128xf32>
    %387 = tpu.matmul %384, %386, %cst_172 {dimension_numbers = #tpu.dot_dimension_numbers<[1], [0], [0], [1], [0, 0, 1, 1], [], []>} : vector<16x512xbf16>, vector<512x128xbf16>, vector<16x128xf32> -> vector<16x128xf32>
    %388 = arith.addf %256, %387 : vector<16x128xf32>
    %c1_173 = arith.constant 1 : index
    %c0_174 = arith.constant 0 : index
    %c0_175 = arith.constant 0 : index
    %389 = vector.load %arg8[%c1_173, %c0_174, %c0_175] : memref<2x1x128xf32, #tpu.memory_space<vmem>>, vector<1x1x128xf32>
    %390 = vector.shape_cast %389 : vector<1x1x128xf32> to vector<1x128xf32>
    %391 = vector.broadcast %390 : vector<1x128xf32> to vector<16x128xf32>
    %392 = arith.addf %388, %391 : vector<16x128xf32>
    %c1_176 = arith.constant 1 : index
    %c0_177 = arith.constant 0 : index
    %c0_178 = arith.constant 0 : index
    %393 = vector.load %arg9[%c1_176, %c0_177, %c0_178] : memref<2x1x128xf32, #tpu.memory_space<vmem>>, vector<1x1x128xf32>
    %394 = vector.shape_cast %393 : vector<1x1x128xf32> to vector<1x128xf32>
    %c1_179 = arith.constant 1 : index
    %c0_180 = arith.constant 0 : index
    %c0_181 = arith.constant 0 : index
    %395 = vector.load %arg10[%c1_179, %c0_180, %c0_181] : memref<2x1x128xf32, #tpu.memory_space<vmem>>, vector<1x1x128xf32>
    %396 = vector.shape_cast %395 : vector<1x1x128xf32> to vector<1x128xf32>
    %cst_182 = arith.constant dense<0.000000e+00> : vector<16xf32>
    %397 = vector.multi_reduction <add>, %392, %cst_182 [1] : vector<16x128xf32> to vector<16xf32>
    %398 = vector.shape_cast %397 : vector<16xf32> to vector<16x1xf32>
    %cst_183 = arith.constant 3.125000e-02 : f32
    %399 = vector.broadcast %cst_183 : f32 to vector<16x1xf32>
    %400 = arith.mulf %398, %399 : vector<16x1xf32>
    %401 = arith.mulf %392, %392 : vector<16x128xf32>
    %cst_184 = arith.constant dense<0.000000e+00> : vector<16xf32>
    %402 = vector.multi_reduction <add>, %401, %cst_184 [1] : vector<16x128xf32> to vector<16xf32>
    %403 = vector.shape_cast %402 : vector<16xf32> to vector<16x1xf32>
    %cst_185 = arith.constant 3.125000e-02 : f32
    %404 = vector.broadcast %cst_185 : f32 to vector<16x1xf32>
    %405 = arith.mulf %403, %404 : vector<16x1xf32>
    %406 = arith.mulf %400, %400 : vector<16x1xf32>
    %407 = arith.subf %405, %406 : vector<16x1xf32>
    %408 = vector.broadcast %400 : vector<16x1xf32> to vector<16x128xf32>
    %409 = arith.subf %392, %408 : vector<16x128xf32>
    %cst_186 = arith.constant 9.99999974E-6 : f32
    %410 = vector.broadcast %cst_186 : f32 to vector<16x1xf32>
    %411 = arith.addf %407, %410 : vector<16x1xf32>
    %412 = math.rsqrt %411 : vector<16x1xf32>
    %413 = vector.broadcast %412 : vector<16x1xf32> to vector<16x128xf32>
    %414 = arith.mulf %409, %413 : vector<16x128xf32>
    %415 = vector.broadcast %394 : vector<1x128xf32> to vector<16x128xf32>
    %416 = arith.mulf %414, %415 : vector<16x128xf32>
    %417 = vector.broadcast %396 : vector<1x128xf32> to vector<16x128xf32>
    %418 = arith.addf %416, %417 : vector<16x128xf32>
    %419 = arith.truncf %418 : vector<16x128xf32> to vector<16x128xbf16>
    %c1_187 = arith.constant 1 : index
    %c0_188 = arith.constant 0 : index
    %c0_189 = arith.constant 0 : index
    %420 = vector.load %arg11[%c1_187, %c0_188, %c0_189] : memref<2x128x128xbf16, #tpu.memory_space<vmem>>, vector<1x128x128xbf16>
    %421 = vector.shape_cast %420 : vector<1x128x128xbf16> to vector<128x128xbf16>
    %cst_190 = arith.constant dense<0.000000e+00> : vector<16x128xf32>
    %422 = tpu.matmul %419, %421, %cst_190 {dimension_numbers = #tpu.dot_dimension_numbers<[1], [0], [0], [1], [0, 0, 1, 1], [], []>} : vector<16x128xbf16>, vector<128x128xbf16>, vector<16x128xf32> -> vector<16x128xf32>
    %c1_191 = arith.constant 1 : index
    %c0_192 = arith.constant 0 : index
    %c0_193 = arith.constant 0 : index
    %423 = vector.load %arg12[%c1_191, %c0_192, %c0_193] : memref<2x1x128xf32, #tpu.memory_space<vmem>>, vector<1x1x128xf32>
    %424 = vector.shape_cast %423 : vector<1x1x128xf32> to vector<1x128xf32>
    %425 = vector.broadcast %424 : vector<1x128xf32> to vector<16x128xf32>
    %426 = arith.addf %422, %425 : vector<16x128xf32>
    %cst_194 = arith.constant 1.702000e+00 : f32
    %427 = vector.broadcast %cst_194 : f32 to vector<16x128xf32>
    %428 = arith.mulf %427, %426 : vector<16x128xf32>
    %429 = arith.negf %428 : vector<16x128xf32>
    %430 = math.exp %429 : vector<16x128xf32>
    %cst_195 = arith.constant 1.000000e+00 : f32
    %431 = vector.broadcast %cst_195 : f32 to vector<16x128xf32>
    %432 = arith.addf %431, %430 : vector<16x128xf32>
    %433 = arith.divf %431, %432 : vector<16x128xf32>
    %434 = arith.mulf %426, %433 : vector<16x128xf32>
    %435 = arith.truncf %434 : vector<16x128xf32> to vector<16x128xbf16>
    %c1_196 = arith.constant 1 : index
    %c0_197 = arith.constant 0 : index
    %c0_198 = arith.constant 0 : index
    %436 = vector.load %arg13[%c1_196, %c0_197, %c0_198] : memref<2x128x128xbf16, #tpu.memory_space<vmem>>, vector<1x128x128xbf16>
    %437 = vector.shape_cast %436 : vector<1x128x128xbf16> to vector<128x128xbf16>
    %cst_199 = arith.constant dense<0.000000e+00> : vector<16x128xf32>
    %438 = tpu.matmul %435, %437, %cst_199 {dimension_numbers = #tpu.dot_dimension_numbers<[1], [0], [0], [1], [0, 0, 1, 1], [], []>} : vector<16x128xbf16>, vector<128x128xbf16>, vector<16x128xf32> -> vector<16x128xf32>
    %c1_200 = arith.constant 1 : index
    %c0_201 = arith.constant 0 : index
    %c0_202 = arith.constant 0 : index
    %439 = vector.load %arg14[%c1_200, %c0_201, %c0_202] : memref<2x1x128xf32, #tpu.memory_space<vmem>>, vector<1x1x128xf32>
    %440 = vector.shape_cast %439 : vector<1x1x128xf32> to vector<1x128xf32>
    %441 = vector.broadcast %440 : vector<1x128xf32> to vector<16x128xf32>
    %442 = arith.addf %438, %441 : vector<16x128xf32>
    %443 = arith.addf %392, %442 : vector<16x128xf32>
    %c0_203 = arith.constant 0 : index
    %c0_204 = arith.constant 0 : index
    %444 = vector.load %arg15[%c0_203, %c0_204] : memref<1x128xf32, #tpu.memory_space<vmem>>, vector<1x128xf32>
    %c0_205 = arith.constant 0 : index
    %c0_206 = arith.constant 0 : index
    %445 = vector.load %arg16[%c0_205, %c0_206] : memref<1x128xf32, #tpu.memory_space<vmem>>, vector<1x128xf32>
    %cst_207 = arith.constant dense<0.000000e+00> : vector<16xf32>
    %446 = vector.multi_reduction <add>, %443, %cst_207 [1] : vector<16x128xf32> to vector<16xf32>
    %447 = vector.shape_cast %446 : vector<16xf32> to vector<16x1xf32>
    %cst_208 = arith.constant 3.125000e-02 : f32
    %448 = vector.broadcast %cst_208 : f32 to vector<16x1xf32>
    %449 = arith.mulf %447, %448 : vector<16x1xf32>
    %450 = arith.mulf %443, %443 : vector<16x128xf32>
    %cst_209 = arith.constant dense<0.000000e+00> : vector<16xf32>
    %451 = vector.multi_reduction <add>, %450, %cst_209 [1] : vector<16x128xf32> to vector<16xf32>
    %452 = vector.shape_cast %451 : vector<16xf32> to vector<16x1xf32>
    %cst_210 = arith.constant 3.125000e-02 : f32
    %453 = vector.broadcast %cst_210 : f32 to vector<16x1xf32>
    %454 = arith.mulf %452, %453 : vector<16x1xf32>
    %455 = arith.mulf %449, %449 : vector<16x1xf32>
    %456 = arith.subf %454, %455 : vector<16x1xf32>
    %457 = vector.broadcast %449 : vector<16x1xf32> to vector<16x128xf32>
    %458 = arith.subf %443, %457 : vector<16x128xf32>
    %cst_211 = arith.constant 9.99999974E-6 : f32
    %459 = vector.broadcast %cst_211 : f32 to vector<16x1xf32>
    %460 = arith.addf %456, %459 : vector<16x1xf32>
    %461 = math.rsqrt %460 : vector<16x1xf32>
    %462 = vector.broadcast %461 : vector<16x1xf32> to vector<16x128xf32>
    %463 = arith.mulf %458, %462 : vector<16x128xf32>
    %464 = vector.broadcast %444 : vector<1x128xf32> to vector<16x128xf32>
    %465 = arith.mulf %463, %464 : vector<16x128xf32>
    %466 = vector.broadcast %445 : vector<1x128xf32> to vector<16x128xf32>
    %467 = arith.addf %465, %466 : vector<16x128xf32>
    %c0_212 = arith.constant 0 : index
    %c0_213 = arith.constant 0 : index
    %468 = vector.load %arg17[%c0_212, %c0_213] : memref<16x128xf32, #tpu.memory_space<vmem>>, vector<16x128xf32>
    tpu.vector_store %arg17[%c0_212, %c0_213], %467 {strides = array<i32>} : memref<16x128xf32, #tpu.memory_space<vmem>>, vector<16x128xf32>,
    return
  }
}

</mosaic_0001>

<llo_original>
// kernel: tpu_custom_call.1
$region0: #{tpu_custom_call.1}
  #allocation0 [shape = 'u32[]', space=smem, size = 0x4, offset = 0x4, fixed_abs, tag = 'smem constant byte address 0x4 - core index']
  #allocation1 [shape = 'u32[72,128]{1,0:T(1,128)}', space=vmem, size = 0x9000, scoped, tag = 'internal scratch']
  #allocation2 [shape = 'f32[16,128]{1,0:T(8,128)}', space=vmem, size = 0x2000, scoped, tag = 'scratch operand']
  %s0 = inlined_call_operand.hbm [shape: s32[16], index: 0, kind: input, shape index: {}]
  %s1 = inlined_call_operand.hbm [shape: f32[128,128], index: 1, kind: input, shape index: {}]
  %s2 = inlined_call_operand.hbm [shape: f32[16,128], index: 2, kind: input, shape index: {}]
  %s3 = inlined_call_operand.vmem [shape: f32[2,1,128], index: 3, kind: input, shape index: {}]
  %s4 = inlined_call_operand.hbm [shape: f32[2,1,128], index: 4, kind: input, shape index: {}]
  %s5 = inlined_call_operand.hbm [shape: bf16[2,128,1536], index: 5, kind: input, shape index: {}]
  %s6 = inlined_call_operand.hbm [shape: f32[2,1,1536], index: 6, kind: input, shape index: {}]
  %s7 = inlined_call_operand.hbm [shape: bf16[2,512,128], index: 7, kind: input, shape index: {}]
  %s8 = inlined_call_operand.vmem [shape: f32[2,1,128], index: 8, kind: input, shape index: {}]
  %s9 = inlined_call_operand.vmem [shape: f32[2,1,128], index: 9, kind: input, shape index: {}]
  %s10 = inlined_call_operand.vmem [shape: f32[2,1,128], index: 10, kind: input, shape index: {}]
  %s11 = inlined_call_operand.hbm [shape: bf16[2,128,128], index: 11, kind: input, shape index: {}]
  %s12 = inlined_call_operand.vmem [shape: f32[2,1,128], index: 12, kind: input, shape index: {}]
  %s13 = inlined_call_operand.hbm [shape: bf16[2,128,128], index: 13, kind: input, shape index: {}]
  %s14 = inlined_call_operand.vmem [shape: f32[2,1,128], index: 14, kind: input, shape index: {}]
  %s15 = inlined_call_operand.vmem [shape: f32[1,128], index: 15, kind: input, shape index: {}]
  %s16 = inlined_call_operand.vmem [shape: f32[1,128], index: 16, kind: input, shape index: {}]
  %s17 = inlined_call_operand.hbm [shape: f32[16,128], index: 17, kind: output, shape index: {}]
  %s18 = sld [smem:[#allocation0]]
  $region114: #{tpu_custom_call.1} parent=0
    _
  %s20 = ssub.s32 1, %s18
  %s21 = scalar_select 0, %s20, %s18
  $region1: #{tpu_custom_call.1} parent=0
    #allocation3 [shape = 'u8[512]{0}', space=smem, size = 0x200, scoped, tag = 'input window, operand 0, single buffered']
    #allocation4 [shape = 's32[1]{0}', space=sflag, size = 0x4, scoped, tag = 'scoped memory for tpu_custom_call.1']
    #allocation5 [shape = 's32[1]{0}', space=sflag, size = 0x4, scoped, tag = 'scoped memory for tpu_custom_call.1']
    #allocation6 [shape = 's32[1]{0}', space=sflag, size = 0x4, scoped, tag = 'scoped memory for tpu_custom_call.1']
    #allocation7 [shape = 'u8[65536]{0}', space=vmem, size = 0x10000, scoped, tag = 'input window, operand 1, single buffered']
    #allocation8 [shape = 'u8[8192]{0}', space=vmem, size = 0x2000, scoped, tag = 'input window, operand 2, single buffered']
    #allocation9 [shape = 's32[1]{0}', space=sflag, size = 0x4, scoped, tag = 'scoped memory for tpu_custom_call.1']
    #allocation10 [shape = 'u8[1024]{0}', space=vmem, size = 0x400, scoped, tag = 'input window, operand 4, single buffered']
    #allocation11 [shape = 'u8[786432]{0}', space=vmem, size = 0xc0000, scoped, tag = 'input window, operand 5, single buffered']
    #allocation12 [shape = 's32[1]{0}', space=sflag, size = 0x4, scoped, tag = 'scoped memory for tpu_custom_call.1']
    #allocation13 [shape = 'u8[12288]{0}', space=vmem, size = 0x3000, scoped, tag = 'input window, operand 6, single buffered']
    #allocation14 [shape = 'u8[262144]{0}', space=vmem, size = 0x40000, scoped, tag = 'input window, operand 7, single buffered']
    #allocation15 [shape = 's32[1]{0}', space=sflag, size = 0x4, scoped, tag = 'scoped memory for tpu_custom_call.1']
    #allocation16 [shape = 'u8[65536]{0}', space=vmem, size = 0x10000, scoped, tag = 'input window, operand 11, single buffered']
    #allocation17 [shape = 'u8[65536]{0}', space=vmem, size = 0x10000, scoped, tag = 'input window, operand 13, single buffered']
    #allocation18 [shape = 's32[1]{0}', space=sflag, size = 0x4, scoped, tag = 'scoped memory for tpu_custom_call.1']
    #allocation19 [shape = 'u8[8192]{0}', space=vmem, size = 0x2000, scoped, tag = 'output window, operand 0, single buffered']
    %22 = vsyncpa [#allocation6], 0
    %23 = vsyncpa [#allocation4], 0
    %24 = vsyncpa [#allocation9], 0
    %25 = vsyncpa [#allocation12], 0
    %26 = vsyncpa [#allocation15], 0
    %27 = vsyncpa [#allocation18], 0
    %28 = vsyncpa [#allocation5], 0
    // Predicated region
    $region2: #{tpu_custom_call.1} parent=1 // pred_check
      _
    $region3: #{tpu_custom_call.1} parent=1 // pred_check_branch
      %30 = sbr.rel (0) target = $region5
    $region4: #{tpu_custom_call.1} parent=1 // pred_region
      %32 = vsyncadd [#allocation6], 0
      %s34 = sshll.u32 %s0, 4
      %s35 = int_to_ptr.hbm [resolvable:$true] %s34
      %37 = dma.hbm_to_smem %s35, 16, [#allocation3], [#allocation6]
    $region5: #{tpu_custom_call.1} parent=1 // pred_fallthru
      _
    // Predicated region
    $region6: #{tpu_custom_call.1} parent=1 // pred_check
      _
    $region7: #{tpu_custom_call.1} parent=1 // pred_check_branch
      %39 = sbr.rel (0) target = $region9
    $region8: #{tpu_custom_call.1} parent=1 // pred_region
      %41 = vsyncadd [#allocation4], 0
      %s42 = sshll.u32 %s1, 4
      %s43 = int_to_ptr.hbm [resolvable:$true] %s42
      %s44 = sshll.u32 [#allocation7], 4
      %s45 = int_to_ptr.vmem [resolvable:$true] %s44
      %50 = dma.hbm_to_vmem [thread:$0]  %s43, 2048, %s45, [#allocation4], 128, 128, 8
    $region9: #{tpu_custom_call.1} parent=1 // pred_fallthru
      _
    // Predicated region
    $region10: #{tpu_custom_call.1} parent=1 // pred_check
      _
    $region11: #{tpu_custom_call.1} parent=1 // pred_check_branch
      %52 = sbr.rel (0) target = $region13
    $region12: #{tpu_custom_call.1} parent=1 // pred_region
      %54 = vsyncadd [#allocation9], 0
      %s55 = sshll.u32 %s2, 4
      %s56 = int_to_ptr.hbm [resolvable:$true] %s55
      %s57 = sshll.u32 [#allocation8], 4
      %s58 = int_to_ptr.vmem [resolvable:$true] %s57
      %63 = dma.hbm_to_vmem [thread:$0]  %s56, 256, %s58, [#allocation9], 128, 128, 8
    $region13: #{tpu_custom_call.1} parent=1 // pred_fallthru
      _
    // Predicated region
    $region14: #{tpu_custom_call.1} parent=1 // pred_check
      _
    $region15: #{tpu_custom_call.1} parent=1 // pred_check_branch
      %65 = sbr.rel (0) target = $region17
    $region16: #{tpu_custom_call.1} parent=1 // pred_region
      _
    $region17: #{tpu_custom_call.1} parent=1 // pred_fallthru
      _
    // Predicated region
    $region18: #{tpu_custom_call.1} parent=1 // pred_check
      _
    $region19: #{tpu_custom_call.1} parent=1 // pred_check_branch
      %67 = sbr.rel (0) target = $region21
    $region20: #{tpu_custom_call.1} parent=1 // pred_region
      %69 = vsyncadd [#allocation9], 0
      %s70 = sshll.u32 %s4, 4
      %s71 = int_to_ptr.hbm [resolvable:$true] %s70
      %s72 = sshll.u32 [#allocation10], 4
      %s73 = int_to_ptr.vmem [resolvable:$true] %s72
      %78 = dma.hbm_to_vmem [thread:$0]  %s71, 32, %s73, [#allocation9], 16, 16, 1
    $region21: #{tpu_custom_call.1} parent=1 // pred_fallthru
      _
    // Predicated region
    $region22: #{tpu_custom_call.1} parent=1 // pred_check
      _
    $region23: #{tpu_custom_call.1} parent=1 // pred_check_branch
      %80 = sbr.rel (0) target = $region25
    $region24: #{tpu_custom_call.1} parent=1 // pred_region
      %82 = vsyncadd [#allocation12], 0
      %s83 = sshll.u32 %s5, 4
      %s84 = int_to_ptr.hbm [resolvable:$true] %s83
      %s85 = sshll.u32 [#allocation11], 4
      %s86 = int_to_ptr.vmem [resolvable:$true] %s85
      %91 = dma.hbm_to_vmem [thread:$0]  %s84, 24576, %s86, [#allocation12], 768, 768, 48
    $region25: #{tpu_custom_call.1} parent=1 // pred_fallthru
      _
    // Predicated region
    $region26: #{tpu_custom_call.1} parent=1 // pred_check
      _
    $region27: #{tpu_custom_call.1} parent=1 // pred_check_branch
      %93 = sbr.rel (0) target = $region29
    $region28: #{tpu_custom_call.1} parent=1 // pred_region
      %95 = vsyncadd [#allocation12], 0
      %s96 = sshll.u32 %s6, 4
      %s97 = int_to_ptr.hbm [resolvable:$true] %s96
      %s98 = sshll.u32 [#allocation13], 4
      %s99 = int_to_ptr.vmem [resolvable:$true] %s98
      %104 = dma.hbm_to_vmem [thread:$0]  %s97, 384, %s99, [#allocation12], 192, 192, 12
    $region29: #{tpu_custom_call.1} parent=1 // pred_fallthru
      _
    // Predicated region
    $region30: #{tpu_custom_call.1} parent=1 // pred_check
      _
    $region31: #{tpu_custom_call.1} parent=1 // pred_check_branch
      %106 = sbr.rel (0) target = $region33
    $region32: #{tpu_custom_call.1} parent=1 // pred_region
      %108 = vsyncadd [#allocation15], 0
      %s109 = sshll.u32 %s7, 4
      %s110 = int_to_ptr.hbm [resolvable:$true] %s109
      %s111 = sshll.u32 [#allocation14], 4
      %s112 = int_to_ptr.vmem [resolvable:$true] %s111
      %117 = dma.hbm_to_vmem [thread:$0]  %s110, 8192, %s112, [#allocation15], 64, 64, 4
    $region33: #{tpu_custom_call.1} parent=1 // pred_fallthru
      _
    // Predicated region
    $region34: #{tpu_custom_call.1} parent=1 // pred_check
      _
    $region35: #{tpu_custom_call.1} parent=1 // pred_check_branch
      %119 = sbr.rel (0) target = $region37
    $region36: #{tpu_custom_call.1} parent=1 // pred_region
      _
    $region37: #{tpu_custom_call.1} parent=1 // pred_fallthru
      _
    // Predicated region
    $region38: #{tpu_custom_call.1} parent=1 // pred_check
      _
    $region39: #{tpu_custom_call.1} parent=1 // pred_check_branch
      %121 = sbr.rel (0) target = $region41
    $region40: #{tpu_custom_call.1} parent=1 // pred_region
      _
    $region41: #{tpu_custom_call.1} parent=1 // pred_fallthru
      _
    // Predicated region
    $region42: #{tpu_custom_call.1} parent=1 // pred_check
      _
    $region43: #{tpu_custom_call.1} parent=1 // pred_check_branch
      %123 = sbr.rel (0) target = $region45
    $region44: #{tpu_custom_call.1} parent=1 // pred_region
      _
    $region45: #{tpu_custom_call.1} parent=1 // pred_fallthru
      _
    // Predicated region
    $region46: #{tpu_custom_call.1} parent=1 // pred_check
      _
    $region47: #{tpu_custom_call.1} parent=1 // pred_check_branch
      %125 = sbr.rel (0) target = $region49
    $region48: #{tpu_custom_call.1} parent=1 // pred_region
      %127 = vsyncadd [#allocation15], 0
      %s128 = sshll.u32 %s11, 4
      %s129 = int_to_ptr.hbm [resolvable:$true] %s128
      %s130 = sshll.u32 [#allocation16], 4
      %s131 = int_to_ptr.vmem [resolvable:$true] %s130
      %136 = dma.hbm_to_vmem [thread:$0]  %s129, 2048, %s131, [#allocation15], 64, 64, 4
    $region49: #{tpu_custom_call.1} parent=1 // pred_fallthru
      _
    // Predicated region
    $region50: #{tpu_custom_call.1} parent=1 // pred_check
      _
    $region51: #{tpu_custom_call.1} parent=1 // pred_check_branch
      %138 = sbr.rel (0) target = $region53
    $region52: #{tpu_custom_call.1} parent=1 // pred_region
      _
    $region53: #{tpu_custom_call.1} parent=1 // pred_fallthru
      _
    // Predicated region
    $region54: #{tpu_custom_call.1} parent=1 // pred_check
      _
    $region55: #{tpu_custom_call.1} parent=1 // pred_check_branch
      %140 = sbr.rel (0) target = $region57
    $region56: #{tpu_custom_call.1} parent=1 // pred_region
      %142 = vsyncadd [#allocation18], 0
      %s143 = sshll.u32 %s13, 4
      %s144 = int_to_ptr.hbm [resolvable:$true] %s143
      %s145 = sshll.u32 [#allocation17], 4
      %s146 = int_to_ptr.vmem [resolvable:$true] %s145
      %151 = dma.hbm_to_vmem [thread:$0]  %s144, 2048, %s146, [#allocation18], 64, 64, 4
    $region57: #{tpu_custom_call.1} parent=1 // pred_fallthru
      _
    // Predicated region
    $region58: #{tpu_custom_call.1} parent=1 // pred_check
      _
    $region59: #{tpu_custom_call.1} parent=1 // pred_check_branch
      %153 = sbr.rel (0) target = $region61
    $region60: #{tpu_custom_call.1} parent=1 // pred_region
      _
    $region61: #{tpu_custom_call.1} parent=1 // pred_fallthru
      _
    // Predicated region
    $region62: #{tpu_custom_call.1} parent=1 // pred_check
      _
    $region63: #{tpu_custom_call.1} parent=1 // pred_check_branch
      %155 = sbr.rel (0) target = $region65
    $region64: #{tpu_custom_call.1} parent=1 // pred_region
      _
    $region65: #{tpu_custom_call.1} parent=1 // pred_fallthru
      _
    // Predicated region
    $region66: #{tpu_custom_call.1} parent=1 // pred_check
      _
    $region67: #{tpu_custom_call.1} parent=1 // pred_check_branch
      %157 = sbr.rel (0) target = $region69
    $region68: #{tpu_custom_call.1} parent=1 // pred_region
      _
    $region69: #{tpu_custom_call.1} parent=1 // pred_fallthru
      _
    // Predicated region
    $region70: #{tpu_custom_call.1} parent=1 // pred_check
      _
    $region71: #{tpu_custom_call.1} parent=1 // pred_check_branch
      %159 = sbr.rel (0) target = $region73
    $region72: #{tpu_custom_call.1} parent=1 // pred_region
      %161 = dma.done [#allocation6], 16
    $region73: #{tpu_custom_call.1} parent=1 // pred_fallthru
      _
    // Predicated region
    $region74: #{tpu_custom_call.1} parent=1 // pred_check
      _
    $region75: #{tpu_custom_call.1} parent=1 // pred_check_branch
      %163 = sbr.rel (0) target = $region77
    $region76: #{tpu_custom_call.1} parent=1 // pred_region
      %165 = dma.done [#allocation4], 2048
    $region77: #{tpu_custom_call.1} parent=1 // pred_fallthru
      _
    // Predicated region
    $region78: #{tpu_custom_call.1} parent=1 // pred_check
      _
    $region79: #{tpu_custom_call.1} parent=1 // pred_check_branch
      %167 = sbr.rel (0) target = $region81
    $region80: #{tpu_custom_call.1} parent=1 // pred_region
      %169 = dma.done [#allocation9], 256
    $region81: #{tpu_custom_call.1} parent=1 // pred_fallthru
      _
    // Predicated region
    $region82: #{tpu_custom_call.1} parent=1 // pred_check
      _
    $region83: #{tpu_custom_call.1} parent=1 // pred_check_branch
      %171 = sbr.rel (0) target = $region85
    $region84: #{tpu_custom_call.1} parent=1 // pred_region
      %173 = dma.done [#allocation9], 32
    $region85: #{tpu_custom_call.1} parent=1 // pred_fallthru
      _
    // Predicated region
    $region86: #{tpu_custom_call.1} parent=1 // pred_check
      _
    $region87: #{tpu_custom_call.1} parent=1 // pred_check_branch
      %175 = sbr.rel (0) target = $region89
    $region88: #{tpu_custom_call.1} parent=1 // pred_region
      %177 = dma.done [#allocation12], 24576
    $region89: #{tpu_custom_call.1} parent=1 // pred_fallthru
      _
    // Predicated region
    $region90: #{tpu_custom_call.1} parent=1 // pred_check
      _
    $region91: #{tpu_custom_call.1} parent=1 // pred_check_branch
      %179 = sbr.rel (0) target = $region93
    $region92: #{tpu_custom_call.1} parent=1 // pred_region
      %181 = dma.done [#allocation12], 384
    $region93: #{tpu_custom_call.1} parent=1 // pred_fallthru
      _
    // Predicated region
    $region94: #{tpu_custom_call.1} parent=1 // pred_check
      _
    $region95: #{tpu_custom_call.1} parent=1 // pred_check_branch
      %183 = sbr.rel (0) target = $region97
    $region96: #{tpu_custom_call.1} parent=1 // pred_region
      %185 = dma.done [#allocation15], 8192
    $region97: #{tpu_custom_call.1} parent=1 // pred_fallthru
      _
    // Predicated region
    $region98: #{tpu_custom_call.1} parent=1 // pred_check
      _
    $region99: #{tpu_custom_call.1} parent=1 // pred_check_branch
      %187 = sbr.rel (0) target = $region101
    $region100: #{tpu_custom_call.1} parent=1 // pred_region
      %189 = dma.done [#allocation15], 2048
    $region101: #{tpu_custom_call.1} parent=1 // pred_fallthru
      _
    // Predicated region
    $region102: #{tpu_custom_call.1} parent=1 // pred_check
      _
    $region103: #{tpu_custom_call.1} parent=1 // pred_check_branch
      %191 = sbr.rel (0) target = $region105
    $region104: #{tpu_custom_call.1} parent=1 // pred_region
      %193 = dma.done [#allocation18], 2048
    $region105: #{tpu_custom_call.1} parent=1 // pred_fallthru
      _
    %194 = sfence
    %s196 = sld [smem:[#allocation3]]
    %s197 = scalar_lea.vmem [#allocation7], %s196
    %v198 = vld [vmem:[%s197] sm:$0x1]
    %199 = vst [vmem:[#allocation2] sm:$0x1] %v198
    %s200 = sld [smem:[#allocation3 + $0x1]]
    %s201 = scalar_lea.vmem [#allocation7], %s200
    %v202 = vld [vmem:[%s201] sm:$0x1]
    %203 = vst [vmem:[#allocation2 + $0x1] sm:$0x1] %v202
    %s204 = sld [smem:[#allocation3 + $0x2]]
    %s205 = scalar_lea.vmem [#allocation7], %s204
    %v206 = vld [vmem:[%s205] sm:$0x1]
    %207 = vst [vmem:[#allocation2 + $0x2] sm:$0x1] %v206
    %s208 = sld [smem:[#allocation3 + $0x3]]
    %s209 = scalar_lea.vmem [#allocation7], %s208
    %v210 = vld [vmem:[%s209] sm:$0x1]
    %211 = vst [vmem:[#allocation2 + $0x3] sm:$0x1] %v210
    %s212 = sld [smem:[#allocation3 + $0x4]]
    %s213 = scalar_lea.vmem [#allocation7], %s212
    %v214 = vld [vmem:[%s213] sm:$0x1]
    %215 = vst [vmem:[#allocation2 + $0x4] sm:$0x1] %v214
    %s216 = sld [smem:[#allocation3 + $0x5]]
    %s217 = scalar_lea.vmem [#allocation7], %s216
    %v218 = vld [vmem:[%s217] sm:$0x1]
    %219 = vst [vmem:[#allocation2 + $0x5] sm:$0x1] %v218
    %s220 = sld [smem:[#allocation3 + $0x6]]
    %s221 = scalar_lea.vmem [#allocation7], %s220
    %v222 = vld [vmem:[%s221] sm:$0x1]
    %223 = vst [vmem:[#allocation2 + $0x6] sm:$0x1] %v222
    %s224 = sld [smem:[#allocation3 + $0x7]]
    %s225 = scalar_lea.vmem [#allocation7], %s224
    %v226 = vld [vmem:[%s225] sm:$0x1]
    %227 = vst [vmem:[#allocation2 + $0x7] sm:$0x1] %v226
    %s228 = sld [smem:[#allocation3 + $0x8]]
    %s229 = scalar_lea.vmem [#allocation7], %s228
    %v230 = vld [vmem:[%s229] sm:$0x1]
    %231 = vst [vmem:[#allocation2 + $0x8] sm:$0x1] %v230
    %s232 = sld [smem:[#allocation3 + $0x9]]
    %s233 = scalar_lea.vmem [#allocation7], %s232
    %v234 = vld [vmem:[%s233] sm:$0x1]
    %235 = vst [vmem:[#allocation2 + $0x9] sm:$0x1] %v234
    %s236 = sld [smem:[#allocation3 + $0xa]]
    %s237 = scalar_lea.vmem [#allocation7], %s236
    %v238 = vld [vmem:[%s237] sm:$0x1]
    %239 = vst [vmem:[#allocation2 + $0xa] sm:$0x1] %v238
    %s240 = sld [smem:[#allocation3 + $0xb]]
    %s241 = scalar_lea.vmem [#allocation7], %s240
    %v242 = vld [vmem:[%s241] sm:$0x1]
    %243 = vst [vmem:[#allocation2 + $0xb] sm:$0x1] %v242
    %s244 = sld [smem:[#allocation3 + $0xc]]
    %s245 = scalar_lea.vmem [#allocation7], %s244
    %v246 = vld [vmem:[%s245] sm:$0x1]
    %247 = vst [vmem:[#allocation2 + $0xc] sm:$0x1] %v246
    %s248 = sld [smem:[#allocation3 + $0xd]]
    %s249 = scalar_lea.vmem [#allocation7], %s248
    %v250 = vld [vmem:[%s249] sm:$0x1]
    %251 = vst [vmem:[#allocation2 + $0xd] sm:$0x1] %v250
    %s252 = sld [smem:[#allocation3 + $0xe]]
    %s253 = scalar_lea.vmem [#allocation7], %s252
    %v254 = vld [vmem:[%s253] sm:$0x1]
    %255 = vst [vmem:[#allocation2 + $0xe] sm:$0x1] %v254
    %s256 = sld [smem:[#allocation3 + $0xf]]
    %s257 = scalar_lea.vmem [#allocation7], %s256
    %v258 = vld [vmem:[%s257] sm:$0x1]
    %259 = vst [vmem:[#allocation2 + $0xf] sm:$0x1] %v258
    %v260 = vld [vmem:[#allocation2] sm:$0xff]
    %v261 = vld [vmem:[#allocation2 + $0x8] sm:$0xff]
    %v262 = vld [vmem:[#allocation8] sm:$0xff]
    %v263 = vld [vmem:[#allocation8 + $0x8] sm:$0xff]
    %v264 = vadd.f32 %v260, %v262
    %v265 = vadd.f32 %v261, %v263
    %v266 = vlaneseq
    %v267 = vshrl.u32 %v266, 7
    %v268 = vadd.s32 %v267, 8
    %v269 = vlaneseq
    %v270 = vand.u32 %v269, 127
    %vm271 = vcmp.le.s32.totalorder %v270, %v267
    %vm272 = vcmp.le.s32.totalorder %v270, %v268
    %v273 = vld [vmem:[%s3] sm:$0x1]
    %v274 = vld [vmem:[#allocation10] sm:$0x1]
    %275 = vadd.xlane.f32.xlu0 %v264
    %v276 = vpop.xlane.xlu0 %275
    %277 = vadd.xlane.f32.xlu0 %v265
    %v278 = vpop.xlane.xlu0 %277
    %v279 = vmul.f32 %v276, 0.03125
    %v280 = vmul.f32 %v278, 0.03125
    %v281 = vmul.f32 %v264, %v264
    %v282 = vmul.f32 %v265, %v265
    %283 = vadd.xlane.f32.xlu0 %v281
    %v284 = vpop.xlane.xlu0 %283
    %285 = vadd.xlane.f32.xlu0 %v282
    %v286 = vpop.xlane.xlu0 %285
    %v287 = vmul.f32 %v284, 0.03125
    %v288 = vmul.f32 %v286, 0.03125
    %v289 = vmul.f32 %v279, %v279
    %v290 = vmul.f32 %v280, %v280
    %v291 = vsub.f32 %v287, %v289
    %v292 = vsub.f32 %v288, %v290
    %v293 = vsub.f32 %v264, %v279
    %v294 = vsub.f32 %v265, %v280
    %v295 = vadd.f32 %v291, 1e-05
    %v296 = vadd.f32 %v292, 1e-05
    %v297 = vrsqrt.pop %v295
    %v298 = vmul.f32 %v297, %v295
    %v299 = vmul.f32 %v298, %v297
    %v300 = vmul.f32 0.5, %v299
    %v301 = vsub.f32 1.5, %v300
    %v302 = vmul.f32 %v297, %v301
    %vm303 = vweird.f32 %v295
    %vm304 = vweird.f32 %v297
    %vm305 = vmor %vm303, %vm304
    %v306 = vsel %vm305, %v297, %v302
    %v307 = vrsqrt.pop %v296
    %v308 = vmul.f32 %v307, %v296
    %v309 = vmul.f32 %v308, %v307
    %v310 = vmul.f32 0.5, %v309
    %v311 = vsub.f32 1.5, %v310
    %v312 = vmul.f32 %v307, %v311
    %vm313 = vweird.f32 %v296
    %vm314 = vweird.f32 %v307
    %vm315 = vmor %vm313, %vm314
    %v316 = vsel %vm315, %v307, %v312
    %v317 = vmul.f32 %v293, %v306
    %v318 = vmul.f32 %v294, %v316
    %v320 = vperm.slane %v273, 0
    %v322 = vmul.f32 %v317, %v320
    %v323 = vmul.f32 %v318, %v320
    %v325 = vperm.slane %v274, 0
    %v327 = vadd.f32 %v322, %v325
    %v328 = vadd.f32 %v323, %v325
    %v329 = vpack.c.bf16 %v328, %v327
    %v330 = vld [vmem:[#allocation11] sm:$0xff]
    %v331 = vld [vmem:[#allocation11 + $0x8] sm:$0xff]
    %v332 = vld [vmem:[#allocation11 + $0x10] sm:$0xff]
    %v333 = vld [vmem:[#allocation11 + $0x18] sm:$0xff]
    %v334 = vld [vmem:[#allocation11 + $0x20] sm:$0xff]
    %v335 = vld [vmem:[#allocation11 + $0x28] sm:$0xff]
    %v336 = vld [vmem:[#allocation11 + $0x30] sm:$0xff]
    %v337 = vld [vmem:[#allocation11 + $0x38] sm:$0xff]
    %v338 = vld [vmem:[#allocation11 + $0x40] sm:$0xff]
    %v339 = vld [vmem:[#allocation11 + $0x48] sm:$0xff]
    %v340 = vld [vmem:[#allocation11 + $0x50] sm:$0xff]
    %v341 = vld [vmem:[#allocation11 + $0x58] sm:$0xff]
    %v342 = vld [vmem:[#allocation11 + $0x60] sm:$0xff]
    %v343 = vld [vmem:[#allocation11 + $0x68] sm:$0xff]
    %v344 = vld [vmem:[#allocation11 + $0x70] sm:$0xff]
    %v345 = vld [vmem:[#allocation11 + $0x78] sm:$0xff]
    %v346 = vld [vmem:[#allocation11 + $0x80] sm:$0xff]
    %v347 = vld [vmem:[#allocation11 + $0x88] sm:$0xff]
    %v348 = vld [vmem:[#allocation11 + $0x90] sm:$0xff]
    %v349 = vld [vmem:[#allocation11 + $0x98] sm:$0xff]
    %v350 = vld [vmem:[#allocation11 + $0xa0] sm:$0xff]
    %v351 = vld [vmem:[#allocation11 + $0xa8] sm:$0xff]
    %v352 = vld [vmem:[#allocation11 + $0xb0] sm:$0xff]
    %v353 = vld [vmem:[#allocation11 + $0xb8] sm:$0xff]
    %v354 = vld [vmem:[#allocation11 + $0xc0] sm:$0xff]
    %v355 = vld [vmem:[#allocation11 + $0xc8] sm:$0xff]
    %v356 = vld [vmem:[#allocation11 + $0xd0] sm:$0xff]
    %v357 = vld [vmem:[#allocation11 + $0xd8] sm:$0xff]
    %v358 = vld [vmem:[#allocation11 + $0xe0] sm:$0xff]
    %v359 = vld [vmem:[#allocation11 + $0xe8] sm:$0xff]
    %v360 = vld [vmem:[#allocation11 + $0xf0] sm:$0xff]
    %v361 = vld [vmem:[#allocation11 + $0xf8] sm:$0xff]
    %v362 = vld [vmem:[#allocation11 + $0x100] sm:$0xff]
    %v363 = vld [vmem:[#allocation11 + $0x108] sm:$0xff]
    %v364 = vld [vmem:[#allocation11 + $0x110] sm:$0xff]
    %v365 = vld [vmem:[#allocation11 + $0x118] sm:$0xff]
    %v366 = vld [vmem:[#allocation11 + $0x120] sm:$0xff]
    %v367 = vld [vmem:[#allocation11 + $0x128] sm:$0xff]
    %v368 = vld [vmem:[#allocation11 + $0x130] sm:$0xff]
    %v369 = vld [vmem:[#allocation11 + $0x138] sm:$0xff]
    %v370 = vld [vmem:[#allocation11 + $0x140] sm:$0xff]
    %v371 = vld [vmem:[#allocation11 + $0x148] sm:$0xff]
    %v372 = vld [vmem:[#allocation11 + $0x150] sm:$0xff]
    %v373 = vld [vmem:[#allocation11 + $0x158] sm:$0xff]
    %v374 = vld [vmem:[#allocation11 + $0x160] sm:$0xff]
    %v375 = vld [vmem:[#allocation11 + $0x168] sm:$0xff]
    %v376 = vld [vmem:[#allocation11 + $0x170] sm:$0xff]
    %v377 = vld [vmem:[#allocation11 + $0x178] sm:$0xff]
    %v378 = vld [vmem:[#allocation11 + $0x180] sm:$0xff]
    %v379 = vld [vmem:[#allocation11 + $0x188] sm:$0xff]
    %v380 = vld [vmem:[#allocation11 + $0x190] sm:$0xff]
    %v381 = vld [vmem:[#allocation11 + $0x198] sm:$0xff]
    %v382 = vld [vmem:[#allocation11 + $0x1a0] sm:$0xff]
    %v383 = vld [vmem:[#allocation11 + $0x1a8] sm:$0xff]
    %v384 = vld [vmem:[#allocation11 + $0x1b0] sm:$0xff]
    %v385 = vld [vmem:[#allocation11 + $0x1b8] sm:$0xff]
    %v386 = vld [vmem:[#allocation11 + $0x1c0] sm:$0xff]
    %v387 = vld [vmem:[#allocation11 + $0x1c8] sm:$0xff]
    %v388 = vld [vmem:[#allocation11 + $0x1d0] sm:$0xff]
    %v389 = vld [vmem:[#allocation11 + $0x1d8] sm:$0xff]
    %v390 = vld [vmem:[#allocation11 + $0x1e0] sm:$0xff]
    %v391 = vld [vmem:[#allocation11 + $0x1e8] sm:$0xff]
    %v392 = vld [vmem:[#allocation11 + $0x1f0] sm:$0xff]
    %v393 = vld [vmem:[#allocation11 + $0x1f8] sm:$0xff]
    %v394 = vld [vmem:[#allocation11 + $0x200] sm:$0xff]
    %v395 = vld [vmem:[#allocation11 + $0x208] sm:$0xff]
    %v396 = vld [vmem:[#allocation11 + $0x210] sm:$0xff]
    %v397 = vld [vmem:[#allocation11 + $0x218] sm:$0xff]
    %v398 = vld [vmem:[#allocation11 + $0x220] sm:$0xff]
    %v399 = vld [vmem:[#allocation11 + $0x228] sm:$0xff]
    %v400 = vld [vmem:[#allocation11 + $0x230] sm:$0xff]
    %v401 = vld [vmem:[#allocation11 + $0x238] sm:$0xff]
    %v402 = vld [vmem:[#allocation11 + $0x240] sm:$0xff]
    %v403 = vld [vmem:[#allocation11 + $0x248] sm:$0xff]
    %v404 = vld [vmem:[#allocation11 + $0x250] sm:$0xff]
    %v405 = vld [vmem:[#allocation11 + $0x258] sm:$0xff]
    %v406 = vld [vmem:[#allocation11 + $0x260] sm:$0xff]
    %v407 = vld [vmem:[#allocation11 + $0x268] sm:$0xff]
    %v408 = vld [vmem:[#allocation11 + $0x270] sm:$0xff]
    %v409 = vld [vmem:[#allocation11 + $0x278] sm:$0xff]
    %v410 = vld [vmem:[#allocation11 + $0x280] sm:$0xff]
    %v411 = vld [vmem:[#allocation11 + $0x288] sm:$0xff]
    %v412 = vld [vmem:[#allocation11 + $0x290] sm:$0xff]
    %v413 = vld [vmem:[#allocation11 + $0x298] sm:$0xff]
    %v414 = vld [vmem:[#allocation11 + $0x2a0] sm:$0xff]
    %v415 = vld [vmem:[#allocation11 + $0x2a8] sm:$0xff]
    %v416 = vld [vmem:[#allocation11 + $0x2b0] sm:$0xff]
    %v417 = vld [vmem:[#allocation11 + $0x2b8] sm:$0xff]
    %v418 = vld [vmem:[#allocation11 + $0x2c0] sm:$0xff]
    %v419 = vld [vmem:[#allocation11 + $0x2c8] sm:$0xff]
    %v420 = vld [vmem:[#allocation11 + $0x2d0] sm:$0xff]
    %v421 = vld [vmem:[#allocation11 + $0x2d8] sm:$0xff]
    %v422 = vld [vmem:[#allocation11 + $0x2e0] sm:$0xff]
    %v423 = vld [vmem:[#allocation11 + $0x2e8] sm:$0xff]
    %v424 = vld [vmem:[#allocation11 + $0x2f0] sm:$0xff]
    %v425 = vld [vmem:[#allocation11 + $0x2f8] sm:$0xff]
    %v426 = vld [vmem:[#allocation13] sm:$0xff]
    %v427 = vld [vmem:[#allocation13 + $0x8] sm:$0xf]
    %v430 = vperm.slane %v426, 0
    %v431 = vperm.slane %v426, 1
    %v432 = vperm.slane %v426, 2
    %v433 = vperm.slane %v426, 3
    %v434 = vperm.slane %v426, 4
    %v435 = vperm.slane %v426, 5
    %v436 = vperm.slane %v426, 6
    %v437 = vperm.slane %v426, 7
    %v438 = vperm.slane %v427, 0
    %v439 = vperm.slane %v427, 1
    %v440 = vperm.slane %v427, 2
    %v441 = vperm.slane %v427, 3
    %v550 = vunpack.c.l.b16 %v330
    %v551 = vunpack.c.h.b16 %v330
    %v552 = vunpack.c.l.b16 %v331
    %v553 = vunpack.c.h.b16 %v331
    %v554 = vunpack.c.l.b16 %v332
    %v555 = vunpack.c.h.b16 %v332
    %v556 = vunpack.c.l.b16 %v333
    %v557 = vunpack.c.h.b16 %v333
    %v558 = vunpack.c.l.b16 %v334
    %v559 = vunpack.c.h.b16 %v334
    %v560 = vunpack.c.l.b16 %v335
    %v561 = vunpack.c.h.b16 %v335
    %v562 = vunpack.c.l.b16 %v336
    %v563 = vunpack.c.h.b16 %v336
    %v564 = vunpack.c.l.b16 %v337
    %v565 = vunpack.c.h.b16 %v337
    %v566 = vunpack.c.l.b16 %v338
    %v567 = vunpack.c.h.b16 %v338
    %v568 = vunpack.c.l.b16 %v339
    %v569 = vunpack.c.h.b16 %v339
    %v570 = vunpack.c.l.b16 %v340
    %v571 = vunpack.c.h.b16 %v340
    %v572 = vunpack.c.l.b16 %v341
    %v573 = vunpack.c.h.b16 %v341
    %v574 = vunpack.c.l.b16 %v342
    %v575 = vunpack.c.h.b16 %v342
    %v576 = vunpack.c.l.b16 %v343
    %v577 = vunpack.c.h.b16 %v343
    %v578 = vunpack.c.l.b16 %v344
    %v579 = vunpack.c.h.b16 %v344
    %v580 = vunpack.c.l.b16 %v345
    %v581 = vunpack.c.h.b16 %v345
    %v582 = vunpack.c.l.b16 %v346
    %v583 = vunpack.c.h.b16 %v346
    %v584 = vunpack.c.l.b16 %v347
    %v585 = vunpack.c.h.b16 %v347
    %v586 = vunpack.c.l.b16 %v348
    %v587 = vunpack.c.h.b16 %v348
    %v588 = vunpack.c.l.b16 %v349
    %v589 = vunpack.c.h.b16 %v349
    %v590 = vunpack.c.l.b16 %v350
    %v591 = vunpack.c.h.b16 %v350
    %v592 = vunpack.c.l.b16 %v351
    %v593 = vunpack.c.h.b16 %v351
    %v594 = vunpack.c.l.b16 %v352
    %v595 = vunpack.c.h.b16 %v352
    %v596 = vunpack.c.l.b16 %v353
    %v597 = vunpack.c.h.b16 %v353
    %v598 = vunpack.c.l.b16 %v354
    %v599 = vunpack.c.h.b16 %v354
    %v600 = vunpack.c.l.b16 %v355
    %v601 = vunpack.c.h.b16 %v355
    %v602 = vunpack.c.l.b16 %v356
    %v603 = vunpack.c.h.b16 %v356
    %v604 = vunpack.c.l.b16 %v357
    %v605 = vunpack.c.h.b16 %v357
    %v606 = vunpack.c.l.b16 %v358
    %v607 = vunpack.c.h.b16 %v358
    %v608 = vunpack.c.l.b16 %v359
    %v609 = vunpack.c.h.b16 %v359
    %v610 = vunpack.c.l.b16 %v360
    %v611 = vunpack.c.h.b16 %v360
    %v612 = vunpack.c.l.b16 %v361
    %v613 = vunpack.c.h.b16 %v361
    %v614 = vunpack.c.l.b16 %v362
    %v615 = vunpack.c.h.b16 %v362
    %v616 = vunpack.c.l.b16 %v363
    %v617 = vunpack.c.h.b16 %v363
    %v618 = vunpack.c.l.b16 %v364
    %v619 = vunpack.c.h.b16 %v364
    %v620 = vunpack.c.l.b16 %v365
    %v621 = vunpack.c.h.b16 %v365
    %v622 = vunpack.c.l.b16 %v366
    %v623 = vunpack.c.h.b16 %v366
    %v624 = vunpack.c.l.b16 %v367
    %v625 = vunpack.c.h.b16 %v367
    %v626 = vunpack.c.l.b16 %v368
    %v627 = vunpack.c.h.b16 %v368
    %v628 = vunpack.c.l.b16 %v369
    %v629 = vunpack.c.h.b16 %v369
    %v630 = vunpack.c.l.b16 %v370
    %v631 = vunpack.c.h.b16 %v370
    %v632 = vunpack.c.l.b16 %v371
    %v633 = vunpack.c.h.b16 %v371
    %v634 = vunpack.c.l.b16 %v372
    %v635 = vunpack.c.h.b16 %v372
    %v636 = vunpack.c.l.b16 %v373
    %v637 = vunpack.c.h.b16 %v373
    %v638 = vunpack.c.l.b16 %v374
    %v639 = vunpack.c.h.b16 %v374
    %v640 = vunpack.c.l.b16 %v375
    %v641 = vunpack.c.h.b16 %v375
    %v642 = vunpack.c.l.b16 %v376
    %v643 = vunpack.c.h.b16 %v376
    %v644 = vunpack.c.l.b16 %v377
    %v645 = vunpack.c.h.b16 %v377
    %v646 = vunpack.c.l.b16 %v378
    %v647 = vunpack.c.h.b16 %v378
    %v648 = vunpack.c.l.b16 %v379
    %v649 = vunpack.c.h.b16 %v379
    %v650 = vunpack.c.l.b16 %v380
    %v651 = vunpack.c.h.b16 %v380
    %v652 = vunpack.c.l.b16 %v381
    %v653 = vunpack.c.h.b16 %v381
    %v654 = vunpack.c.l.b16 %v382
    %v655 = vunpack.c.h.b16 %v382
    %v656 = vunpack.c.l.b16 %v383
    %v657 = vunpack.c.h.b16 %v383
    %v658 = vunpack.c.l.b16 %v384
    %v659 = vunpack.c.h.b16 %v384
    %v660 = vunpack.c.l.b16 %v385
    %v661 = vunpack.c.h.b16 %v385
    %v662 = vunpack.c.l.b16 %v386
    %v663 = vunpack.c.h.b16 %v386
    %v664 = vunpack.c.l.b16 %v387
    %v665 = vunpack.c.h.b16 %v387
    %v666 = vunpack.c.l.b16 %v388
    %v667 = vunpack.c.h.b16 %v388
    %v668 = vunpack.c.l.b16 %v389
    %v669 = vunpack.c.h.b16 %v389
    %v670 = vunpack.c.l.b16 %v390
    %v671 = vunpack.c.h.b16 %v390
    %v672 = vunpack.c.l.b16 %v391
    %v673 = vunpack.c.h.b16 %v391
    %v674 = vunpack.c.l.b16 %v392
    %v675 = vunpack.c.h.b16 %v392
    %v676 = vunpack.c.l.b16 %v393
    %v677 = vunpack.c.h.b16 %v393
    %v678 = vunpack.c.l.b16 %v394
    %v679 = vunpack.c.h.b16 %v394
    %v680 = vunpack.c.l.b16 %v395
    %v681 = vunpack.c.h.b16 %v395
    %v682 = vunpack.c.l.b16 %v396
    %v683 = vunpack.c.h.b16 %v396
    %v684 = vunpack.c.l.b16 %v397
    %v685 = vunpack.c.h.b16 %v397
    %v686 = vunpack.c.l.b16 %v398
    %v687 = vunpack.c.h.b16 %v398
    %v688 = vunpack.c.l.b16 %v399
    %v689 = vunpack.c.h.b16 %v399
    %v690 = vunpack.c.l.b16 %v400
    %v691 = vunpack.c.h.b16 %v400
    %v692 = vunpack.c.l.b16 %v401
    %v693 = vunpack.c.h.b16 %v401
    %v694 = vunpack.c.l.b16 %v402
    %v695 = vunpack.c.h.b16 %v402
    %v696 = vunpack.c.l.b16 %v403
    %v697 = vunpack.c.h.b16 %v403
    %v698 = vunpack.c.l.b16 %v404
    %v699 = vunpack.c.h.b16 %v404
    %v700 = vunpack.c.l.b16 %v405
    %v701 = vunpack.c.h.b16 %v405
    %v702 = vunpack.c.l.b16 %v406
    %v703 = vunpack.c.h.b16 %v406
    %v704 = vunpack.c.l.b16 %v407
    %v705 = vunpack.c.h.b16 %v407
    %v706 = vunpack.c.l.b16 %v408
    %v707 = vunpack.c.h.b16 %v408
    %v708 = vunpack.c.l.b16 %v409
    %v709 = vunpack.c.h.b16 %v409
    %v710 = vunpack.c.l.b16 %v410
    %v711 = vunpack.c.h.b16 %v410
    %v712 = vunpack.c.l.b16 %v411
    %v713 = vunpack.c.h.b16 %v411
    %v714 = vunpack.c.l.b16 %v412
    %v715 = vunpack.c.h.b16 %v412
    %v716 = vunpack.c.l.b16 %v413
    %v717 = vunpack.c.h.b16 %v413
    %v718 = vunpack.c.l.b16 %v414
    %v719 = vunpack.c.h.b16 %v414
    %v720 = vunpack.c.l.b16 %v415
    %v721 = vunpack.c.h.b16 %v415
    %v722 = vunpack.c.l.b16 %v416
    %v723 = vunpack.c.h.b16 %v416
    %v724 = vunpack.c.l.b16 %v417
    %v725 = vunpack.c.h.b16 %v417
    %v726 = vunpack.c.l.b16 %v418
    %v727 = vunpack.c.h.b16 %v418
    %v728 = vunpack.c.l.b16 %v419
    %v729 = vunpack.c.h.b16 %v419
    %v730 = vunpack.c.l.b16 %v420
    %v731 = vunpack.c.h.b16 %v420
    %v732 = vunpack.c.l.b16 %v421
    %v733 = vunpack.c.h.b16 %v421
    %v734 = vunpack.c.l.b16 %v422
    %v735 = vunpack.c.h.b16 %v422
    %v736 = vunpack.c.l.b16 %v423
    %v737 = vunpack.c.h.b16 %v423
    %v738 = vunpack.c.l.b16 %v424
    %v739 = vunpack.c.h.b16 %v424
    %v740 = vunpack.c.l.b16 %v425
    %v741 = vunpack.c.h.b16 %v425
    %v742 = vpack.c.b16 %v562, %v550
    %v743 = vpack.c.b16 %v563, %v551
    %v744 = vpack.c.b16 %v564, %v552
    %v745 = vpack.c.b16 %v565, %v553
    %v746 = vpack.c.b16 %v566, %v554
    %v747 = vpack.c.b16 %v567, %v555
    %v748 = vpack.c.b16 %v568, %v556
    %v749 = vpack.c.b16 %v569, %v557
    %v750 = vpack.c.b16 %v570, %v558
    %v751 = vpack.c.b16 %v571, %v559
    %v752 = vpack.c.b16 %v572, %v560
    %v753 = vpack.c.b16 %v573, %v561
    %v754 = vpack.c.b16 %v586, %v574
    %v755 = vpack.c.b16 %v587, %v575
    %v756 = vpack.c.b16 %v588, %v576
    %v757 = vpack.c.b16 %v589, %v577
    %v758 = vpack.c.b16 %v590, %v578
    %v759 = vpack.c.b16 %v591, %v579
    %v760 = vpack.c.b16 %v592, %v580
    %v761 = vpack.c.b16 %v593, %v581
    %v762 = vpack.c.b16 %v594, %v582
    %v763 = vpack.c.b16 %v595, %v583
    %v764 = vpack.c.b16 %v596, %v584
    %v765 = vpack.c.b16 %v597, %v585
    %v766 = vpack.c.b16 %v610, %v598
    %v767 = vpack.c.b16 %v611, %v599
    %v768 = vpack.c.b16 %v612, %v600
    %v769 = vpack.c.b16 %v613, %v601
    %v770 = vpack.c.b16 %v614, %v602
    %v771 = vpack.c.b16 %v615, %v603
    %v772 = vpack.c.b16 %v616, %v604
    %v773 = vpack.c.b16 %v617, %v605
    %v774 = vpack.c.b16 %v618, %v606
    %v775 = vpack.c.b16 %v619, %v607
    %v776 = vpack.c.b16 %v620, %v608
    %v777 = vpack.c.b16 %v621, %v609
    %v778 = vpack.c.b16 %v634, %v622
    %v779 = vpack.c.b16 %v635, %v623
    %v780 = vpack.c.b16 %v636, %v624
    %v781 = vpack.c.b16 %v637, %v625
    %v782 = vpack.c.b16 %v638, %v626
    %v783 = vpack.c.b16 %v639, %v627
    %v784 = vpack.c.b16 %v640, %v628
    %v785 = vpack.c.b16 %v641, %v629
    %v786 = vpack.c.b16 %v642, %v630
    %v787 = vpack.c.b16 %v643, %v631
    %v788 = vpack.c.b16 %v644, %v632
    %v789 = vpack.c.b16 %v645, %v633
    %v790 = vpack.c.b16 %v658, %v646
    %v791 = vpack.c.b16 %v659, %v647
    %v792 = vpack.c.b16 %v660, %v648
    %v793 = vpack.c.b16 %v661, %v649
    %v794 = vpack.c.b16 %v662, %v650
    %v795 = vpack.c.b16 %v663, %v651
    %v796 = vpack.c.b16 %v664, %v652
    %v797 = vpack.c.b16 %v665, %v653
    %v798 = vpack.c.b16 %v666, %v654
    %v799 = vpack.c.b16 %v667, %v655
    %v800 = vpack.c.b16 %v668, %v656
    %v801 = vpack.c.b16 %v669, %v657
    %v802 = vpack.c.b16 %v682, %v670
    %v803 = vpack.c.b16 %v683, %v671
    %v804 = vpack.c.b16 %v684, %v672
    %v805 = vpack.c.b16 %v685, %v673
    %v806 = vpack.c.b16 %v686, %v674
    %v807 = vpack.c.b16 %v687, %v675
    %v808 = vpack.c.b16 %v688, %v676
    %v809 = vpack.c.b16 %v689, %v677
    %v810 = vpack.c.b16 %v690, %v678
    %v811 = vpack.c.b16 %v691, %v679
    %v812 = vpack.c.b16 %v692, %v680
    %v813 = vpack.c.b16 %v693, %v681
    %v814 = vpack.c.b16 %v706, %v694
    %v815 = vpack.c.b16 %v707, %v695
    %v816 = vpack.c.b16 %v708, %v696
    %v817 = vpack.c.b16 %v709, %v697
    %v818 = vpack.c.b16 %v710, %v698
    %v819 = vpack.c.b16 %v711, %v699
    %v820 = vpack.c.b16 %v712, %v700
    %v821 = vpack.c.b16 %v713, %v701
    %v822 = vpack.c.b16 %v714, %v702
    %v823 = vpack.c.b16 %v715, %v703
    %v824 = vpack.c.b16 %v716, %v704
    %v825 = vpack.c.b16 %v717, %v705
    %v826 = vpack.c.b16 %v730, %v718
    %v827 = vpack.c.b16 %v731, %v719
    %v828 = vpack.c.b16 %v732, %v720
    %v829 = vpack.c.b16 %v733, %v721
    %v830 = vpack.c.b16 %v734, %v722
    %v831 = vpack.c.b16 %v735, %v723
    %v832 = vpack.c.b16 %v736, %v724
    %v833 = vpack.c.b16 %v737, %v725
    %v834 = vpack.c.b16 %v738, %v726
    %v835 = vpack.c.b16 %v739, %v727
    %v836 = vpack.c.b16 %v740, %v728
    %v837 = vpack.c.b16 %v741, %v729
    %934 = vmatpush.bf16.msra.mxu0 %v826
    %935 = vmatpush.bf16.msra.mxu0 %v814
    %936 = vmatpush.bf16.msra.mxu0 %v802
    %937 = vmatpush.bf16.msra.mxu0 %v790
    %938 = vmatpush.bf16.msra.mxu0 %v778
    %939 = vmatpush.bf16.msra.mxu0 %v766
    %940 = vmatpush.bf16.msra.mxu0 %v754
    %941 = vmatpush.bf16.msra.mxu0 %v742
    %942 = vmatmul.bf16.gmra.mxu0 %v329
    %v943 = vpop.f32.mrf.mxu0
    %v944 = vadd.f32 %v430, %v943
    %v945 = vpop.f32.mrf.mxu0
    %v946 = vadd.f32 %v430, %v945
    %947 = vdwg.mxu0
    %948 = vmatpush.bf16.msra.mxu0 %v827
    %949 = vmatpush.bf16.msra.mxu0 %v815
    %950 = vmatpush.bf16.msra.mxu0 %v803
    %951 = vmatpush.bf16.msra.mxu0 %v791
    %952 = vmatpush.bf16.msra.mxu0 %v779
    %953 = vmatpush.bf16.msra.mxu0 %v767
    %954 = vmatpush.bf16.msra.mxu0 %v755
    %955 = vmatpush.bf16.msra.mxu0 %v743
    %956 = vmatmul.bf16.gmra.mxu0 %v329
    %v957 = vpop.f32.mrf.mxu0
    %v958 = vadd.f32 %v431, %v957
    %v959 = vpop.f32.mrf.mxu0
    %v960 = vadd.f32 %v431, %v959
    %961 = vdwg.mxu0
    %962 = vmatpush.bf16.msra.mxu0 %v828
    %963 = vmatpush.bf16.msra.mxu0 %v816
    %964 = vmatpush.bf16.msra.mxu0 %v804
    %965 = vmatpush.bf16.msra.mxu0 %v792
    %966 = vmatpush.bf16.msra.mxu0 %v780
    %967 = vmatpush.bf16.msra.mxu0 %v768
    %968 = vmatpush.bf16.msra.mxu0 %v756
    %969 = vmatpush.bf16.msra.mxu0 %v744
    %970 = vmatmul.bf16.gmra.mxu0 %v329
    %v971 = vpop.f32.mrf.mxu0
    %v972 = vadd.f32 %v432, %v971
    %v973 = vpop.f32.mrf.mxu0
    %v974 = vadd.f32 %v432, %v973
    %975 = vdwg.mxu0
    %976 = vmatpush.bf16.msra.mxu0 %v829
    %977 = vmatpush.bf16.msra.mxu0 %v817
    %978 = vmatpush.bf16.msra.mxu0 %v805
    %979 = vmatpush.bf16.msra.mxu0 %v793
    %980 = vmatpush.bf16.msra.mxu0 %v781
    %981 = vmatpush.bf16.msra.mxu0 %v769
    %982 = vmatpush.bf16.msra.mxu0 %v757
    %983 = vmatpush.bf16.msra.mxu0 %v745
    %984 = vmatmul.bf16.gmra.mxu0 %v329
    %v985 = vpop.f32.mrf.mxu0
    %v986 = vadd.f32 %v433, %v985
    %v987 = vpop.f32.mrf.mxu0
    %v988 = vadd.f32 %v433, %v987
    %989 = vdwg.mxu0
    %990 = vmatpush.bf16.msra.mxu0 %v830
    %991 = vmatpush.bf16.msra.mxu0 %v818
    %992 = vmatpush.bf16.msra.mxu0 %v806
    %993 = vmatpush.bf16.msra.mxu0 %v794
    %994 = vmatpush.bf16.msra.mxu0 %v782
    %995 = vmatpush.bf16.msra.mxu0 %v770
    %996 = vmatpush.bf16.msra.mxu0 %v758
    %997 = vmatpush.bf16.msra.mxu0 %v746
    %998 = vmatmul.bf16.gmra.mxu0 %v329
    %v999 = vpop.f32.mrf.mxu0
    %v1000 = vadd.f32 %v434, %v999
    %v1001 = vpop.f32.mrf.mxu0
    %v1002 = vadd.f32 %v434, %v1001
    %1003 = vdwg.mxu0
    %1004 = vmatpush.bf16.msra.mxu0 %v831
    %1005 = vmatpush.bf16.msra.mxu0 %v819
    %1006 = vmatpush.bf16.msra.mxu0 %v807
    %1007 = vmatpush.bf16.msra.mxu0 %v795
    %1008 = vmatpush.bf16.msra.mxu0 %v783
    %1009 = vmatpush.bf16.msra.mxu0 %v771
    %1010 = vmatpush.bf16.msra.mxu0 %v759
    %1011 = vmatpush.bf16.msra.mxu0 %v747
    %1012 = vmatmul.bf16.gmra.mxu0 %v329
    %v1013 = vpop.f32.mrf.mxu0
    %v1014 = vadd.f32 %v435, %v1013
    %v1015 = vpop.f32.mrf.mxu0
    %v1016 = vadd.f32 %v435, %v1015
    %1017 = vdwg.mxu0
    %1018 = vmatpush.bf16.msra.mxu0 %v832
    %1019 = vmatpush.bf16.msra.mxu0 %v820
    %1020 = vmatpush.bf16.msra.mxu0 %v808
    %1021 = vmatpush.bf16.msra.mxu0 %v796
    %1022 = vmatpush.bf16.msra.mxu0 %v784
    %1023 = vmatpush.bf16.msra.mxu0 %v772
    %1024 = vmatpush.bf16.msra.mxu0 %v760
    %1025 = vmatpush.bf16.msra.mxu0 %v748
    %1026 = vmatmul.bf16.gmra.mxu0 %v329
    %v1027 = vpop.f32.mrf.mxu0
    %v1028 = vadd.f32 %v436, %v1027
    %v1029 = vpop.f32.mrf.mxu0
    %v1030 = vadd.f32 %v436, %v1029
    %1031 = vdwg.mxu0
    %1032 = vmatpush.bf16.msra.mxu0 %v833
    %1033 = vmatpush.bf16.msra.mxu0 %v821
    %1034 = vmatpush.bf16.msra.mxu0 %v809
    %1035 = vmatpush.bf16.msra.mxu0 %v797
    %1036 = vmatpush.bf16.msra.mxu0 %v785
    %1037 = vmatpush.bf16.msra.mxu0 %v773
    %1038 = vmatpush.bf16.msra.mxu0 %v761
    %1039 = vmatpush.bf16.msra.mxu0 %v749
    %1040 = vmatmul.bf16.gmra.mxu0 %v329
    %v1041 = vpop.f32.mrf.mxu0
    %v1042 = vadd.f32 %v437, %v1041
    %v1043 = vpop.f32.mrf.mxu0
    %v1044 = vadd.f32 %v437, %v1043
    %1045 = vdwg.mxu0
    %1046 = vmatpush.bf16.msra.mxu0 %v834
    %1047 = vmatpush.bf16.msra.mxu0 %v822
    %1048 = vmatpush.bf16.msra.mxu0 %v810
    %1049 = vmatpush.bf16.msra.mxu0 %v798
    %1050 = vmatpush.bf16.msra.mxu0 %v786
    %1051 = vmatpush.bf16.msra.mxu0 %v774
    %1052 = vmatpush.bf16.msra.mxu0 %v762
    %1053 = vmatpush.bf16.msra.mxu0 %v750
    %1054 = vmatmul.bf16.gmra.mxu0 %v329
    %v1055 = vpop.f32.mrf.mxu0
    %v1056 = vadd.f32 %v438, %v1055
    %v1057 = vpop.f32.mrf.mxu0
    %v1058 = vadd.f32 %v438, %v1057
    %1059 = vdwg.mxu0
    %1060 = vmatpush.bf16.msra.mxu0 %v835
    %1061 = vmatpush.bf16.msra.mxu0 %v823
    %1062 = vmatpush.bf16.msra.mxu0 %v811
    %1063 = vmatpush.bf16.msra.mxu0 %v799
    %1064 = vmatpush.bf16.msra.mxu0 %v787
    %1065 = vmatpush.bf16.msra.mxu0 %v775
    %1066 = vmatpush.bf16.msra.mxu0 %v763
    %1067 = vmatpush.bf16.msra.mxu0 %v751
    %1068 = vmatmul.bf16.gmra.mxu0 %v329
    %v1069 = vpop.f32.mrf.mxu0
    %v1070 = vadd.f32 %v439, %v1069
    %v1071 = vpop.f32.mrf.mxu0
    %v1072 = vadd.f32 %v439, %v1071
    %1073 = vdwg.mxu0
    %1074 = vmatpush.bf16.msra.mxu0 %v836
    %1075 = vmatpush.bf16.msra.mxu0 %v824
    %1076 = vmatpush.bf16.msra.mxu0 %v812
    %1077 = vmatpush.bf16.msra.mxu0 %v800
    %1078 = vmatpush.bf16.msra.mxu0 %v788
    %1079 = vmatpush.bf16.msra.mxu0 %v776
    %1080 = vmatpush.bf16.msra.mxu0 %v764
    %1081 = vmatpush.bf16.msra.mxu0 %v752
    %1082 = vmatmul.bf16.gmra.mxu0 %v329
    %v1083 = vpop.f32.mrf.mxu0
    %v1084 = vadd.f32 %v440, %v1083
    %v1085 = vpop.f32.mrf.mxu0
    %v1086 = vadd.f32 %v440, %v1085
    %1087 = vdwg.mxu0
    %1088 = vmatpush.bf16.msra.mxu0 %v837
    %1089 = vmatpush.bf16.msra.mxu0 %v825
    %1090 = vmatpush.bf16.msra.mxu0 %v813
    %1091 = vmatpush.bf16.msra.mxu0 %v801
    %1092 = vmatpush.bf16.msra.mxu0 %v789
    %1093 = vmatpush.bf16.msra.mxu0 %v777
    %1094 = vmatpush.bf16.msra.mxu0 %v765
    %1095 = vmatpush.bf16.msra.mxu0 %v753
    %1096 = vmatmul.bf16.gmra.mxu0 %v329
    %v1097 = vpop.f32.mrf.mxu0
    %v1098 = vadd.f32 %v441, %v1097
    %v1099 = vpop.f32.mrf.mxu0
    %v1100 = vadd.f32 %v441, %v1099
    %1101 = vdwg.mxu0
    %v1102 = vpack.c.bf16 %v946, %v944
    %v1103 = vpack.c.bf16 %v1002, %v1000
    %v1104 = vpack.c.bf16 %v1058, %v1056
    %1105 = vmatpush.bf16.xpose.msra.mxu0 0
    %1106 = vmatpush.bf16.xpose.msra.mxu0 0
    %1107 = vmatpush.bf16.xpose.msra.mxu0 0
    %1108 = vmatpush.bf16.xpose.msra.mxu0 0
    %1109 = vmatpush.bf16.xpose.msra.mxu0 0
    %1110 = vmatpush.bf16.xpose.msra.mxu0 0
    %1111 = vmatpush.bf16.xpose.msra.mxu0 0
    %1112 = vmatpush.bf16.xpose.msra.mxu0 %v1103
    %1113 = vmatmul.bf16.gmra.mxu0 %v1102
    %v1114 = vpop.f32.mrf.mxu0
    %v1115 = vadd.f32 0.0, %v1114
    %v1116 = vpop.f32.mrf.mxu0
    %v1117 = vadd.f32 0.0, %v1116
    %1118 = vdwg.mxu0
    %v1119 = vmul.f32 %v1115, 0.35355338
    %v1120 = vmul.f32 %v1117, 0.35355338
    %v1121 = vsel %vm271, %v1119, -1e+30
    %v1122 = vsel %vm272, %v1120, -1e+30
    %vm1123 = vcmask 130048
    %v1124 = vsel %vm1123, %v1121, -inf
    %1125 = vmax.xlane.f32.xlu0 %v1124
    %v1126 = vpop.xlane.xlu0 %1125
    %v1127 = vsel %vm1123, %v1122, -inf
    %1128 = vmax.xlane.f32.xlu0 %v1127
    %v1129 = vpop.xlane.xlu0 %1128
    %v1130 = vsub.f32 %v1121, %v1126
    %v1131 = vsub.f32 %v1122, %v1129
    %v1132 = vmul.f32 %v1130, 1.442695
    %v1133 = vpow.pop %v1132
    %v1134 = vmul.f32 %v1131, 1.442695
    %v1135 = vpow.pop %v1134
    %v1136 = vsel %vm1123, %v1133, 0.0
    %1137 = vadd.xlane.f32.xlu0 %v1136
    %v1138 = vpop.xlane.xlu0 %1137
    %v1139 = vsel %vm1123, %v1135, 0.0
    %1140 = vadd.xlane.f32.xlu0 %v1139
    %v1141 = vpop.xlane.xlu0 %1140
    %v1142 = vrcp.pop %v1138
    %v1143 = vrcp.pop %v1141
    %v1144 = vmul.f32 %v1133, %v1142
    %v1145 = vmul.f32 %v1135, %v1143
    %v1146 = vpack.c.bf16 %v1145, %v1144
    %v1148 = vsel %vm1123, %v1146, 0
    %1150 = vmatpush.bf16.msra.mxu0 0
    %1151 = vmatpush.bf16.msra.mxu0 0
    %1152 = vmatpush.bf16.msra.mxu0 0
    %1153 = vmatpush.bf16.msra.mxu0 0
    %1154 = vmatpush.bf16.msra.mxu0 0
    %1155 = vmatpush.bf16.msra.mxu0 0
    %1156 = vmatpush.bf16.msra.mxu0 0
    %1157 = vmatpush.bf16.msra.mxu0 %v1104
    %1158 = vmatmul.bf16.gmra.mxu0 %v1148
    %v1159 = vpop.f32.mrf.mxu0
    %v1160 = vadd.f32 0.0, %v1159
    %v1161 = vpop.f32.mrf.mxu0
    %v1162 = vadd.f32 0.0, %v1161
    %1163 = vdwg.mxu0
    %v1164 = vpack.c.bf16 %v960, %v958
    %v1165 = vpack.c.bf16 %v1016, %v1014
    %v1166 = vpack.c.bf16 %v1072, %v1070
    %1167 = vmatpush.bf16.xpose.msra.mxu0 0
    %1168 = vmatpush.bf16.xpose.msra.mxu0 0
    %1169 = vmatpush.bf16.xpose.msra.mxu0 0
    %1170 = vmatpush.bf16.xpose.msra.mxu0 0
    %1171 = vmatpush.bf16.xpose.msra.mxu0 0
    %1172 = vmatpush.bf16.xpose.msra.mxu0 0
    %1173 = vmatpush.bf16.xpose.msra.mxu0 0
    %1174 = vmatpush.bf16.xpose.msra.mxu0 %v1165
    %1175 = vmatmul.bf16.gmra.mxu0 %v1164
    %v1176 = vpop.f32.mrf.mxu0
    %v1177 = vadd.f32 0.0, %v1176
    %v1178 = vpop.f32.mrf.mxu0
    %v1179 = vadd.f32 0.0, %v1178
    %1180 = vdwg.mxu0
    %v1181 = vmul.f32 %v1177, 0.35355338
    %v1182 = vmul.f32 %v1179, 0.35355338
    %v1183 = vsel %vm271, %v1181, -1e+30
    %v1184 = vsel %vm272, %v1182, -1e+30
    %v1185 = vsel %vm1123, %v1183, -inf
    %1186 = vmax.xlane.f32.xlu0 %v1185
    %v1187 = vpop.xlane.xlu0 %1186
    %v1188 = vsel %vm1123, %v1184, -inf
    %1189 = vmax.xlane.f32.xlu0 %v1188
    %v1190 = vpop.xlane.xlu0 %1189
    %v1191 = vsub.f32 %v1183, %v1187
    %v1192 = vsub.f32 %v1184, %v1190
    %v1193 = vmul.f32 %v1191, 1.442695
    %v1194 = vpow.pop %v1193
    %v1195 = vmul.f32 %v1192, 1.442695
    %v1196 = vpow.pop %v1195
    %v1197 = vsel %vm1123, %v1194, 0.0
    %1198 = vadd.xlane.f32.xlu0 %v1197
    %v1199 = vpop.xlane.xlu0 %1198
    %v1200 = vsel %vm1123, %v1196, 0.0
    %1201 = vadd.xlane.f32.xlu0 %v1200
    %v1202 = vpop.xlane.xlu0 %1201
    %v1203 = vrcp.pop %v1199
    %v1204 = vrcp.pop %v1202
    %v1205 = vmul.f32 %v1194, %v1203
    %v1206 = vmul.f32 %v1196, %v1204
    %v1207 = vpack.c.bf16 %v1206, %v1205
    %v1209 = vsel %vm1123, %v1207, 0
    %1211 = vmatpush.bf16.msra.mxu0 0
    %1212 = vmatpush.bf16.msra.mxu0 0
    %1213 = vmatpush.bf16.msra.mxu0 0
    %1214 = vmatpush.bf16.msra.mxu0 0
    %1215 = vmatpush.bf16.msra.mxu0 0
    %1216 = vmatpush.bf16.msra.mxu0 0
    %1217 = vmatpush.bf16.msra.mxu0 0
    %1218 = vmatpush.bf16.msra.mxu0 %v1166
    %1219 = vmatmul.bf16.gmra.mxu0 %v1209
    %v1220 = vpop.f32.mrf.mxu0
    %v1221 = vadd.f32 0.0, %v1220
    %v1222 = vpop.f32.mrf.mxu0
    %v1223 = vadd.f32 0.0, %v1222
    %1224 = vdwg.mxu0
    %v1225 = vpack.c.bf16 %v974, %v972
    %v1226 = vpack.c.bf16 %v1030, %v1028
    %v1227 = vpack.c.bf16 %v1086, %v1084
    %1228 = vmatpush.bf16.xpose.msra.mxu0 0
    %1229 = vmatpush.bf16.xpose.msra.mxu0 0
    %1230 = vmatpush.bf16.xpose.msra.mxu0 0
    %1231 = vmatpush.bf16.xpose.msra.mxu0 0
    %1232 = vmatpush.bf16.xpose.msra.mxu0 0
    %1233 = vmatpush.bf16.xpose.msra.mxu0 0
    %1234 = vmatpush.bf16.xpose.msra.mxu0 0
    %1235 = vmatpush.bf16.xpose.msra.mxu0 %v1226
    %1236 = vmatmul.bf16.gmra.mxu0 %v1225
    %v1237 = vpop.f32.mrf.mxu0
    %v1238 = vadd.f32 0.0, %v1237
    %v1239 = vpop.f32.mrf.mxu0
    %v1240 = vadd.f32 0.0, %v1239
    %1241 = vdwg.mxu0
    %v1242 = vmul.f32 %v1238, 0.35355338
    %v1243 = vmul.f32 %v1240, 0.35355338
    %v1244 = vsel %vm271, %v1242, -1e+30
    %v1245 = vsel %vm272, %v1243, -1e+30
    %v1246 = vsel %vm1123, %v1244, -inf
    %1247 = vmax.xlane.f32.xlu0 %v1246
    %v1248 = vpop.xlane.xlu0 %1247
    %v1249 = vsel %vm1123, %v1245, -inf
    %1250 = vmax.xlane.f32.xlu0 %v1249
    %v1251 = vpop.xlane.xlu0 %1250
    %v1252 = vsub.f32 %v1244, %v1248
    %v1253 = vsub.f32 %v1245, %v1251
    %v1254 = vmul.f32 %v1252, 1.442695
    %v1255 = vpow.pop %v1254
    %v1256 = vmul.f32 %v1253, 1.442695
    %v1257 = vpow.pop %v1256
    %v1258 = vsel %vm1123, %v1255, 0.0
    %1259 = vadd.xlane.f32.xlu0 %v1258
    %v1260 = vpop.xlane.xlu0 %1259
    %v1261 = vsel %vm1123, %v1257, 0.0
    %1262 = vadd.xlane.f32.xlu0 %v1261
    %v1263 = vpop.xlane.xlu0 %1262
    %v1264 = vrcp.pop %v1260
    %v1265 = vrcp.pop %v1263
    %v1266 = vmul.f32 %v1255, %v1264
    %v1267 = vmul.f32 %v1257, %v1265
    %v1268 = vpack.c.bf16 %v1267, %v1266
    %v1270 = vsel %vm1123, %v1268, 0
    %1272 = vmatpush.bf16.msra.mxu0 0
    %1273 = vmatpush.bf16.msra.mxu0 0
    %1274 = vmatpush.bf16.msra.mxu0 0
    %1275 = vmatpush.bf16.msra.mxu0 0
    %1276 = vmatpush.bf16.msra.mxu0 0
    %1277 = vmatpush.bf16.msra.mxu0 0
    %1278 = vmatpush.bf16.msra.mxu0 0
    %1279 = vmatpush.bf16.msra.mxu0 %v1227
    %1280 = vmatmul.bf16.gmra.mxu0 %v1270
    %v1281 = vpop.f32.mrf.mxu0
    %v1282 = vadd.f32 0.0, %v1281
    %v1283 = vpop.f32.mrf.mxu0
    %v1284 = vadd.f32 0.0, %v1283
    %1285 = vdwg.mxu0
    %v1286 = vpack.c.bf16 %v988, %v986
    %v1287 = vpack.c.bf16 %v1044, %v1042
    %v1288 = vpack.c.bf16 %v1100, %v1098
    %1289 = vmatpush.bf16.xpose.msra.mxu0 0
    %1290 = vmatpush.bf16.xpose.msra.mxu0 0
    %1291 = vmatpush.bf16.xpose.msra.mxu0 0
    %1292 = vmatpush.bf16.xpose.msra.mxu0 0
    %1293 = vmatpush.bf16.xpose.msra.mxu0 0
    %1294 = vmatpush.bf16.xpose.msra.mxu0 0
    %1295 = vmatpush.bf16.xpose.msra.mxu0 0
    %1296 = vmatpush.bf16.xpose.msra.mxu0 %v1287
    %1297 = vmatmul.bf16.gmra.mxu0 %v1286
    %v1298 = vpop.f32.mrf.mxu0
    %v1299 = vadd.f32 0.0, %v1298
    %v1300 = vpop.f32.mrf.mxu0
    %v1301 = vadd.f32 0.0, %v1300
    %1302 = vdwg.mxu0
    %v1303 = vmul.f32 %v1299, 0.35355338
    %v1304 = vmul.f32 %v1301, 0.35355338
    %v1305 = vsel %vm271, %v1303, -1e+30
    %v1306 = vsel %vm272, %v1304, -1e+30
    %v1307 = vsel %vm1123, %v1305, -inf
    %1308 = vmax.xlane.f32.xlu0 %v1307
    %v1309 = vpop.xlane.xlu0 %1308
    %v1310 = vsel %vm1123, %v1306, -inf
    %1311 = vmax.xlane.f32.xlu0 %v1310
    %v1312 = vpop.xlane.xlu0 %1311
    %v1313 = vsub.f32 %v1305, %v1309
    %v1314 = vsub.f32 %v1306, %v1312
    %v1315 = vmul.f32 %v1313, 1.442695
    %v1316 = vpow.pop %v1315
    %v1317 = vmul.f32 %v1314, 1.442695
    %v1318 = vpow.pop %v1317
    %v1319 = vsel %vm1123, %v1316, 0.0
    %1320 = vadd.xlane.f32.xlu0 %v1319
    %v1321 = vpop.xlane.xlu0 %1320
    %v1322 = vsel %vm1123, %v1318, 0.0
    %1323 = vadd.xlane.f32.xlu0 %v1322
    %v1324 = vpop.xlane.xlu0 %1323
    %v1325 = vrcp.pop %v1321
    %v1326 = vrcp.pop %v1324
    %v1327 = vmul.f32 %v1316, %v1325
    %v1328 = vmul.f32 %v1318, %v1326
    %v1329 = vpack.c.bf16 %v1328, %v1327
    %v1331 = vsel %vm1123, %v1329, 0
    %1333 = vmatpush.bf16.msra.mxu0 0
    %1334 = vmatpush.bf16.msra.mxu0 0
    %1335 = vmatpush.bf16.msra.mxu0 0
    %1336 = vmatpush.bf16.msra.mxu0 0
    %1337 = vmatpush.bf16.msra.mxu0 0
    %1338 = vmatpush.bf16.msra.mxu0 0
    %1339 = vmatpush.bf16.msra.mxu0 0
    %1340 = vmatpush.bf16.msra.mxu0 %v1288
    %1341 = vmatmul.bf16.gmra.mxu0 %v1331
    %v1342 = vpop.f32.mrf.mxu0
    %v1343 = vadd.f32 0.0, %v1342
    %v1344 = vpop.f32.mrf.mxu0
    %v1345 = vadd.f32 0.0, %v1344
    %1346 = vdwg.mxu0
    %v1347 = vpack.c.bf16 %v1162, %v1160
    %v1348 = vpack.c.bf16 %v1223, %v1221
    %v1349 = vpack.c.bf16 %v1284, %v1282
    %v1350 = vpack.c.bf16 %v1345, %v1343
    %v1351 = vld [vmem:[#allocation14] sm:$0xf]
    %v1352 = vld [vmem:[#allocation14 + $0x4] sm:$0xf]
    %v1353 = vld [vmem:[#allocation14 + $0x8] sm:$0xf]
    %v1354 = vld [vmem:[#allocation14 + $0xc] sm:$0xf]
    %v1355 = vld [vmem:[#allocation14 + $0x10] sm:$0xf]
    %v1356 = vld [vmem:[#allocation14 + $0x14] sm:$0xf]
    %v1357 = vld [vmem:[#allocation14 + $0x18] sm:$0xf]
    %v1358 = vld [vmem:[#allocation14 + $0x1c] sm:$0xf]
    %v1359 = vld [vmem:[#allocation14 + $0x20] sm:$0xf]
    %v1360 = vld [vmem:[#allocation14 + $0x24] sm:$0xf]
    %v1361 = vld [vmem:[#allocation14 + $0x28] sm:$0xf]
    %v1362 = vld [vmem:[#allocation14 + $0x2c] sm:$0xf]
    %v1363 = vld [vmem:[#allocation14 + $0x30] sm:$0xf]
    %v1364 = vld [vmem:[#allocation14 + $0x34] sm:$0xf]
    %v1365 = vld [vmem:[#allocation14 + $0x38] sm:$0xf]
    %v1366 = vld [vmem:[#allocation14 + $0x3c] sm:$0xf]
    %v1367 = vld [vmem:[#allocation14 + $0x40] sm:$0xf]
    %v1368 = vld [vmem:[#allocation14 + $0x44] sm:$0xf]
    %v1369 = vld [vmem:[#allocation14 + $0x48] sm:$0xf]
    %v1370 = vld [vmem:[#allocation14 + $0x4c] sm:$0xf]
    %v1371 = vld [vmem:[#allocation14 + $0x50] sm:$0xf]
    %v1372 = vld [vmem:[#allocation14 + $0x54] sm:$0xf]
    %v1373 = vld [vmem:[#allocation14 + $0x58] sm:$0xf]
    %v1374 = vld [vmem:[#allocation14 + $0x5c] sm:$0xf]
    %v1375 = vld [vmem:[#allocation14 + $0x60] sm:$0xf]
    %v1376 = vld [vmem:[#allocation14 + $0x64] sm:$0xf]
    %v1377 = vld [vmem:[#allocation14 + $0x68] sm:$0xf]
    %v1378 = vld [vmem:[#allocation14 + $0x6c] sm:$0xf]
    %v1379 = vld [vmem:[#allocation14 + $0x70] sm:$0xf]
    %v1380 = vld [vmem:[#allocation14 + $0x74] sm:$0xf]
    %v1381 = vld [vmem:[#allocation14 + $0x78] sm:$0xf]
    %v1382 = vld [vmem:[#allocation14 + $0x7c] sm:$0xf]
    %v1383 = vld [vmem:[#allocation14 + $0x80] sm:$0xf]
    %v1384 = vld [vmem:[#allocation14 + $0x84] sm:$0xf]
    %v1385 = vld [vmem:[#allocation14 + $0x88] sm:$0xf]
    %v1386 = vld [vmem:[#allocation14 + $0x8c] sm:$0xf]
    %v1387 = vld [vmem:[#allocation14 + $0x90] sm:$0xf]
    %v1388 = vld [vmem:[#allocation14 + $0x94] sm:$0xf]
    %v1389 = vld [vmem:[#allocation14 + $0x98] sm:$0xf]
    %v1390 = vld [vmem:[#allocation14 + $0x9c] sm:$0xf]
    %v1391 = vld [vmem:[#allocation14 + $0xa0] sm:$0xf]
    %v1392 = vld [vmem:[#allocation14 + $0xa4] sm:$0xf]
    %v1393 = vld [vmem:[#allocation14 + $0xa8] sm:$0xf]
    %v1394 = vld [vmem:[#allocation14 + $0xac] sm:$0xf]
    %v1395 = vld [vmem:[#allocation14 + $0xb0] sm:$0xf]
    %v1396 = vld [vmem:[#allocation14 + $0xb4] sm:$0xf]
    %v1397 = vld [vmem:[#allocation14 + $0xb8] sm:$0xf]
    %v1398 = vld [vmem:[#allocation14 + $0xbc] sm:$0xf]
    %v1399 = vld [vmem:[#allocation14 + $0xc0] sm:$0xf]
    %v1400 = vld [vmem:[#allocation14 + $0xc4] sm:$0xf]
    %v1401 = vld [vmem:[#allocation14 + $0xc8] sm:$0xf]
    %v1402 = vld [vmem:[#allocation14 + $0xcc] sm:$0xf]
    %v1403 = vld [vmem:[#allocation14 + $0xd0] sm:$0xf]
    %v1404 = vld [vmem:[#allocation14 + $0xd4] sm:$0xf]
    %v1405 = vld [vmem:[#allocation14 + $0xd8] sm:$0xf]
    %v1406 = vld [vmem:[#allocation14 + $0xdc] sm:$0xf]
    %v1407 = vld [vmem:[#allocation14 + $0xe0] sm:$0xf]
    %v1408 = vld [vmem:[#allocation14 + $0xe4] sm:$0xf]
    %v1409 = vld [vmem:[#allocation14 + $0xe8] sm:$0xf]
    %v1410 = vld [vmem:[#allocation14 + $0xec] sm:$0xf]
    %v1411 = vld [vmem:[#allocation14 + $0xf0] sm:$0xf]
    %v1412 = vld [vmem:[#allocation14 + $0xf4] sm:$0xf]
    %v1413 = vld [vmem:[#allocation14 + $0xf8] sm:$0xf]
    %v1414 = vld [vmem:[#allocation14 + $0xfc] sm:$0xf]
    %v1479 = vunpack.c.l.b16 %v1351
    %v1480 = vunpack.c.l.b16 %v1352
    %v1481 = vunpack.c.l.b16 %v1353
    %v1482 = vunpack.c.l.b16 %v1354
    %v1483 = vunpack.c.l.b16 %v1355
    %v1484 = vunpack.c.l.b16 %v1356
    %v1485 = vunpack.c.l.b16 %v1357
    %v1486 = vunpack.c.l.b16 %v1358
    %v1487 = vunpack.c.l.b16 %v1359
    %v1488 = vunpack.c.l.b16 %v1360
    %v1489 = vunpack.c.l.b16 %v1361
    %v1490 = vunpack.c.l.b16 %v1362
    %v1491 = vunpack.c.l.b16 %v1363
    %v1492 = vunpack.c.l.b16 %v1364
    %v1493 = vunpack.c.l.b16 %v1365
    %v1494 = vunpack.c.l.b16 %v1366
    %v1495 = vunpack.c.l.b16 %v1367
    %v1496 = vunpack.c.l.b16 %v1368
    %v1497 = vunpack.c.l.b16 %v1369
    %v1498 = vunpack.c.l.b16 %v1370
    %v1499 = vunpack.c.l.b16 %v1371
    %v1500 = vunpack.c.l.b16 %v1372
    %v1501 = vunpack.c.l.b16 %v1373
    %v1502 = vunpack.c.l.b16 %v1374
    %v1503 = vunpack.c.l.b16 %v1375
    %v1504 = vunpack.c.l.b16 %v1376
    %v1505 = vunpack.c.l.b16 %v1377
    %v1506 = vunpack.c.l.b16 %v1378
    %v1507 = vunpack.c.l.b16 %v1379
    %v1508 = vunpack.c.l.b16 %v1380
    %v1509 = vunpack.c.l.b16 %v1381
    %v1510 = vunpack.c.l.b16 %v1382
    %v1511 = vunpack.c.l.b16 %v1383
    %v1512 = vunpack.c.l.b16 %v1384
    %v1513 = vunpack.c.l.b16 %v1385
    %v1514 = vunpack.c.l.b16 %v1386
    %v1515 = vunpack.c.l.b16 %v1387
    %v1516 = vunpack.c.l.b16 %v1388
    %v1517 = vunpack.c.l.b16 %v1389
    %v1518 = vunpack.c.l.b16 %v1390
    %v1519 = vunpack.c.l.b16 %v1391
    %v1520 = vunpack.c.l.b16 %v1392
    %v1521 = vunpack.c.l.b16 %v1393
    %v1522 = vunpack.c.l.b16 %v1394
    %v1523 = vunpack.c.l.b16 %v1395
    %v1524 = vunpack.c.l.b16 %v1396
    %v1525 = vunpack.c.l.b16 %v1397
    %v1526 = vunpack.c.l.b16 %v1398
    %v1527 = vunpack.c.l.b16 %v1399
    %v1528 = vunpack.c.l.b16 %v1400
    %v1529 = vunpack.c.l.b16 %v1401
    %v1530 = vunpack.c.l.b16 %v1402
    %v1531 = vunpack.c.l.b16 %v1403
    %v1532 = vunpack.c.l.b16 %v1404
    %v1533 = vunpack.c.l.b16 %v1405
    %v1534 = vunpack.c.l.b16 %v1406
    %v1535 = vunpack.c.l.b16 %v1407
    %v1536 = vunpack.c.l.b16 %v1408
    %v1537 = vunpack.c.l.b16 %v1409
    %v1538 = vunpack.c.l.b16 %v1410
    %v1539 = vunpack.c.l.b16 %v1411
    %v1540 = vunpack.c.l.b16 %v1412
    %v1541 = vunpack.c.l.b16 %v1413
    %v1542 = vunpack.c.l.b16 %v1414
    %v1543 = vpack.c.b16 %v1480, %v1479
    %v1544 = vpack.c.b16 %v1482, %v1481
    %v1545 = vpack.c.b16 %v1484, %v1483
    %v1546 = vpack.c.b16 %v1486, %v1485
    %v1547 = vpack.c.b16 %v1488, %v1487
    %v1548 = vpack.c.b16 %v1490, %v1489
    %v1549 = vpack.c.b16 %v1492, %v1491
    %v1550 = vpack.c.b16 %v1494, %v1493
    %v1551 = vpack.c.b16 %v1496, %v1495
    %v1552 = vpack.c.b16 %v1498, %v1497
    %v1553 = vpack.c.b16 %v1500, %v1499
    %v1554 = vpack.c.b16 %v1502, %v1501
    %v1555 = vpack.c.b16 %v1504, %v1503
    %v1556 = vpack.c.b16 %v1506, %v1505
    %v1557 = vpack.c.b16 %v1508, %v1507
    %v1558 = vpack.c.b16 %v1510, %v1509
    %v1559 = vpack.c.b16 %v1512, %v1511
    %v1560 = vpack.c.b16 %v1514, %v1513
    %v1561 = vpack.c.b16 %v1516, %v1515
    %v1562 = vpack.c.b16 %v1518, %v1517
    %v1563 = vpack.c.b16 %v1520, %v1519
    %v1564 = vpack.c.b16 %v1522, %v1521
    %v1565 = vpack.c.b16 %v1524, %v1523
    %v1566 = vpack.c.b16 %v1526, %v1525
    %v1567 = vpack.c.b16 %v1528, %v1527
    %v1568 = vpack.c.b16 %v1530, %v1529
    %v1569 = vpack.c.b16 %v1532, %v1531
    %v1570 = vpack.c.b16 %v1534, %v1533
    %v1571 = vpack.c.b16 %v1536, %v1535
    %v1572 = vpack.c.b16 %v1538, %v1537
    %v1573 = vpack.c.b16 %v1540, %v1539
    %v1574 = vpack.c.b16 %v1542, %v1541
    %1607 = vmatpush.bf16.msra.mxu0 %v1550
    %1608 = vmatpush.bf16.msra.mxu0 %v1549
    %1609 = vmatpush.bf16.msra.mxu0 %v1548
    %1610 = vmatpush.bf16.msra.mxu0 %v1547
    %1611 = vmatpush.bf16.msra.mxu0 %v1546
    %1612 = vmatpush.bf16.msra.mxu0 %v1545
    %1613 = vmatpush.bf16.msra.mxu0 %v1544
    %1614 = vmatpush.bf16.msra.mxu0 %v1543
    %1615 = vmatmul.bf16.gmra.mxu0 %v1347
    %v1616 = vpop.f32.mrf.mxu0
    %v1617 = vadd.f32 0.0, %v1616
    %v1618 = vpop.f32.mrf.mxu0
    %v1619 = vadd.f32 0.0, %v1618
    %1620 = vdwg.mxu0
    %1621 = vmatpush.bf16.msra.mxu0 %v1558
    %1622 = vmatpush.bf16.msra.mxu0 %v1557
    %1623 = vmatpush.bf16.msra.mxu0 %v1556
    %1624 = vmatpush.bf16.msra.mxu0 %v1555
    %1625 = vmatpush.bf16.msra.mxu0 %v1554
    %1626 = vmatpush.bf16.msra.mxu0 %v1553
    %1627 = vmatpush.bf16.msra.mxu0 %v1552
    %1628 = vmatpush.bf16.msra.mxu0 %v1551
    %1629 = vmatmul.bf16.gmra.mxu0 %v1348
    %v1630 = vpop.f32.mrf.mxu0
    %v1631 = vadd.f32 %v1617, %v1630
    %v1632 = vpop.f32.mrf.mxu0
    %v1633 = vadd.f32 %v1619, %v1632
    %1634 = vdwg.mxu0
    %1635 = vmatpush.bf16.msra.mxu0 %v1566
    %1636 = vmatpush.bf16.msra.mxu0 %v1565
    %1637 = vmatpush.bf16.msra.mxu0 %v1564
    %1638 = vmatpush.bf16.msra.mxu0 %v1563
    %1639 = vmatpush.bf16.msra.mxu0 %v1562
    %1640 = vmatpush.bf16.msra.mxu0 %v1561
    %1641 = vmatpush.bf16.msra.mxu0 %v1560
    %1642 = vmatpush.bf16.msra.mxu0 %v1559
    %1643 = vmatmul.bf16.gmra.mxu0 %v1349
    %v1644 = vpop.f32.mrf.mxu0
    %v1645 = vadd.f32 %v1631, %v1644
    %v1646 = vpop.f32.mrf.mxu0
    %v1647 = vadd.f32 %v1633, %v1646
    %1648 = vdwg.mxu0
    %1649 = vmatpush.bf16.msra.mxu0 %v1574
    %1650 = vmatpush.bf16.msra.mxu0 %v1573
    %1651 = vmatpush.bf16.msra.mxu0 %v1572
    %1652 = vmatpush.bf16.msra.mxu0 %v1571
    %1653 = vmatpush.bf16.msra.mxu0 %v1570
    %1654 = vmatpush.bf16.msra.mxu0 %v1569
    %1655 = vmatpush.bf16.msra.mxu0 %v1568
    %1656 = vmatpush.bf16.msra.mxu0 %v1567
    %1657 = vmatmul.bf16.gmra.mxu0 %v1350
    %v1658 = vpop.f32.mrf.mxu0
    %v1659 = vadd.f32 %v1645, %v1658
    %v1660 = vpop.f32.mrf.mxu0
    %v1661 = vadd.f32 %v1647, %v1660
    %1662 = vdwg.mxu0
    %v1663 = vadd.f32 %v264, %v1659
    %v1664 = vadd.f32 %v265, %v1661
    %v1665 = vld [vmem:[%s8] sm:$0x1]
    %v1667 = vperm.slane %v1665, 0
    %v1669 = vadd.f32 %v1663, %v1667
    %v1670 = vadd.f32 %v1664, %v1667
    %v1671 = vld [vmem:[%s9] sm:$0x1]
    %v1672 = vld [vmem:[%s10] sm:$0x1]
    %1673 = vadd.xlane.f32.xlu0 %v1669
    %v1674 = vpop.xlane.xlu0 %1673
    %1675 = vadd.xlane.f32.xlu0 %v1670
    %v1676 = vpop.xlane.xlu0 %1675
    %v1677 = vmul.f32 %v1674, 0.03125
    %v1678 = vmul.f32 %v1676, 0.03125
    %v1679 = vmul.f32 %v1669, %v1669
    %v1680 = vmul.f32 %v1670, %v1670
    %1681 = vadd.xlane.f32.xlu0 %v1679
    %v1682 = vpop.xlane.xlu0 %1681
    %1683 = vadd.xlane.f32.xlu0 %v1680
    %v1684 = vpop.xlane.xlu0 %1683
    %v1685 = vmul.f32 %v1682, 0.03125
    %v1686 = vmul.f32 %v1684, 0.03125
    %v1687 = vmul.f32 %v1677, %v1677
    %v1688 = vmul.f32 %v1678, %v1678
    %v1689 = vsub.f32 %v1685, %v1687
    %v1690 = vsub.f32 %v1686, %v1688
    %v1691 = vsub.f32 %v1669, %v1677
    %v1692 = vsub.f32 %v1670, %v1678
    %v1693 = vadd.f32 %v1689, 1e-05
    %v1694 = vadd.f32 %v1690, 1e-05
    %v1695 = vrsqrt.pop %v1693
    %v1696 = vmul.f32 %v1695, %v1693
    %v1697 = vmul.f32 %v1696, %v1695
    %v1698 = vmul.f32 0.5, %v1697
    %v1699 = vsub.f32 1.5, %v1698
    %v1700 = vmul.f32 %v1695, %v1699
    %vm1701 = vweird.f32 %v1693
    %vm1702 = vweird.f32 %v1695
    %vm1703 = vmor %vm1701, %vm1702
    %v1704 = vsel %vm1703, %v1695, %v1700
    %v1705 = vrsqrt.pop %v1694
    %v1706 = vmul.f32 %v1705, %v1694
    %v1707 = vmul.f32 %v1706, %v1705
    %v1708 = vmul.f32 0.5, %v1707
    %v1709 = vsub.f32 1.5, %v1708
    %v1710 = vmul.f32 %v1705, %v1709
    %vm1711 = vweird.f32 %v1694
    %vm1712 = vweird.f32 %v1705
    %vm1713 = vmor %vm1711, %vm1712
    %v1714 = vsel %vm1713, %v1705, %v1710
    %v1715 = vmul.f32 %v1691, %v1704
    %v1716 = vmul.f32 %v1692, %v1714
    %v1718 = vperm.slane %v1671, 0
    %v1720 = vmul.f32 %v1715, %v1718
    %v1721 = vmul.f32 %v1716, %v1718
    %v1723 = vperm.slane %v1672, 0
    %v1725 = vadd.f32 %v1720, %v1723
    %v1726 = vadd.f32 %v1721, %v1723
    %v1727 = vpack.c.bf16 %v1726, %v1725
    %v1728 = vld [vmem:[#allocation16] sm:$0xf]
    %v1729 = vld [vmem:[#allocation16 + $0x4] sm:$0xf]
    %v1730 = vld [vmem:[#allocation16 + $0x8] sm:$0xf]
    %v1731 = vld [vmem:[#allocation16 + $0xc] sm:$0xf]
    %v1732 = vld [vmem:[#allocation16 + $0x10] sm:$0xf]
    %v1733 = vld [vmem:[#allocation16 + $0x14] sm:$0xf]
    %v1734 = vld [vmem:[#allocation16 + $0x18] sm:$0xf]
    %v1735 = vld [vmem:[#allocation16 + $0x1c] sm:$0xf]
    %v1736 = vld [vmem:[#allocation16 + $0x20] sm:$0xf]
    %v1737 = vld [vmem:[#allocation16 + $0x24] sm:$0xf]
    %v1738 = vld [vmem:[#allocation16 + $0x28] sm:$0xf]
    %v1739 = vld [vmem:[#allocation16 + $0x2c] sm:$0xf]
    %v1740 = vld [vmem:[#allocation16 + $0x30] sm:$0xf]
    %v1741 = vld [vmem:[#allocation16 + $0x34] sm:$0xf]
    %v1742 = vld [vmem:[#allocation16 + $0x38] sm:$0xf]
    %v1743 = vld [vmem:[#allocation16 + $0x3c] sm:$0xf]
    %v1744 = vld [vmem:[%s12] sm:$0x1]
    %v1746 = vperm.slane %v1744, 0
    %v1764 = vunpack.c.l.b16 %v1728
    %v1765 = vunpack.c.l.b16 %v1729
    %v1766 = vunpack.c.l.b16 %v1730
    %v1767 = vunpack.c.l.b16 %v1731
    %v1768 = vunpack.c.l.b16 %v1732
    %v1769 = vunpack.c.l.b16 %v1733
    %v1770 = vunpack.c.l.b16 %v1734
    %v1771 = vunpack.c.l.b16 %v1735
    %v1772 = vunpack.c.l.b16 %v1736
    %v1773 = vunpack.c.l.b16 %v1737
    %v1774 = vunpack.c.l.b16 %v1738
    %v1775 = vunpack.c.l.b16 %v1739
    %v1776 = vunpack.c.l.b16 %v1740
    %v1777 = vunpack.c.l.b16 %v1741
    %v1778 = vunpack.c.l.b16 %v1742
    %v1779 = vunpack.c.l.b16 %v1743
    %v1780 = vpack.c.b16 %v1765, %v1764
    %v1781 = vpack.c.b16 %v1767, %v1766
    %v1782 = vpack.c.b16 %v1769, %v1768
    %v1783 = vpack.c.b16 %v1771, %v1770
    %v1784 = vpack.c.b16 %v1773, %v1772
    %v1785 = vpack.c.b16 %v1775, %v1774
    %v1786 = vpack.c.b16 %v1777, %v1776
    %v1787 = vpack.c.b16 %v1779, %v1778
    %1796 = vmatpush.bf16.msra.mxu0 %v1787
    %1797 = vmatpush.bf16.msra.mxu0 %v1786
    %1798 = vmatpush.bf16.msra.mxu0 %v1785
    %1799 = vmatpush.bf16.msra.mxu0 %v1784
    %1800 = vmatpush.bf16.msra.mxu0 %v1783
    %1801 = vmatpush.bf16.msra.mxu0 %v1782
    %1802 = vmatpush.bf16.msra.mxu0 %v1781
    %1803 = vmatpush.bf16.msra.mxu0 %v1780
    %1804 = vmatmul.bf16.gmra.mxu0 %v1727
    %v1805 = vpop.f32.mrf.mxu0
    %v1806 = vadd.f32 %v1746, %v1805
    %v1807 = vpop.f32.mrf.mxu0
    %v1808 = vadd.f32 %v1746, %v1807
    %1809 = vdwg.mxu0
    %v1810 = vmul.f32 %v1806, 1.702
    %v1811 = vmul.f32 %v1808, 1.702
    %v1812 = vxor.u32 %v1810, 2147483648
    %v1813 = vxor.u32 %v1811, 2147483648
    %v1814 = vmul.f32 %v1812, 1.442695
    %v1815 = vpow.pop %v1814
    %v1816 = vmul.f32 %v1813, 1.442695
    %v1817 = vpow.pop %v1816
    %v1818 = vadd.f32 %v1815, 1.0
    %v1819 = vadd.f32 %v1817, 1.0
    %v1820 = vrcp.pop %v1818
    %v1821 = vmul.f32 %v1818, %v1820
    %v1822 = vsub.f32 1.0, %v1821
    %v1823 = vmul.f32 %v1820, %v1822
    %v1824 = vadd.f32 %v1820, %v1823
    %vm1825 = vweird.f32 %v1818
    %vm1826 = vweird.f32 %v1820
    %vm1827 = vmor %vm1825, %vm1826
    %v1828 = vsel %vm1827, %v1820, %v1824
    %v1829 = vand.u32 2147483647, %v1818
    %vm1830 = vcmp.eq.f32.partialorder %v1829, 8.507059e+37
    %v1831 = vand.u32 %v1818, 2147483648
    %v1832 = vor.u32 1.1754944e-38, %v1831
    %v1833 = vsel %vm1830, %v1832, %v1828
    %v1834 = vmul.f32 1.0, %v1833
    %v1835 = vrcp.pop %v1819
    %v1836 = vmul.f32 %v1819, %v1835
    %v1837 = vsub.f32 1.0, %v1836
    %v1838 = vmul.f32 %v1835, %v1837
    %v1839 = vadd.f32 %v1835, %v1838
    %vm1840 = vweird.f32 %v1819
    %vm1841 = vweird.f32 %v1835
    %vm1842 = vmor %vm1840, %vm1841
    %v1843 = vsel %vm1842, %v1835, %v1839
    %v1844 = vand.u32 2147483647, %v1819
    %vm1845 = vcmp.eq.f32.partialorder %v1844, 8.507059e+37
    %v1846 = vand.u32 %v1819, 2147483648
    %v1847 = vor.u32 1.1754944e-38, %v1846
    %v1848 = vsel %vm1845, %v1847, %v1843
    %v1849 = vmul.f32 1.0, %v1848
    %v1850 = vmul.f32 %v1806, %v1834
    %v1851 = vmul.f32 %v1808, %v1849
    %v1852 = vpack.c.bf16 %v1851, %v1850
    %v1853 = vld [vmem:[#allocation17] sm:$0xf]
    %v1854 = vld [vmem:[#allocation17 + $0x4] sm:$0xf]
    %v1855 = vld [vmem:[#allocation17 + $0x8] sm:$0xf]
    %v1856 = vld [vmem:[#allocation17 + $0xc] sm:$0xf]
    %v1857 = vld [vmem:[#allocation17 + $0x10] sm:$0xf]
    %v1858 = vld [vmem:[#allocation17 + $0x14] sm:$0xf]
    %v1859 = vld [vmem:[#allocation17 + $0x18] sm:$0xf]
    %v1860 = vld [vmem:[#allocation17 + $0x1c] sm:$0xf]
    %v1861 = vld [vmem:[#allocation17 + $0x20] sm:$0xf]
    %v1862 = vld [vmem:[#allocation17 + $0x24] sm:$0xf]
    %v1863 = vld [vmem:[#allocation17 + $0x28] sm:$0xf]
    %v1864 = vld [vmem:[#allocation17 + $0x2c] sm:$0xf]
    %v1865 = vld [vmem:[#allocation17 + $0x30] sm:$0xf]
    %v1866 = vld [vmem:[#allocation17 + $0x34] sm:$0xf]
    %v1867 = vld [vmem:[#allocation17 + $0x38] sm:$0xf]
    %v1868 = vld [vmem:[#allocation17 + $0x3c] sm:$0xf]
    %v1869 = vld [vmem:[%s14] sm:$0x1]
    %v1871 = vperm.slane %v1869, 0
    %v1889 = vunpack.c.l.b16 %v1853
    %v1890 = vunpack.c.l.b16 %v1854
    %v1891 = vunpack.c.l.b16 %v1855
    %v1892 = vunpack.c.l.b16 %v1856
    %v1893 = vunpack.c.l.b16 %v1857
    %v1894 = vunpack.c.l.b16 %v1858
    %v1895 = vunpack.c.l.b16 %v1859
    %v1896 = vunpack.c.l.b16 %v1860
    %v1897 = vunpack.c.l.b16 %v1861
    %v1898 = vunpack.c.l.b16 %v1862
    %v1899 = vunpack.c.l.b16 %v1863
    %v1900 = vunpack.c.l.b16 %v1864
    %v1901 = vunpack.c.l.b16 %v1865
    %v1902 = vunpack.c.l.b16 %v1866
    %v1903 = vunpack.c.l.b16 %v1867
    %v1904 = vunpack.c.l.b16 %v1868
    %v1905 = vpack.c.b16 %v1890, %v1889
    %v1906 = vpack.c.b16 %v1892, %v1891
    %v1907 = vpack.c.b16 %v1894, %v1893
    %v1908 = vpack.c.b16 %v1896, %v1895
    %v1909 = vpack.c.b16 %v1898, %v1897
    %v1910 = vpack.c.b16 %v1900, %v1899
    %v1911 = vpack.c.b16 %v1902, %v1901
    %v1912 = vpack.c.b16 %v1904, %v1903
    %1921 = vmatpush.bf16.msra.mxu0 %v1912
    %1922 = vmatpush.bf16.msra.mxu0 %v1911
    %1923 = vmatpush.bf16.msra.mxu0 %v1910
    %1924 = vmatpush.bf16.msra.mxu0 %v1909
    %1925 = vmatpush.bf16.msra.mxu0 %v1908
    %1926 = vmatpush.bf16.msra.mxu0 %v1907
    %1927 = vmatpush.bf16.msra.mxu0 %v1906
    %1928 = vmatpush.bf16.msra.mxu0 %v1905
    %1929 = vmatmul.bf16.gmra.mxu0 %v1852
    %v1930 = vpop.f32.mrf.mxu0
    %v1931 = vadd.f32 %v1871, %v1930
    %v1932 = vpop.f32.mrf.mxu0
    %v1933 = vadd.f32 %v1871, %v1932
    %1934 = vdwg.mxu0
    %v1935 = vadd.f32 %v1669, %v1931
    %v1936 = vadd.f32 %v1670, %v1933
    %s1937 = scalar_lea.vmem %s3, 1
    %v1938 = vld [vmem:[%s1937] sm:$0x1]
    %s1939 = scalar_lea.vmem [#allocation10], 1
    %v1940 = vld [vmem:[%s1939] sm:$0x1]
    %1941 = vadd.xlane.f32.xlu0 %v1935
    %v1942 = vpop.xlane.xlu0 %1941
    %1943 = vadd.xlane.f32.xlu0 %v1936
    %v1944 = vpop.xlane.xlu0 %1943
    %v1945 = vmul.f32 %v1942, 0.03125
    %v1946 = vmul.f32 %v1944, 0.03125
    %v1947 = vmul.f32 %v1935, %v1935
    %v1948 = vmul.f32 %v1936, %v1936
    %1949 = vadd.xlane.f32.xlu0 %v1947
    %v1950 = vpop.xlane.xlu0 %1949
    %1951 = vadd.xlane.f32.xlu0 %v1948
    %v1952 = vpop.xlane.xlu0 %1951
    %v1953 = vmul.f32 %v1950, 0.03125
    %v1954 = vmul.f32 %v1952, 0.03125
    %v1955 = vmul.f32 %v1945, %v1945
    %v1956 = vmul.f32 %v1946, %v1946
    %v1957 = vsub.f32 %v1953, %v1955
    %v1958 = vsub.f32 %v1954, %v1956
    %v1959 = vsub.f32 %v1935, %v1945
    %v1960 = vsub.f32 %v1936, %v1946
    %v1961 = vadd.f32 %v1957, 1e-05
    %v1962 = vadd.f32 %v1958, 1e-05
    %v1963 = vrsqrt.pop %v1961
    %v1964 = vmul.f32 %v1963, %v1961
    %v1965 = vmul.f32 %v1964, %v1963
    %v1966 = vmul.f32 0.5, %v1965
    %v1967 = vsub.f32 1.5, %v1966
    %v1968 = vmul.f32 %v1963, %v1967
    %vm1969 = vweird.f32 %v1961
    %vm1970 = vweird.f32 %v1963
    %vm1971 = vmor %vm1969, %vm1970
    %v1972 = vsel %vm1971, %v1963, %v1968
    %v1973 = vrsqrt.pop %v1962
    %v1974 = vmul.f32 %v1973, %v1962
    %v1975 = vmul.f32 %v1974, %v1973
    %v1976 = vmul.f32 0.5, %v1975
    %v1977 = vsub.f32 1.5, %v1976
    %v1978 = vmul.f32 %v1973, %v1977
    %vm1979 = vweird.f32 %v1962
    %vm1980 = vweird.f32 %v1973
    %vm1981 = vmor %vm1979, %vm1980
    %v1982 = vsel %vm1981, %v1973, %v1978
    %v1983 = vmul.f32 %v1959, %v1972
    %v1984 = vmul.f32 %v1960, %v1982
    %v1986 = vperm.slane %v1938, 0
    %v1988 = vmul.f32 %v1983, %v1986
    %v1989 = vmul.f32 %v1984, %v1986
    %v1991 = vperm.slane %v1940, 0
    %v1993 = vadd.f32 %v1988, %v1991
    %v1994 = vadd.f32 %v1989, %v1991
    %v1995 = vpack.c.bf16 %v1994, %v1993
    %s1996 = scalar_lea.vmem [#allocation11], 768
    %v1997 = vld [vmem:[%s1996] sm:$0xff]
    %v1998 = vld [vmem:[%s1996 + $0x8] sm:$0xff]
    %v1999 = vld [vmem:[%s1996 + $0x10] sm:$0xff]
    %v2000 = vld [vmem:[%s1996 + $0x18] sm:$0xff]
    %v2001 = vld [vmem:[%s1996 + $0x20] sm:$0xff]
    %v2002 = vld [vmem:[%s1996 + $0x28] sm:$0xff]
    %v2003 = vld [vmem:[%s1996 + $0x30] sm:$0xff]
    %v2004 = vld [vmem:[%s1996 + $0x38] sm:$0xff]
    %v2005 = vld [vmem:[%s1996 + $0x40] sm:$0xff]
    %v2006 = vld [vmem:[%s1996 + $0x48] sm:$0xff]
    %v2007 = vld [vmem:[%s1996 + $0x50] sm:$0xff]
    %v2008 = vld [vmem:[%s1996 + $0x58] sm:$0xff]
    %v2009 = vld [vmem:[%s1996 + $0x60] sm:$0xff]
    %v2010 = vld [vmem:[%s1996 + $0x68] sm:$0xff]
    %v2011 = vld [vmem:[%s1996 + $0x70] sm:$0xff]
    %v2012 = vld [vmem:[%s1996 + $0x78] sm:$0xff]
    %v2013 = vld [vmem:[%s1996 + $0x80] sm:$0xff]
    %v2014 = vld [vmem:[%s1996 + $0x88] sm:$0xff]
    %v2015 = vld [vmem:[%s1996 + $0x90] sm:$0xff]
    %v2016 = vld [vmem:[%s1996 + $0x98] sm:$0xff]
    %v2017 = vld [vmem:[%s1996 + $0xa0] sm:$0xff]
    %v2018 = vld [vmem:[%s1996 + $0xa8] sm:$0xff]
    %v2019 = vld [vmem:[%s1996 + $0xb0] sm:$0xff]
    %v2020 = vld [vmem:[%s1996 + $0xb8] sm:$0xff]
    %v2021 = vld [vmem:[%s1996 + $0xc0] sm:$0xff]
    %v2022 = vld [vmem:[%s1996 + $0xc8] sm:$0xff]
    %v2023 = vld [vmem:[%s1996 + $0xd0] sm:$0xff]
    %v2024 = vld [vmem:[%s1996 + $0xd8] sm:$0xff]
    %v2025 = vld [vmem:[%s1996 + $0xe0] sm:$0xff]
    %v2026 = vld [vmem:[%s1996 + $0xe8] sm:$0xff]
    %v2027 = vld [vmem:[%s1996 + $0xf0] sm:$0xff]
    %v2028 = vld [vmem:[%s1996 + $0xf8] sm:$0xff]
    %v2029 = vld [vmem:[%s1996 + $0x100] sm:$0xff]
    %v2030 = vld [vmem:[%s1996 + $0x108] sm:$0xff]
    %v2031 = vld [vmem:[%s1996 + $0x110] sm:$0xff]
    %v2032 = vld [vmem:[%s1996 + $0x118] sm:$0xff]
    %v2033 = vld [vmem:[%s1996 + $0x120] sm:$0xff]
    %v2034 = vld [vmem:[%s1996 + $0x128] sm:$0xff]
    %v2035 = vld [vmem:[%s1996 + $0x130] sm:$0xff]
    %v2036 = vld [vmem:[%s1996 + $0x138] sm:$0xff]
    %v2037 = vld [vmem:[%s1996 + $0x140] sm:$0xff]
    %v2038 = vld [vmem:[%s1996 + $0x148] sm:$0xff]
    %v2039 = vld [vmem:[%s1996 + $0x150] sm:$0xff]
    %v2040 = vld [vmem:[%s1996 + $0x158] sm:$0xff]
    %v2041 = vld [vmem:[%s1996 + $0x160] sm:$0xff]
    %v2042 = vld [vmem:[%s1996 + $0x168] sm:$0xff]
    %v2043 = vld [vmem:[%s1996 + $0x170] sm:$0xff]
    %v2044 = vld [vmem:[%s1996 + $0x178] sm:$0xff]
    %v2045 = vld [vmem:[%s1996 + $0x180] sm:$0xff]
    %v2046 = vld [vmem:[%s1996 + $0x188] sm:$0xff]
    %v2047 = vld [vmem:[%s1996 + $0x190] sm:$0xff]
    %v2048 = vld [vmem:[%s1996 + $0x198] sm:$0xff]
    %v2049 = vld [vmem:[%s1996 + $0x1a0] sm:$0xff]
    %v2050 = vld [vmem:[%s1996 + $0x1a8] sm:$0xff]
    %v2051 = vld [vmem:[%s1996 + $0x1b0] sm:$0xff]
    %v2052 = vld [vmem:[%s1996 + $0x1b8] sm:$0xff]
    %v2053 = vld [vmem:[%s1996 + $0x1c0] sm:$0xff]
    %v2054 = vld [vmem:[%s1996 + $0x1c8] sm:$0xff]
    %v2055 = vld [vmem:[%s1996 + $0x1d0] sm:$0xff]
    %v2056 = vld [vmem:[%s1996 + $0x1d8] sm:$0xff]
    %v2057 = vld [vmem:[%s1996 + $0x1e0] sm:$0xff]
    %v2058 = vld [vmem:[%s1996 + $0x1e8] sm:$0xff]
    %v2059 = vld [vmem:[%s1996 + $0x1f0] sm:$0xff]
    %v2060 = vld [vmem:[%s1996 + $0x1f8] sm:$0xff]
    %v2061 = vld [vmem:[%s1996 + $0x200] sm:$0xff]
    %v2062 = vld [vmem:[%s1996 + $0x208] sm:$0xff]
    %v2063 = vld [vmem:[%s1996 + $0x210] sm:$0xff]
    %v2064 = vld [vmem:[%s1996 + $0x218] sm:$0xff]
    %v2065 = vld [vmem:[%s1996 + $0x220] sm:$0xff]
    %v2066 = vld [vmem:[%s1996 + $0x228] sm:$0xff]
    %v2067 = vld [vmem:[%s1996 + $0x230] sm:$0xff]
    %v2068 = vld [vmem:[%s1996 + $0x238] sm:$0xff]
    %v2069 = vld [vmem:[%s1996 + $0x240] sm:$0xff]
    %v2070 = vld [vmem:[%s1996 + $0x248] sm:$0xff]
    %v2071 = vld [vmem:[%s1996 + $0x250] sm:$0xff]
    %v2072 = vld [vmem:[%s1996 + $0x258] sm:$0xff]
    %v2073 = vld [vmem:[%s1996 + $0x260] sm:$0xff]
    %v2074 = vld [vmem:[%s1996 + $0x268] sm:$0xff]
    %v2075 = vld [vmem:[%s1996 + $0x270] sm:$0xff]
    %v2076 = vld [vmem:[%s1996 + $0x278] sm:$0xff]
    %v2077 = vld [vmem:[%s1996 + $0x280] sm:$0xff]
    %v2078 = vld [vmem:[%s1996 + $0x288] sm:$0xff]
    %v2079 = vld [vmem:[%s1996 + $0x290] sm:$0xff]
    %v2080 = vld [vmem:[%s1996 + $0x298] sm:$0xff]
    %v2081 = vld [vmem:[%s1996 + $0x2a0] sm:$0xff]
    %v2082 = vld [vmem:[%s1996 + $0x2a8] sm:$0xff]
    %v2083 = vld [vmem:[%s1996 + $0x2b0] sm:$0xff]
    %v2084 = vld [vmem:[%s1996 + $0x2b8] sm:$0xff]
    %v2085 = vld [vmem:[%s1996 + $0x2c0] sm:$0xff]
    %v2086 = vld [vmem:[%s1996 + $0x2c8] sm:$0xff]
    %v2087 = vld [vmem:[%s1996 + $0x2d0] sm:$0xff]
    %v2088 = vld [vmem:[%s1996 + $0x2d8] sm:$0xff]
    %v2089 = vld [vmem:[%s1996 + $0x2e0] sm:$0xff]
    %v2090 = vld [vmem:[%s1996 + $0x2e8] sm:$0xff]
    %v2091 = vld [vmem:[%s1996 + $0x2f0] sm:$0xff]
    %v2092 = vld [vmem:[%s1996 + $0x2f8] sm:$0xff]
    %s2093 = scalar_lea.vmem [#allocation13], 12
    %v2094 = vld [vmem:[%s2093] sm:$0xff]
    %v2095 = vld [vmem:[%s2093 + $0x8] sm:$0xf]
    %v2098 = vperm.slane %v2094, 0
    %v2099 = vperm.slane %v2094, 1
    %v2100 = vperm.slane %v2094, 2
    %v2101 = vperm.slane %v2094, 3
    %v2102 = vperm.slane %v2094, 4
    %v2103 = vperm.slane %v2094, 5
    %v2104 = vperm.slane %v2094, 6
    %v2105 = vperm.slane %v2094, 7
    %v2106 = vperm.slane %v2095, 0
    %v2107 = vperm.slane %v2095, 1
    %v2108 = vperm.slane %v2095, 2
    %v2109 = vperm.slane %v2095, 3
    %v2218 = vunpack.c.l.b16 %v1997
    %v2219 = vunpack.c.h.b16 %v1997
    %v2220 = vunpack.c.l.b16 %v1998
    %v2221 = vunpack.c.h.b16 %v1998
    %v2222 = vunpack.c.l.b16 %v1999
    %v2223 = vunpack.c.h.b16 %v1999
    %v2224 = vunpack.c.l.b16 %v2000
    %v2225 = vunpack.c.h.b16 %v2000
    %v2226 = vunpack.c.l.b16 %v2001
    %v2227 = vunpack.c.h.b16 %v2001
    %v2228 = vunpack.c.l.b16 %v2002
    %v2229 = vunpack.c.h.b16 %v2002
    %v2230 = vunpack.c.l.b16 %v2003
    %v2231 = vunpack.c.h.b16 %v2003
    %v2232 = vunpack.c.l.b16 %v2004
    %v2233 = vunpack.c.h.b16 %v2004
    %v2234 = vunpack.c.l.b16 %v2005
    %v2235 = vunpack.c.h.b16 %v2005
    %v2236 = vunpack.c.l.b16 %v2006
    %v2237 = vunpack.c.h.b16 %v2006
    %v2238 = vunpack.c.l.b16 %v2007
    %v2239 = vunpack.c.h.b16 %v2007
    %v2240 = vunpack.c.l.b16 %v2008
    %v2241 = vunpack.c.h.b16 %v2008
    %v2242 = vunpack.c.l.b16 %v2009
    %v2243 = vunpack.c.h.b16 %v2009
    %v2244 = vunpack.c.l.b16 %v2010
    %v2245 = vunpack.c.h.b16 %v2010
    %v2246 = vunpack.c.l.b16 %v2011
    %v2247 = vunpack.c.h.b16 %v2011
    %v2248 = vunpack.c.l.b16 %v2012
    %v2249 = vunpack.c.h.b16 %v2012
    %v2250 = vunpack.c.l.b16 %v2013
    %v2251 = vunpack.c.h.b16 %v2013
    %v2252 = vunpack.c.l.b16 %v2014
    %v2253 = vunpack.c.h.b16 %v2014
    %v2254 = vunpack.c.l.b16 %v2015
    %v2255 = vunpack.c.h.b16 %v2015
    %v2256 = vunpack.c.l.b16 %v2016
    %v2257 = vunpack.c.h.b16 %v2016
    %v2258 = vunpack.c.l.b16 %v2017
    %v2259 = vunpack.c.h.b16 %v2017
    %v2260 = vunpack.c.l.b16 %v2018
    %v2261 = vunpack.c.h.b16 %v2018
    %v2262 = vunpack.c.l.b16 %v2019
    %v2263 = vunpack.c.h.b16 %v2019
    %v2264 = vunpack.c.l.b16 %v2020
    %v2265 = vunpack.c.h.b16 %v2020
    %v2266 = vunpack.c.l.b16 %v2021
    %v2267 = vunpack.c.h.b16 %v2021
    %v2268 = vunpack.c.l.b16 %v2022
    %v2269 = vunpack.c.h.b16 %v2022
    %v2270 = vunpack.c.l.b16 %v2023
    %v2271 = vunpack.c.h.b16 %v2023
    %v2272 = vunpack.c.l.b16 %v2024
    %v2273 = vunpack.c.h.b16 %v2024
    %v2274 = vunpack.c.l.b16 %v2025
    %v2275 = vunpack.c.h.b16 %v2025
    %v2276 = vunpack.c.l.b16 %v2026
    %v2277 = vunpack.c.h.b16 %v2026
    %v2278 = vunpack.c.l.b16 %v2027
    %v2279 = vunpack.c.h.b16 %v2027
    %v2280 = vunpack.c.l.b16 %v2028
    %v2281 = vunpack.c.h.b16 %v2028
    %v2282 = vunpack.c.l.b16 %v2029
    %v2283 = vunpack.c.h.b16 %v2029
    %v2284 = vunpack.c.l.b16 %v2030
    %v2285 = vunpack.c.h.b16 %v2030
    %v2286 = vunpack.c.l.b16 %v2031
    %v2287 = vunpack.c.h.b16 %v2031
    %v2288 = vunpack.c.l.b16 %v2032
    %v2289 = vunpack.c.h.b16 %v2032
    %v2290 = vunpack.c.l.b16 %v2033
    %v2291 = vunpack.c.h.b16 %v2033
    %v2292 = vunpack.c.l.b16 %v2034
    %v2293 = vunpack.c.h.b16 %v2034
    %v2294 = vunpack.c.l.b16 %v2035
    %v2295 = vunpack.c.h.b16 %v2035
    %v2296 = vunpack.c.l.b16 %v2036
    %v2297 = vunpack.c.h.b16 %v2036
    %v2298 = vunpack.c.l.b16 %v2037
    %v2299 = vunpack.c.h.b16 %v2037
    %v2300 = vunpack.c.l.b16 %v2038
    %v2301 = vunpack.c.h.b16 %v2038
    %v2302 = vunpack.c.l.b16 %v2039
    %v2303 = vunpack.c.h.b16 %v2039
    %v2304 = vunpack.c.l.b16 %v2040
    %v2305 = vunpack.c.h.b16 %v2040
    %v2306 = vunpack.c.l.b16 %v2041
    %v2307 = vunpack.c.h.b16 %v2041
    %v2308 = vunpack.c.l.b16 %v2042
    %v2309 = vunpack.c.h.b16 %v2042
    %v2310 = vunpack.c.l.b16 %v2043
    %v2311 = vunpack.c.h.b16 %v2043
    %v2312 = vunpack.c.l.b16 %v2044
    %v2313 = vunpack.c.h.b16 %v2044
    %v2314 = vunpack.c.l.b16 %v2045
    %v2315 = vunpack.c.h.b16 %v2045
    %v2316 = vunpack.c.l.b16 %v2046
    %v2317 = vunpack.c.h.b16 %v2046
    %v2318 = vunpack.c.l.b16 %v2047
    %v2319 = vunpack.c.h.b16 %v2047
    %v2320 = vunpack.c.l.b16 %v2048
    %v2321 = vunpack.c.h.b16 %v2048
    %v2322 = vunpack.c.l.b16 %v2049
    %v2323 = vunpack.c.h.b16 %v2049
    %v2324 = vunpack.c.l.b16 %v2050
    %v2325 = vunpack.c.h.b16 %v2050
    %v2326 = vunpack.c.l.b16 %v2051
    %v2327 = vunpack.c.h.b16 %v2051
    %v2328 = vunpack.c.l.b16 %v2052
    %v2329 = vunpack.c.h.b16 %v2052
    %v2330 = vunpack.c.l.b16 %v2053
    %v2331 = vunpack.c.h.b16 %v2053
    %v2332 = vunpack.c.l.b16 %v2054
    %v2333 = vunpack.c.h.b16 %v2054
    %v2334 = vunpack.c.l.b16 %v2055
    %v2335 = vunpack.c.h.b16 %v2055
    %v2336 = vunpack.c.l.b16 %v2056
    %v2337 = vunpack.c.h.b16 %v2056
    %v2338 = vunpack.c.l.b16 %v2057
    %v2339 = vunpack.c.h.b16 %v2057
    %v2340 = vunpack.c.l.b16 %v2058
    %v2341 = vunpack.c.h.b16 %v2058
    %v2342 = vunpack.c.l.b16 %v2059
    %v2343 = vunpack.c.h.b16 %v2059
    %v2344 = vunpack.c.l.b16 %v2060
    %v2345 = vunpack.c.h.b16 %v2060
    %v2346 = vunpack.c.l.b16 %v2061
    %v2347 = vunpack.c.h.b16 %v2061
    %v2348 = vunpack.c.l.b16 %v2062
    %v2349 = vunpack.c.h.b16 %v2062
    %v2350 = vunpack.c.l.b16 %v2063
    %v2351 = vunpack.c.h.b16 %v2063
    %v2352 = vunpack.c.l.b16 %v2064
    %v2353 = vunpack.c.h.b16 %v2064
    %v2354 = vunpack.c.l.b16 %v2065
    %v2355 = vunpack.c.h.b16 %v2065
    %v2356 = vunpack.c.l.b16 %v2066
    %v2357 = vunpack.c.h.b16 %v2066
    %v2358 = vunpack.c.l.b16 %v2067
    %v2359 = vunpack.c.h.b16 %v2067
    %v2360 = vunpack.c.l.b16 %v2068
    %v2361 = vunpack.c.h.b16 %v2068
    %v2362 = vunpack.c.l.b16 %v2069
    %v2363 = vunpack.c.h.b16 %v2069
    %v2364 = vunpack.c.l.b16 %v2070
    %v2365 = vunpack.c.h.b16 %v2070
    %v2366 = vunpack.c.l.b16 %v2071
    %v2367 = vunpack.c.h.b16 %v2071
    %v2368 = vunpack.c.l.b16 %v2072
    %v2369 = vunpack.c.h.b16 %v2072
    %v2370 = vunpack.c.l.b16 %v2073
    %v2371 = vunpack.c.h.b16 %v2073
    %v2372 = vunpack.c.l.b16 %v2074
    %v2373 = vunpack.c.h.b16 %v2074
    %v2374 = vunpack.c.l.b16 %v2075
    %v2375 = vunpack.c.h.b16 %v2075
    %v2376 = vunpack.c.l.b16 %v2076
    %v2377 = vunpack.c.h.b16 %v2076
    %v2378 = vunpack.c.l.b16 %v2077
    %v2379 = vunpack.c.h.b16 %v2077
    %v2380 = vunpack.c.l.b16 %v2078
    %v2381 = vunpack.c.h.b16 %v2078
    %v2382 = vunpack.c.l.b16 %v2079
    %v2383 = vunpack.c.h.b16 %v2079
    %v2384 = vunpack.c.l.b16 %v2080
    %v2385 = vunpack.c.h.b16 %v2080
    %v2386 = vunpack.c.l.b16 %v2081
    %v2387 = vunpack.c.h.b16 %v2081
    %v2388 = vunpack.c.l.b16 %v2082
    %v2389 = vunpack.c.h.b16 %v2082
    %v2390 = vunpack.c.l.b16 %v2083
    %v2391 = vunpack.c.h.b16 %v2083
    %v2392 = vunpack.c.l.b16 %v2084
    %v2393 = vunpack.c.h.b16 %v2084
    %v2394 = vunpack.c.l.b16 %v2085
    %v2395 = vunpack.c.h.b16 %v2085
    %v2396 = vunpack.c.l.b16 %v2086
    %v2397 = vunpack.c.h.b16 %v2086
    %v2398 = vunpack.c.l.b16 %v2087
    %v2399 = vunpack.c.h.b16 %v2087
    %v2400 = vunpack.c.l.b16 %v2088
    %v2401 = vunpack.c.h.b16 %v2088
    %v2402 = vunpack.c.l.b16 %v2089
    %v2403 = vunpack.c.h.b16 %v2089
    %v2404 = vunpack.c.l.b16 %v2090
    %v2405 = vunpack.c.h.b16 %v2090
    %v2406 = vunpack.c.l.b16 %v2091
    %v2407 = vunpack.c.h.b16 %v2091
    %v2408 = vunpack.c.l.b16 %v2092
    %v2409 = vunpack.c.h.b16 %v2092
    %v2410 = vpack.c.b16 %v2230, %v2218
    %v2411 = vpack.c.b16 %v2231, %v2219
    %v2412 = vpack.c.b16 %v2232, %v2220
    %v2413 = vpack.c.b16 %v2233, %v2221
    %v2414 = vpack.c.b16 %v2234, %v2222
    %v2415 = vpack.c.b16 %v2235, %v2223
    %v2416 = vpack.c.b16 %v2236, %v2224
    %v2417 = vpack.c.b16 %v2237, %v2225
    %v2418 = vpack.c.b16 %v2238, %v2226
    %v2419 = vpack.c.b16 %v2239, %v2227
    %v2420 = vpack.c.b16 %v2240, %v2228
    %v2421 = vpack.c.b16 %v2241, %v2229
    %v2422 = vpack.c.b16 %v2254, %v2242
    %v2423 = vpack.c.b16 %v2255, %v2243
    %v2424 = vpack.c.b16 %v2256, %v2244
    %v2425 = vpack.c.b16 %v2257, %v2245
    %v2426 = vpack.c.b16 %v2258, %v2246
    %v2427 = vpack.c.b16 %v2259, %v2247
    %v2428 = vpack.c.b16 %v2260, %v2248
    %v2429 = vpack.c.b16 %v2261, %v2249
    %v2430 = vpack.c.b16 %v2262, %v2250
    %v2431 = vpack.c.b16 %v2263, %v2251
    %v2432 = vpack.c.b16 %v2264, %v2252
    %v2433 = vpack.c.b16 %v2265, %v2253
    %v2434 = vpack.c.b16 %v2278, %v2266
    %v2435 = vpack.c.b16 %v2279, %v2267
    %v2436 = vpack.c.b16 %v2280, %v2268
    %v2437 = vpack.c.b16 %v2281, %v2269
    %v2438 = vpack.c.b16 %v2282, %v2270
    %v2439 = vpack.c.b16 %v2283, %v2271
    %v2440 = vpack.c.b16 %v2284, %v2272
    %v2441 = vpack.c.b16 %v2285, %v2273
    %v2442 = vpack.c.b16 %v2286, %v2274
    %v2443 = vpack.c.b16 %v2287, %v2275
    %v2444 = vpack.c.b16 %v2288, %v2276
    %v2445 = vpack.c.b16 %v2289, %v2277
    %v2446 = vpack.c.b16 %v2302, %v2290
    %v2447 = vpack.c.b16 %v2303, %v2291
    %v2448 = vpack.c.b16 %v2304, %v2292
    %v2449 = vpack.c.b16 %v2305, %v2293
    %v2450 = vpack.c.b16 %v2306, %v2294
    %v2451 = vpack.c.b16 %v2307, %v2295
    %v2452 = vpack.c.b16 %v2308, %v2296
    %v2453 = vpack.c.b16 %v2309, %v2297
    %v2454 = vpack.c.b16 %v2310, %v2298
    %v2455 = vpack.c.b16 %v2311, %v2299
    %v2456 = vpack.c.b16 %v2312, %v2300
    %v2457 = vpack.c.b16 %v2313, %v2301
    %v2458 = vpack.c.b16 %v2326, %v2314
    %v2459 = vpack.c.b16 %v2327, %v2315
    %v2460 = vpack.c.b16 %v2328, %v2316
    %v2461 = vpack.c.b16 %v2329, %v2317
    %v2462 = vpack.c.b16 %v2330, %v2318
    %v2463 = vpack.c.b16 %v2331, %v2319
    %v2464 = vpack.c.b16 %v2332, %v2320
    %v2465 = vpack.c.b16 %v2333, %v2321
    %v2466 = vpack.c.b16 %v2334, %v2322
    %v2467 = vpack.c.b16 %v2335, %v2323
    %v2468 = vpack.c.b16 %v2336, %v2324
    %v2469 = vpack.c.b16 %v2337, %v2325
    %v2470 = vpack.c.b16 %v2350, %v2338
    %v2471 = vpack.c.b16 %v2351, %v2339
    %v2472 = vpack.c.b16 %v2352, %v2340
    %v2473 = vpack.c.b16 %v2353, %v2341
    %v2474 = vpack.c.b16 %v2354, %v2342
    %v2475 = vpack.c.b16 %v2355, %v2343
    %v2476 = vpack.c.b16 %v2356, %v2344
    %v2477 = vpack.c.b16 %v2357, %v2345
    %v2478 = vpack.c.b16 %v2358, %v2346
    %v2479 = vpack.c.b16 %v2359, %v2347
    %v2480 = vpack.c.b16 %v2360, %v2348
    %v2481 = vpack.c.b16 %v2361, %v2349
    %v2482 = vpack.c.b16 %v2374, %v2362
    %v2483 = vpack.c.b16 %v2375, %v2363
    %v2484 = vpack.c.b16 %v2376, %v2364
    %v2485 = vpack.c.b16 %v2377, %v2365
    %v2486 = vpack.c.b16 %v2378, %v2366
    %v2487 = vpack.c.b16 %v2379, %v2367
    %v2488 = vpack.c.b16 %v2380, %v2368
    %v2489 = vpack.c.b16 %v2381, %v2369
    %v2490 = vpack.c.b16 %v2382, %v2370
    %v2491 = vpack.c.b16 %v2383, %v2371
    %v2492 = vpack.c.b16 %v2384, %v2372
    %v2493 = vpack.c.b16 %v2385, %v2373
    %v2494 = vpack.c.b16 %v2398, %v2386
    %v2495 = vpack.c.b16 %v2399, %v2387
    %v2496 = vpack.c.b16 %v2400, %v2388
    %v2497 = vpack.c.b16 %v2401, %v2389
    %v2498 = vpack.c.b16 %v2402, %v2390
    %v2499 = vpack.c.b16 %v2403, %v2391
    %v2500 = vpack.c.b16 %v2404, %v2392
    %v2501 = vpack.c.b16 %v2405, %v2393
    %v2502 = vpack.c.b16 %v2406, %v2394
    %v2503 = vpack.c.b16 %v2407, %v2395
    %v2504 = vpack.c.b16 %v2408, %v2396
    %v2505 = vpack.c.b16 %v2409, %v2397
    %2602 = vmatpush.bf16.msra.mxu0 %v2494
    %2603 = vmatpush.bf16.msra.mxu0 %v2482
    %2604 = vmatpush.bf16.msra.mxu0 %v2470
    %2605 = vmatpush.bf16.msra.mxu0 %v2458
    %2606 = vmatpush.bf16.msra.mxu0 %v2446
    %2607 = vmatpush.bf16.msra.mxu0 %v2434
    %2608 = vmatpush.bf16.msra.mxu0 %v2422
    %2609 = vmatpush.bf16.msra.mxu0 %v2410
    %2610 = vmatmul.bf16.gmra.mxu0 %v1995
    %v2611 = vpop.f32.mrf.mxu0
    %v2612 = vadd.f32 %v2098, %v2611
    %v2613 = vpop.f32.mrf.mxu0
    %v2614 = vadd.f32 %v2098, %v2613
    %2615 = vdwg.mxu0
    %2616 = vmatpush.bf16.msra.mxu0 %v2495
    %2617 = vmatpush.bf16.msra.mxu0 %v2483
    %2618 = vmatpush.bf16.msra.mxu0 %v2471
    %2619 = vmatpush.bf16.msra.mxu0 %v2459
    %2620 = vmatpush.bf16.msra.mxu0 %v2447
    %2621 = vmatpush.bf16.msra.mxu0 %v2435
    %2622 = vmatpush.bf16.msra.mxu0 %v2423
    %2623 = vmatpush.bf16.msra.mxu0 %v2411
    %2624 = vmatmul.bf16.gmra.mxu0 %v1995
    %v2625 = vpop.f32.mrf.mxu0
    %v2626 = vadd.f32 %v2099, %v2625
    %v2627 = vpop.f32.mrf.mxu0
    %v2628 = vadd.f32 %v2099, %v2627
    %2629 = vdwg.mxu0
    %2630 = vmatpush.bf16.msra.mxu0 %v2496
    %2631 = vmatpush.bf16.msra.mxu0 %v2484
    %2632 = vmatpush.bf16.msra.mxu0 %v2472
    %2633 = vmatpush.bf16.msra.mxu0 %v2460
    %2634 = vmatpush.bf16.msra.mxu0 %v2448
    %2635 = vmatpush.bf16.msra.mxu0 %v2436
    %2636 = vmatpush.bf16.msra.mxu0 %v2424
    %2637 = vmatpush.bf16.msra.mxu0 %v2412
    %2638 = vmatmul.bf16.gmra.mxu0 %v1995
    %v2639 = vpop.f32.mrf.mxu0
    %v2640 = vadd.f32 %v2100, %v2639
    %v2641 = vpop.f32.mrf.mxu0
    %v2642 = vadd.f32 %v2100, %v2641
    %2643 = vdwg.mxu0
    %2644 = vmatpush.bf16.msra.mxu0 %v2497
    %2645 = vmatpush.bf16.msra.mxu0 %v2485
    %2646 = vmatpush.bf16.msra.mxu0 %v2473
    %2647 = vmatpush.bf16.msra.mxu0 %v2461
    %2648 = vmatpush.bf16.msra.mxu0 %v2449
    %2649 = vmatpush.bf16.msra.mxu0 %v2437
    %2650 = vmatpush.bf16.msra.mxu0 %v2425
    %2651 = vmatpush.bf16.msra.mxu0 %v2413
    %2652 = vmatmul.bf16.gmra.mxu0 %v1995
    %v2653 = vpop.f32.mrf.mxu0
    %v2654 = vadd.f32 %v2101, %v2653
    %v2655 = vpop.f32.mrf.mxu0
    %v2656 = vadd.f32 %v2101, %v2655
    %2657 = vdwg.mxu0
    %2658 = vmatpush.bf16.msra.mxu0 %v2498
    %2659 = vmatpush.bf16.msra.mxu0 %v2486
    %2660 = vmatpush.bf16.msra.mxu0 %v2474
    %2661 = vmatpush.bf16.msra.mxu0 %v2462
    %2662 = vmatpush.bf16.msra.mxu0 %v2450
    %2663 = vmatpush.bf16.msra.mxu0 %v2438
    %2664 = vmatpush.bf16.msra.mxu0 %v2426
    %2665 = vmatpush.bf16.msra.mxu0 %v2414
    %2666 = vmatmul.bf16.gmra.mxu0 %v1995
    %v2667 = vpop.f32.mrf.mxu0
    %v2668 = vadd.f32 %v2102, %v2667
    %v2669 = vpop.f32.mrf.mxu0
    %v2670 = vadd.f32 %v2102, %v2669
    %2671 = vdwg.mxu0
    %2672 = vmatpush.bf16.msra.mxu0 %v2499
    %2673 = vmatpush.bf16.msra.mxu0 %v2487
    %2674 = vmatpush.bf16.msra.mxu0 %v2475
    %2675 = vmatpush.bf16.msra.mxu0 %v2463
    %2676 = vmatpush.bf16.msra.mxu0 %v2451
    %2677 = vmatpush.bf16.msra.mxu0 %v2439
    %2678 = vmatpush.bf16.msra.mxu0 %v2427
    %2679 = vmatpush.bf16.msra.mxu0 %v2415
    %2680 = vmatmul.bf16.gmra.mxu0 %v1995
    %v2681 = vpop.f32.mrf.mxu0
    %v2682 = vadd.f32 %v2103, %v2681
    %v2683 = vpop.f32.mrf.mxu0
    %v2684 = vadd.f32 %v2103, %v2683
    %2685 = vdwg.mxu0
    %2686 = vmatpush.bf16.msra.mxu0 %v2500
    %2687 = vmatpush.bf16.msra.mxu0 %v2488
    %2688 = vmatpush.bf16.msra.mxu0 %v2476
    %2689 = vmatpush.bf16.msra.mxu0 %v2464
    %2690 = vmatpush.bf16.msra.mxu0 %v2452
    %2691 = vmatpush.bf16.msra.mxu0 %v2440
    %2692 = vmatpush.bf16.msra.mxu0 %v2428
    %2693 = vmatpush.bf16.msra.mxu0 %v2416
    %2694 = vmatmul.bf16.gmra.mxu0 %v1995
    %v2695 = vpop.f32.mrf.mxu0
    %v2696 = vadd.f32 %v2104, %v2695
    %v2697 = vpop.f32.mrf.mxu0
    %v2698 = vadd.f32 %v2104, %v2697
    %2699 = vdwg.mxu0
    %2700 = vmatpush.bf16.msra.mxu0 %v2501
    %2701 = vmatpush.bf16.msra.mxu0 %v2489
    %2702 = vmatpush.bf16.msra.mxu0 %v2477
    %2703 = vmatpush.bf16.msra.mxu0 %v2465
    %2704 = vmatpush.bf16.msra.mxu0 %v2453
    %2705 = vmatpush.bf16.msra.mxu0 %v2441
    %2706 = vmatpush.bf16.msra.mxu0 %v2429
    %2707 = vmatpush.bf16.msra.mxu0 %v2417
    %2708 = vmatmul.bf16.gmra.mxu0 %v1995
    %v2709 = vpop.f32.mrf.mxu0
    %v2710 = vadd.f32 %v2105, %v2709
    %v2711 = vpop.f32.mrf.mxu0
    %v2712 = vadd.f32 %v2105, %v2711
    %2713 = vdwg.mxu0
    %2714 = vmatpush.bf16.msra.mxu0 %v2502
    %2715 = vmatpush.bf16.msra.mxu0 %v2490
    %2716 = vmatpush.bf16.msra.mxu0 %v2478
    %2717 = vmatpush.bf16.msra.mxu0 %v2466
    %2718 = vmatpush.bf16.msra.mxu0 %v2454
    %2719 = vmatpush.bf16.msra.mxu0 %v2442
    %2720 = vmatpush.bf16.msra.mxu0 %v2430
    %2721 = vmatpush.bf16.msra.mxu0 %v2418
    %2722 = vmatmul.bf16.gmra.mxu0 %v1995
    %v2723 = vpop.f32.mrf.mxu0
    %v2724 = vadd.f32 %v2106, %v2723
    %v2725 = vpop.f32.mrf.mxu0
    %v2726 = vadd.f32 %v2106, %v2725
    %2727 = vdwg.mxu0
    %2728 = vmatpush.bf16.msra.mxu0 %v2503
    %2729 = vmatpush.bf16.msra.mxu0 %v2491
    %2730 = vmatpush.bf16.msra.mxu0 %v2479
    %2731 = vmatpush.bf16.msra.mxu0 %v2467
    %2732 = vmatpush.bf16.msra.mxu0 %v2455
    %2733 = vmatpush.bf16.msra.mxu0 %v2443
    %2734 = vmatpush.bf16.msra.mxu0 %v2431
    %2735 = vmatpush.bf16.msra.mxu0 %v2419
    %2736 = vmatmul.bf16.gmra.mxu0 %v1995
    %v2737 = vpop.f32.mrf.mxu0
    %v2738 = vadd.f32 %v2107, %v2737
    %v2739 = vpop.f32.mrf.mxu0
    %v2740 = vadd.f32 %v2107, %v2739
    %2741 = vdwg.mxu0
    %2742 = vmatpush.bf16.msra.mxu0 %v2504
    %2743 = vmatpush.bf16.msra.mxu0 %v2492
    %2744 = vmatpush.bf16.msra.mxu0 %v2480
    %2745 = vmatpush.bf16.msra.mxu0 %v2468
    %2746 = vmatpush.bf16.msra.mxu0 %v2456
    %2747 = vmatpush.bf16.msra.mxu0 %v2444
    %2748 = vmatpush.bf16.msra.mxu0 %v2432
    %2749 = vmatpush.bf16.msra.mxu0 %v2420
    %2750 = vmatmul.bf16.gmra.mxu0 %v1995
    %v2751 = vpop.f32.mrf.mxu0
    %v2752 = vadd.f32 %v2108, %v2751
    %v2753 = vpop.f32.mrf.mxu0
    %v2754 = vadd.f32 %v2108, %v2753
    %2755 = vdwg.mxu0
    %2756 = vmatpush.bf16.msra.mxu0 %v2505
    %2757 = vmatpush.bf16.msra.mxu0 %v2493
    %2758 = vmatpush.bf16.msra.mxu0 %v2481
    %2759 = vmatpush.bf16.msra.mxu0 %v2469
    %2760 = vmatpush.bf16.msra.mxu0 %v2457
    %2761 = vmatpush.bf16.msra.mxu0 %v2445
    %2762 = vmatpush.bf16.msra.mxu0 %v2433
    %2763 = vmatpush.bf16.msra.mxu0 %v2421
    %2764 = vmatmul.bf16.gmra.mxu0 %v1995
    %v2765 = vpop.f32.mrf.mxu0
    %v2766 = vadd.f32 %v2109, %v2765
    %v2767 = vpop.f32.mrf.mxu0
    %v2768 = vadd.f32 %v2109, %v2767
    %2769 = vdwg.mxu0
    %v2770 = vpack.c.bf16 %v2614, %v2612
    %v2771 = vpack.c.bf16 %v2670, %v2668
    %v2772 = vpack.c.bf16 %v2726, %v2724
    %2773 = vmatpush.bf16.xpose.msra.mxu0 0
    %2774 = vmatpush.bf16.xpose.msra.mxu0 0
    %2775 = vmatpush.bf16.xpose.msra.mxu0 0
    %2776 = vmatpush.bf16.xpose.msra.mxu0 0
    %2777 = vmatpush.bf16.xpose.msra.mxu0 0
    %2778 = vmatpush.bf16.xpose.msra.mxu0 0
    %2779 = vmatpush.bf16.xpose.msra.mxu0 0
    %2780 = vmatpush.bf16.xpose.msra.mxu0 %v2771
    %2781 = vmatmul.bf16.gmra.mxu0 %v2770
    %v2782 = vpop.f32.mrf.mxu0
    %v2783 = vadd.f32 0.0, %v2782
    %v2784 = vpop.f32.mrf.mxu0
    %v2785 = vadd.f32 0.0, %v2784
    %2786 = vdwg.mxu0
    %v2787 = vmul.f32 %v2783, 0.35355338
    %v2788 = vmul.f32 %v2785, 0.35355338
    %v2789 = vsel %vm271, %v2787, -1e+30
    %v2790 = vsel %vm272, %v2788, -1e+30
    %v2791 = vsel %vm1123, %v2789, -inf
    %2792 = vmax.xlane.f32.xlu0 %v2791
    %v2793 = vpop.xlane.xlu0 %2792
    %v2794 = vsel %vm1123, %v2790, -inf
    %2795 = vmax.xlane.f32.xlu0 %v2794
    %v2796 = vpop.xlane.xlu0 %2795
    %v2797 = vsub.f32 %v2789, %v2793
    %v2798 = vsub.f32 %v2790, %v2796
    %v2799 = vmul.f32 %v2797, 1.442695
    %v2800 = vpow.pop %v2799
    %v2801 = vmul.f32 %v2798, 1.442695
    %v2802 = vpow.pop %v2801
    %v2803 = vsel %vm1123, %v2800, 0.0
    %2804 = vadd.xlane.f32.xlu0 %v2803
    %v2805 = vpop.xlane.xlu0 %2804
    %v2806 = vsel %vm1123, %v2802, 0.0
    %2807 = vadd.xlane.f32.xlu0 %v2806
    %v2808 = vpop.xlane.xlu0 %2807
    %v2809 = vrcp.pop %v2805
    %v2810 = vrcp.pop %v2808
    %v2811 = vmul.f32 %v2800, %v2809
    %v2812 = vmul.f32 %v2802, %v2810
    %v2813 = vpack.c.bf16 %v2812, %v2811
    %v2815 = vsel %vm1123, %v2813, 0
    %2817 = vmatpush.bf16.msra.mxu0 0
    %2818 = vmatpush.bf16.msra.mxu0 0
    %2819 = vmatpush.bf16.msra.mxu0 0
    %2820 = vmatpush.bf16.msra.mxu0 0
    %2821 = vmatpush.bf16.msra.mxu0 0
    %2822 = vmatpush.bf16.msra.mxu0 0
    %2823 = vmatpush.bf16.msra.mxu0 0
    %2824 = vmatpush.bf16.msra.mxu0 %v2772
    %2825 = vmatmul.bf16.gmra.mxu0 %v2815
    %v2826 = vpop.f32.mrf.mxu0
    %v2827 = vadd.f32 0.0, %v2826
    %v2828 = vpop.f32.mrf.mxu0
    %v2829 = vadd.f32 0.0, %v2828
    %2830 = vdwg.mxu0
    %v2831 = vpack.c.bf16 %v2628, %v2626
    %v2832 = vpack.c.bf16 %v2684, %v2682
    %v2833 = vpack.c.bf16 %v2740, %v2738
    %2834 = vmatpush.bf16.xpose.msra.mxu0 0
    %2835 = vmatpush.bf16.xpose.msra.mxu0 0
    %2836 = vmatpush.bf16.xpose.msra.mxu0 0
    %2837 = vmatpush.bf16.xpose.msra.mxu0 0
    %2838 = vmatpush.bf16.xpose.msra.mxu0 0
    %2839 = vmatpush.bf16.xpose.msra.mxu0 0
    %2840 = vmatpush.bf16.xpose.msra.mxu0 0
    %2841 = vmatpush.bf16.xpose.msra.mxu0 %v2832
    %2842 = vmatmul.bf16.gmra.mxu0 %v2831
    %v2843 = vpop.f32.mrf.mxu0
    %v2844 = vadd.f32 0.0, %v2843
    %v2845 = vpop.f32.mrf.mxu0
    %v2846 = vadd.f32 0.0, %v2845
    %2847 = vdwg.mxu0
    %v2848 = vmul.f32 %v2844, 0.35355338
    %v2849 = vmul.f32 %v2846, 0.35355338
    %v2850 = vsel %vm271, %v2848, -1e+30
    %v2851 = vsel %vm272, %v2849, -1e+30
    %v2852 = vsel %vm1123, %v2850, -inf
    %2853 = vmax.xlane.f32.xlu0 %v2852
    %v2854 = vpop.xlane.xlu0 %2853
    %v2855 = vsel %vm1123, %v2851, -inf
    %2856 = vmax.xlane.f32.xlu0 %v2855
    %v2857 = vpop.xlane.xlu0 %2856
    %v2858 = vsub.f32 %v2850, %v2854
    %v2859 = vsub.f32 %v2851, %v2857
    %v2860 = vmul.f32 %v2858, 1.442695
    %v2861 = vpow.pop %v2860
    %v2862 = vmul.f32 %v2859, 1.442695
    %v2863 = vpow.pop %v2862
    %v2864 = vsel %vm1123, %v2861, 0.0
    %2865 = vadd.xlane.f32.xlu0 %v2864
    %v2866 = vpop.xlane.xlu0 %2865
    %v2867 = vsel %vm1123, %v2863, 0.0
    %2868 = vadd.xlane.f32.xlu0 %v2867
    %v2869 = vpop.xlane.xlu0 %2868
    %v2870 = vrcp.pop %v2866
    %v2871 = vrcp.pop %v2869
    %v2872 = vmul.f32 %v2861, %v2870
    %v2873 = vmul.f32 %v2863, %v2871
    %v2874 = vpack.c.bf16 %v2873, %v2872
    %v2876 = vsel %vm1123, %v2874, 0
    %2878 = vmatpush.bf16.msra.mxu0 0
    %2879 = vmatpush.bf16.msra.mxu0 0
    %2880 = vmatpush.bf16.msra.mxu0 0
    %2881 = vmatpush.bf16.msra.mxu0 0
    %2882 = vmatpush.bf16.msra.mxu0 0
    %2883 = vmatpush.bf16.msra.mxu0 0
    %2884 = vmatpush.bf16.msra.mxu0 0
    %2885 = vmatpush.bf16.msra.mxu0 %v2833
    %2886 = vmatmul.bf16.gmra.mxu0 %v2876
    %v2887 = vpop.f32.mrf.mxu0
    %v2888 = vadd.f32 0.0, %v2887
    %v2889 = vpop.f32.mrf.mxu0
    %v2890 = vadd.f32 0.0, %v2889
    %2891 = vdwg.mxu0
    %v2892 = vpack.c.bf16 %v2642, %v2640
    %v2893 = vpack.c.bf16 %v2698, %v2696
    %v2894 = vpack.c.bf16 %v2754, %v2752
    %2895 = vmatpush.bf16.xpose.msra.mxu0 0
    %2896 = vmatpush.bf16.xpose.msra.mxu0 0
    %2897 = vmatpush.bf16.xpose.msra.mxu0 0
    %2898 = vmatpush.bf16.xpose.msra.mxu0 0
    %2899 = vmatpush.bf16.xpose.msra.mxu0 0
    %2900 = vmatpush.bf16.xpose.msra.mxu0 0
    %2901 = vmatpush.bf16.xpose.msra.mxu0 0
    %2902 = vmatpush.bf16.xpose.msra.mxu0 %v2893
    %2903 = vmatmul.bf16.gmra.mxu0 %v2892
    %v2904 = vpop.f32.mrf.mxu0
    %v2905 = vadd.f32 0.0, %v2904
    %v2906 = vpop.f32.mrf.mxu0
    %v2907 = vadd.f32 0.0, %v2906
    %2908 = vdwg.mxu0
    %v2909 = vmul.f32 %v2905, 0.35355338
    %v2910 = vmul.f32 %v2907, 0.35355338
    %v2911 = vsel %vm271, %v2909, -1e+30
    %v2912 = vsel %vm272, %v2910, -1e+30
    %v2913 = vsel %vm1123, %v2911, -inf
    %2914 = vmax.xlane.f32.xlu0 %v2913
    %v2915 = vpop.xlane.xlu0 %2914
    %v2916 = vsel %vm1123, %v2912, -inf
    %2917 = vmax.xlane.f32.xlu0 %v2916
    %v2918 = vpop.xlane.xlu0 %2917
    %v2919 = vsub.f32 %v2911, %v2915
    %v2920 = vsub.f32 %v2912, %v2918
    %v2921 = vmul.f32 %v2919, 1.442695
    %v2922 = vpow.pop %v2921
    %v2923 = vmul.f32 %v2920, 1.442695
    %v2924 = vpow.pop %v2923
    %v2925 = vsel %vm1123, %v2922, 0.0
    %2926 = vadd.xlane.f32.xlu0 %v2925
    %v2927 = vpop.xlane.xlu0 %2926
    %v2928 = vsel %vm1123, %v2924, 0.0
    %2929 = vadd.xlane.f32.xlu0 %v2928
    %v2930 = vpop.xlane.xlu0 %2929
    %v2931 = vrcp.pop %v2927
    %v2932 = vrcp.pop %v2930
    %v2933 = vmul.f32 %v2922, %v2931
    %v2934 = vmul.f32 %v2924, %v2932
    %v2935 = vpack.c.bf16 %v2934, %v2933
    %v2937 = vsel %vm1123, %v2935, 0
    %2939 = vmatpush.bf16.msra.mxu0 0
    %2940 = vmatpush.bf16.msra.mxu0 0
    %2941 = vmatpush.bf16.msra.mxu0 0
    %2942 = vmatpush.bf16.msra.mxu0 0
    %2943 = vmatpush.bf16.msra.mxu0 0
    %2944 = vmatpush.bf16.msra.mxu0 0
    %2945 = vmatpush.bf16.msra.mxu0 0
    %2946 = vmatpush.bf16.msra.mxu0 %v2894
    %2947 = vmatmul.bf16.gmra.mxu0 %v2937
    %v2948 = vpop.f32.mrf.mxu0
    %v2949 = vadd.f32 0.0, %v2948
    %v2950 = vpop.f32.mrf.mxu0
    %v2951 = vadd.f32 0.0, %v2950
    %2952 = vdwg.mxu0
    %v2953 = vpack.c.bf16 %v2656, %v2654
    %v2954 = vpack.c.bf16 %v2712, %v2710
    %v2955 = vpack.c.bf16 %v2768, %v2766
    %2956 = vmatpush.bf16.xpose.msra.mxu0 0
    %2957 = vmatpush.bf16.xpose.msra.mxu0 0
    %2958 = vmatpush.bf16.xpose.msra.mxu0 0
    %2959 = vmatpush.bf16.xpose.msra.mxu0 0
    %2960 = vmatpush.bf16.xpose.msra.mxu0 0
    %2961 = vmatpush.bf16.xpose.msra.mxu0 0
    %2962 = vmatpush.bf16.xpose.msra.mxu0 0
    %2963 = vmatpush.bf16.xpose.msra.mxu0 %v2954
    %2964 = vmatmul.bf16.gmra.mxu0 %v2953
    %v2965 = vpop.f32.mrf.mxu0
    %v2966 = vadd.f32 0.0, %v2965
    %v2967 = vpop.f32.mrf.mxu0
    %v2968 = vadd.f32 0.0, %v2967
    %2969 = vdwg.mxu0
    %v2970 = vmul.f32 %v2966, 0.35355338
    %v2971 = vmul.f32 %v2968, 0.35355338
    %v2972 = vsel %vm271, %v2970, -1e+30
    %v2973 = vsel %vm272, %v2971, -1e+30
    %v2974 = vsel %vm1123, %v2972, -inf
    %2975 = vmax.xlane.f32.xlu0 %v2974
    %v2976 = vpop.xlane.xlu0 %2975
    %v2977 = vsel %vm1123, %v2973, -inf
    %2978 = vmax.xlane.f32.xlu0 %v2977
    %v2979 = vpop.xlane.xlu0 %2978
    %v2980 = vsub.f32 %v2972, %v2976
    %v2981 = vsub.f32 %v2973, %v2979
    %v2982 = vmul.f32 %v2980, 1.442695
    %v2983 = vpow.pop %v2982
    %v2984 = vmul.f32 %v2981, 1.442695
    %v2985 = vpow.pop %v2984
    %v2986 = vsel %vm1123, %v2983, 0.0
    %2987 = vadd.xlane.f32.xlu0 %v2986
    %v2988 = vpop.xlane.xlu0 %2987
    %v2989 = vsel %vm1123, %v2985, 0.0
    %2990 = vadd.xlane.f32.xlu0 %v2989
    %v2991 = vpop.xlane.xlu0 %2990
    %v2992 = vrcp.pop %v2988
    %v2993 = vrcp.pop %v2991
    %v2994 = vmul.f32 %v2983, %v2992
    %v2995 = vmul.f32 %v2985, %v2993
    %v2996 = vpack.c.bf16 %v2995, %v2994
    %v2998 = vsel %vm1123, %v2996, 0
    %3000 = vmatpush.bf16.msra.mxu0 0
    %3001 = vmatpush.bf16.msra.mxu0 0
    %3002 = vmatpush.bf16.msra.mxu0 0
    %3003 = vmatpush.bf16.msra.mxu0 0
    %3004 = vmatpush.bf16.msra.mxu0 0
    %3005 = vmatpush.bf16.msra.mxu0 0
    %3006 = vmatpush.bf16.msra.mxu0 0
    %3007 = vmatpush.bf16.msra.mxu0 %v2955
    %3008 = vmatmul.bf16.gmra.mxu0 %v2998
    %v3009 = vpop.f32.mrf.mxu0
    %v3010 = vadd.f32 0.0, %v3009
    %v3011 = vpop.f32.mrf.mxu0
    %v3012 = vadd.f32 0.0, %v3011
    %3013 = vdwg.mxu0
    %v3014 = vpack.c.bf16 %v2829, %v2827
    %v3015 = vpack.c.bf16 %v2890, %v2888
    %v3016 = vpack.c.bf16 %v2951, %v2949
    %v3017 = vpack.c.bf16 %v3012, %v3010
    %s3018 = scalar_lea.vmem [#allocation14], 256
    %v3019 = vld [vmem:[%s3018] sm:$0xf]
    %v3020 = vld [vmem:[%s3018 + $0x4] sm:$0xf]
    %v3021 = vld [vmem:[%s3018 + $0x8] sm:$0xf]
    %v3022 = vld [vmem:[%s3018 + $0xc] sm:$0xf]
    %v3023 = vld [vmem:[%s3018 + $0x10] sm:$0xf]
    %v3024 = vld [vmem:[%s3018 + $0x14] sm:$0xf]
    %v3025 = vld [vmem:[%s3018 + $0x18] sm:$0xf]
    %v3026 = vld [vmem:[%s3018 + $0x1c] sm:$0xf]
    %v3027 = vld [vmem:[%s3018 + $0x20] sm:$0xf]
    %v3028 = vld [vmem:[%s3018 + $0x24] sm:$0xf]
    %v3029 = vld [vmem:[%s3018 + $0x28] sm:$0xf]
    %v3030 = vld [vmem:[%s3018 + $0x2c] sm:$0xf]
    %v3031 = vld [vmem:[%s3018 + $0x30] sm:$0xf]
    %v3032 = vld [vmem:[%s3018 + $0x34] sm:$0xf]
    %v3033 = vld [vmem:[%s3018 + $0x38] sm:$0xf]
    %v3034 = vld [vmem:[%s3018 + $0x3c] sm:$0xf]
    %v3035 = vld [vmem:[%s3018 + $0x40] sm:$0xf]
    %v3036 = vld [vmem:[%s3018 + $0x44] sm:$0xf]
    %v3037 = vld [vmem:[%s3018 + $0x48] sm:$0xf]
    %v3038 = vld [vmem:[%s3018 + $0x4c] sm:$0xf]
    %v3039 = vld [vmem:[%s3018 + $0x50] sm:$0xf]
    %v3040 = vld [vmem:[%s3018 + $0x54] sm:$0xf]
    %v3041 = vld [vmem:[%s3018 + $0x58] sm:$0xf]
    %v3042 = vld [vmem:[%s3018 + $0x5c] sm:$0xf]
    %v3043 = vld [vmem:[%s3018 + $0x60] sm:$0xf]
    %v3044 = vld [vmem:[%s3018 + $0x64] sm:$0xf]
    %v3045 = vld [vmem:[%s3018 + $0x68] sm:$0xf]
    %v3046 = vld [vmem:[%s3018 + $0x6c] sm:$0xf]
    %v3047 = vld [vmem:[%s3018 + $0x70] sm:$0xf]
    %v3048 = vld [vmem:[%s3018 + $0x74] sm:$0xf]
    %v3049 = vld [vmem:[%s3018 + $0x78] sm:$0xf]
    %v3050 = vld [vmem:[%s3018 + $0x7c] sm:$0xf]
    %v3051 = vld [vmem:[%s3018 + $0x80] sm:$0xf]
    %v3052 = vld [vmem:[%s3018 + $0x84] sm:$0xf]
    %v3053 = vld [vmem:[%s3018 + $0x88] sm:$0xf]
    %v3054 = vld [vmem:[%s3018 + $0x8c] sm:$0xf]
    %v3055 = vld [vmem:[%s3018 + $0x90] sm:$0xf]
    %v3056 = vld [vmem:[%s3018 + $0x94] sm:$0xf]
    %v3057 = vld [vmem:[%s3018 + $0x98] sm:$0xf]
    %v3058 = vld [vmem:[%s3018 + $0x9c] sm:$0xf]
    %v3059 = vld [vmem:[%s3018 + $0xa0] sm:$0xf]
    %v3060 = vld [vmem:[%s3018 + $0xa4] sm:$0xf]
    %v3061 = vld [vmem:[%s3018 + $0xa8] sm:$0xf]
    %v3062 = vld [vmem:[%s3018 + $0xac] sm:$0xf]
    %v3063 = vld [vmem:[%s3018 + $0xb0] sm:$0xf]
    %v3064 = vld [vmem:[%s3018 + $0xb4] sm:$0xf]
    %v3065 = vld [vmem:[%s3018 + $0xb8] sm:$0xf]
    %v3066 = vld [vmem:[%s3018 + $0xbc] sm:$0xf]
    %v3067 = vld [vmem:[%s3018 + $0xc0] sm:$0xf]
    %v3068 = vld [vmem:[%s3018 + $0xc4] sm:$0xf]
    %v3069 = vld [vmem:[%s3018 + $0xc8] sm:$0xf]
    %v3070 = vld [vmem:[%s3018 + $0xcc] sm:$0xf]
    %v3071 = vld [vmem:[%s3018 + $0xd0] sm:$0xf]
    %v3072 = vld [vmem:[%s3018 + $0xd4] sm:$0xf]
    %v3073 = vld [vmem:[%s3018 + $0xd8] sm:$0xf]
    %v3074 = vld [vmem:[%s3018 + $0xdc] sm:$0xf]
    %v3075 = vld [vmem:[%s3018 + $0xe0] sm:$0xf]
    %v3076 = vld [vmem:[%s3018 + $0xe4] sm:$0xf]
    %v3077 = vld [vmem:[%s3018 + $0xe8] sm:$0xf]
    %v3078 = vld [vmem:[%s3018 + $0xec] sm:$0xf]
    %v3079 = vld [vmem:[%s3018 + $0xf0] sm:$0xf]
    %v3080 = vld [vmem:[%s3018 + $0xf4] sm:$0xf]
    %v3081 = vld [vmem:[%s3018 + $0xf8] sm:$0xf]
    %v3082 = vld [vmem:[%s3018 + $0xfc] sm:$0xf]
    %v3147 = vunpack.c.l.b16 %v3019
    %v3148 = vunpack.c.l.b16 %v3020
    %v3149 = vunpack.c.l.b16 %v3021
    %v3150 = vunpack.c.l.b16 %v3022
    %v3151 = vunpack.c.l.b16 %v3023
    %v3152 = vunpack.c.l.b16 %v3024
    %v3153 = vunpack.c.l.b16 %v3025
    %v3154 = vunpack.c.l.b16 %v3026
    %v3155 = vunpack.c.l.b16 %v3027
    %v3156 = vunpack.c.l.b16 %v3028
    %v3157 = vunpack.c.l.b16 %v3029
    %v3158 = vunpack.c.l.b16 %v3030
    %v3159 = vunpack.c.l.b16 %v3031
    %v3160 = vunpack.c.l.b16 %v3032
    %v3161 = vunpack.c.l.b16 %v3033
    %v3162 = vunpack.c.l.b16 %v3034
    %v3163 = vunpack.c.l.b16 %v3035
    %v3164 = vunpack.c.l.b16 %v3036
    %v3165 = vunpack.c.l.b16 %v3037
    %v3166 = vunpack.c.l.b16 %v3038
    %v3167 = vunpack.c.l.b16 %v3039
    %v3168 = vunpack.c.l.b16 %v3040
    %v3169 = vunpack.c.l.b16 %v3041
    %v3170 = vunpack.c.l.b16 %v3042
    %v3171 = vunpack.c.l.b16 %v3043
    %v3172 = vunpack.c.l.b16 %v3044
    %v3173 = vunpack.c.l.b16 %v3045
    %v3174 = vunpack.c.l.b16 %v3046
    %v3175 = vunpack.c.l.b16 %v3047
    %v3176 = vunpack.c.l.b16 %v3048
    %v3177 = vunpack.c.l.b16 %v3049
    %v3178 = vunpack.c.l.b16 %v3050
    %v3179 = vunpack.c.l.b16 %v3051
    %v3180 = vunpack.c.l.b16 %v3052
    %v3181 = vunpack.c.l.b16 %v3053
    %v3182 = vunpack.c.l.b16 %v3054
    %v3183 = vunpack.c.l.b16 %v3055
    %v3184 = vunpack.c.l.b16 %v3056
    %v3185 = vunpack.c.l.b16 %v3057
    %v3186 = vunpack.c.l.b16 %v3058
    %v3187 = vunpack.c.l.b16 %v3059
    %v3188 = vunpack.c.l.b16 %v3060
    %v3189 = vunpack.c.l.b16 %v3061
    %v3190 = vunpack.c.l.b16 %v3062
    %v3191 = vunpack.c.l.b16 %v3063
    %v3192 = vunpack.c.l.b16 %v3064
    %v3193 = vunpack.c.l.b16 %v3065
    %v3194 = vunpack.c.l.b16 %v3066
    %v3195 = vunpack.c.l.b16 %v3067
    %v3196 = vunpack.c.l.b16 %v3068
    %v3197 = vunpack.c.l.b16 %v3069
    %v3198 = vunpack.c.l.b16 %v3070
    %v3199 = vunpack.c.l.b16 %v3071
    %v3200 = vunpack.c.l.b16 %v3072
    %v3201 = vunpack.c.l.b16 %v3073
    %v3202 = vunpack.c.l.b16 %v3074
    %v3203 = vunpack.c.l.b16 %v3075
    %v3204 = vunpack.c.l.b16 %v3076
    %v3205 = vunpack.c.l.b16 %v3077
    %v3206 = vunpack.c.l.b16 %v3078
    %v3207 = vunpack.c.l.b16 %v3079
    %v3208 = vunpack.c.l.b16 %v3080
    %v3209 = vunpack.c.l.b16 %v3081
    %v3210 = vunpack.c.l.b16 %v3082
    %v3211 = vpack.c.b16 %v3148, %v3147
    %v3212 = vpack.c.b16 %v3150, %v3149
    %v3213 = vpack.c.b16 %v3152, %v3151
    %v3214 = vpack.c.b16 %v3154, %v3153
    %v3215 = vpack.c.b16 %v3156, %v3155
    %v3216 = vpack.c.b16 %v3158, %v3157
    %v3217 = vpack.c.b16 %v3160, %v3159
    %v3218 = vpack.c.b16 %v3162, %v3161
    %v3219 = vpack.c.b16 %v3164, %v3163
    %v3220 = vpack.c.b16 %v3166, %v3165
    %v3221 = vpack.c.b16 %v3168, %v3167
    %v3222 = vpack.c.b16 %v3170, %v3169
    %v3223 = vpack.c.b16 %v3172, %v3171
    %v3224 = vpack.c.b16 %v3174, %v3173
    %v3225 = vpack.c.b16 %v3176, %v3175
    %v3226 = vpack.c.b16 %v3178, %v3177
    %v3227 = vpack.c.b16 %v3180, %v3179
    %v3228 = vpack.c.b16 %v3182, %v3181
    %v3229 = vpack.c.b16 %v3184, %v3183
    %v3230 = vpack.c.b16 %v3186, %v3185
    %v3231 = vpack.c.b16 %v3188, %v3187
    %v3232 = vpack.c.b16 %v3190, %v3189
    %v3233 = vpack.c.b16 %v3192, %v3191
    %v3234 = vpack.c.b16 %v3194, %v3193
    %v3235 = vpack.c.b16 %v3196, %v3195
    %v3236 = vpack.c.b16 %v3198, %v3197
    %v3237 = vpack.c.b16 %v3200, %v3199
    %v3238 = vpack.c.b16 %v3202, %v3201
    %v3239 = vpack.c.b16 %v3204, %v3203
    %v3240 = vpack.c.b16 %v3206, %v3205
    %v3241 = vpack.c.b16 %v3208, %v3207
    %v3242 = vpack.c.b16 %v3210, %v3209
    %3275 = vmatpush.bf16.msra.mxu0 %v3218
    %3276 = vmatpush.bf16.msra.mxu0 %v3217
    %3277 = vmatpush.bf16.msra.mxu0 %v3216
    %3278 = vmatpush.bf16.msra.mxu0 %v3215
    %3279 = vmatpush.bf16.msra.mxu0 %v3214
    %3280 = vmatpush.bf16.msra.mxu0 %v3213
    %3281 = vmatpush.bf16.msra.mxu0 %v3212
    %3282 = vmatpush.bf16.msra.mxu0 %v3211
    %3283 = vmatmul.bf16.gmra.mxu0 %v3014
    %v3284 = vpop.f32.mrf.mxu0
    %v3285 = vadd.f32 0.0, %v3284
    %v3286 = vpop.f32.mrf.mxu0
    %v3287 = vadd.f32 0.0, %v3286
    %3288 = vdwg.mxu0
    %3289 = vmatpush.bf16.msra.mxu0 %v3226
    %3290 = vmatpush.bf16.msra.mxu0 %v3225
    %3291 = vmatpush.bf16.msra.mxu0 %v3224
    %3292 = vmatpush.bf16.msra.mxu0 %v3223
    %3293 = vmatpush.bf16.msra.mxu0 %v3222
    %3294 = vmatpush.bf16.msra.mxu0 %v3221
    %3295 = vmatpush.bf16.msra.mxu0 %v3220
    %3296 = vmatpush.bf16.msra.mxu0 %v3219
    %3297 = vmatmul.bf16.gmra.mxu0 %v3015
    %v3298 = vpop.f32.mrf.mxu0
    %v3299 = vadd.f32 %v3285, %v3298
    %v3300 = vpop.f32.mrf.mxu0
    %v3301 = vadd.f32 %v3287, %v3300
    %3302 = vdwg.mxu0
    %3303 = vmatpush.bf16.msra.mxu0 %v3234
    %3304 = vmatpush.bf16.msra.mxu0 %v3233
    %3305 = vmatpush.bf16.msra.mxu0 %v3232
    %3306 = vmatpush.bf16.msra.mxu0 %v3231
    %3307 = vmatpush.bf16.msra.mxu0 %v3230
    %3308 = vmatpush.bf16.msra.mxu0 %v3229
    %3309 = vmatpush.bf16.msra.mxu0 %v3228
    %3310 = vmatpush.bf16.msra.mxu0 %v3227
    %3311 = vmatmul.bf16.gmra.mxu0 %v3016
    %v3312 = vpop.f32.mrf.mxu0
    %v3313 = vadd.f32 %v3299, %v3312
    %v3314 = vpop.f32.mrf.mxu0
    %v3315 = vadd.f32 %v3301, %v3314
    %3316 = vdwg.mxu0
    %3317 = vmatpush.bf16.msra.mxu0 %v3242
    %3318 = vmatpush.bf16.msra.mxu0 %v3241
    %3319 = vmatpush.bf16.msra.mxu0 %v3240
    %3320 = vmatpush.bf16.msra.mxu0 %v3239
    %3321 = vmatpush.bf16.msra.mxu0 %v3238
    %3322 = vmatpush.bf16.msra.mxu0 %v3237
    %3323 = vmatpush.bf16.msra.mxu0 %v3236
    %3324 = vmatpush.bf16.msra.mxu0 %v3235
    %3325 = vmatmul.bf16.gmra.mxu0 %v3017
    %v3326 = vpop.f32.mrf.mxu0
    %v3327 = vadd.f32 %v3313, %v3326
    %v3328 = vpop.f32.mrf.mxu0
    %v3329 = vadd.f32 %v3315, %v3328
    %3330 = vdwg.mxu0
    %v3331 = vadd.f32 %v1935, %v3327
    %v3332 = vadd.f32 %v1936, %v3329
    %s3333 = scalar_lea.vmem %s8, 1
    %v3334 = vld [vmem:[%s3333] sm:$0x1]
    %v3336 = vperm.slane %v3334, 0
    %v3338 = vadd.f32 %v3331, %v3336
    %v3339 = vadd.f32 %v3332, %v3336
    %s3340 = scalar_lea.vmem %s9, 1
    %v3341 = vld [vmem:[%s3340] sm:$0x1]
    %s3342 = scalar_lea.vmem %s10, 1
    %v3343 = vld [vmem:[%s3342] sm:$0x1]
    %3344 = vadd.xlane.f32.xlu0 %v3338
    %v3345 = vpop.xlane.xlu0 %3344
    %3346 = vadd.xlane.f32.xlu0 %v3339
    %v3347 = vpop.xlane.xlu0 %3346
    %v3348 = vmul.f32 %v3345, 0.03125
    %v3349 = vmul.f32 %v3347, 0.03125
    %v3350 = vmul.f32 %v3338, %v3338
    %v3351 = vmul.f32 %v3339, %v3339
    %3352 = vadd.xlane.f32.xlu0 %v3350
    %v3353 = vpop.xlane.xlu0 %3352
    %3354 = vadd.xlane.f32.xlu0 %v3351
    %v3355 = vpop.xlane.xlu0 %3354
    %v3356 = vmul.f32 %v3353, 0.03125
    %v3357 = vmul.f32 %v3355, 0.03125
    %v3358 = vmul.f32 %v3348, %v3348
    %v3359 = vmul.f32 %v3349, %v3349
    %v3360 = vsub.f32 %v3356, %v3358
    %v3361 = vsub.f32 %v3357, %v3359
    %v3362 = vsub.f32 %v3338, %v3348
    %v3363 = vsub.f32 %v3339, %v3349
    %v3364 = vadd.f32 %v3360, 1e-05
    %v3365 = vadd.f32 %v3361, 1e-05
    %v3366 = vrsqrt.pop %v3364
    %v3367 = vmul.f32 %v3366, %v3364
    %v3368 = vmul.f32 %v3367, %v3366
    %v3369 = vmul.f32 0.5, %v3368
    %v3370 = vsub.f32 1.5, %v3369
    %v3371 = vmul.f32 %v3366, %v3370
    %vm3372 = vweird.f32 %v3364
    %vm3373 = vweird.f32 %v3366
    %vm3374 = vmor %vm3372, %vm3373
    %v3375 = vsel %vm3374, %v3366, %v3371
    %v3376 = vrsqrt.pop %v3365
    %v3377 = vmul.f32 %v3376, %v3365
    %v3378 = vmul.f32 %v3377, %v3376
    %v3379 = vmul.f32 0.5, %v3378
    %v3380 = vsub.f32 1.5, %v3379
    %v3381 = vmul.f32 %v3376, %v3380
    %vm3382 = vweird.f32 %v3365
    %vm3383 = vweird.f32 %v3376
    %vm3384 = vmor %vm3382, %vm3383
    %v3385 = vsel %vm3384, %v3376, %v3381
    %v3386 = vmul.f32 %v3362, %v3375
    %v3387 = vmul.f32 %v3363, %v3385
    %v3389 = vperm.slane %v3341, 0
    %v3391 = vmul.f32 %v3386, %v3389
    %v3392 = vmul.f32 %v3387, %v3389
    %v3394 = vperm.slane %v3343, 0
    %v3396 = vadd.f32 %v3391, %v3394
    %v3397 = vadd.f32 %v3392, %v3394
    %v3398 = vpack.c.bf16 %v3397, %v3396
    %s3399 = scalar_lea.vmem [#allocation16], 64
    %v3400 = vld [vmem:[%s3399] sm:$0xf]
    %v3401 = vld [vmem:[%s3399 + $0x4] sm:$0xf]
    %v3402 = vld [vmem:[%s3399 + $0x8] sm:$0xf]
    %v3403 = vld [vmem:[%s3399 + $0xc] sm:$0xf]
    %v3404 = vld [vmem:[%s3399 + $0x10] sm:$0xf]
    %v3405 = vld [vmem:[%s3399 + $0x14] sm:$0xf]
    %v3406 = vld [vmem:[%s3399 + $0x18] sm:$0xf]
    %v3407 = vld [vmem:[%s3399 + $0x1c] sm:$0xf]
    %v3408 = vld [vmem:[%s3399 + $0x20] sm:$0xf]
    %v3409 = vld [vmem:[%s3399 + $0x24] sm:$0xf]
    %v3410 = vld [vmem:[%s3399 + $0x28] sm:$0xf]
    %v3411 = vld [vmem:[%s3399 + $0x2c] sm:$0xf]
    %v3412 = vld [vmem:[%s3399 + $0x30] sm:$0xf]
    %v3413 = vld [vmem:[%s3399 + $0x34] sm:$0xf]
    %v3414 = vld [vmem:[%s3399 + $0x38] sm:$0xf]
    %v3415 = vld [vmem:[%s3399 + $0x3c] sm:$0xf]
    %s3416 = scalar_lea.vmem %s12, 1
    %v3417 = vld [vmem:[%s3416] sm:$0x1]
    %v3419 = vperm.slane %v3417, 0
    %v3437 = vunpack.c.l.b16 %v3400
    %v3438 = vunpack.c.l.b16 %v3401
    %v3439 = vunpack.c.l.b16 %v3402
    %v3440 = vunpack.c.l.b16 %v3403
    %v3441 = vunpack.c.l.b16 %v3404
    %v3442 = vunpack.c.l.b16 %v3405
    %v3443 = vunpack.c.l.b16 %v3406
    %v3444 = vunpack.c.l.b16 %v3407
    %v3445 = vunpack.c.l.b16 %v3408
    %v3446 = vunpack.c.l.b16 %v3409
    %v3447 = vunpack.c.l.b16 %v3410
    %v3448 = vunpack.c.l.b16 %v3411
    %v3449 = vunpack.c.l.b16 %v3412
    %v3450 = vunpack.c.l.b16 %v3413
    %v3451 = vunpack.c.l.b16 %v3414
    %v3452 = vunpack.c.l.b16 %v3415
    %v3453 = vpack.c.b16 %v3438, %v3437
    %v3454 = vpack.c.b16 %v3440, %v3439
    %v3455 = vpack.c.b16 %v3442, %v3441
    %v3456 = vpack.c.b16 %v3444, %v3443
    %v3457 = vpack.c.b16 %v3446, %v3445
    %v3458 = vpack.c.b16 %v3448, %v3447
    %v3459 = vpack.c.b16 %v3450, %v3449
    %v3460 = vpack.c.b16 %v3452, %v3451
    %3469 = vmatpush.bf16.msra.mxu0 %v3460
    %3470 = vmatpush.bf16.msra.mxu0 %v3459
    %3471 = vmatpush.bf16.msra.mxu0 %v3458
    %3472 = vmatpush.bf16.msra.mxu0 %v3457
    %3473 = vmatpush.bf16.msra.mxu0 %v3456
    %3474 = vmatpush.bf16.msra.mxu0 %v3455
    %3475 = vmatpush.bf16.msra.mxu0 %v3454
    %3476 = vmatpush.bf16.msra.mxu0 %v3453
    %3477 = vmatmul.bf16.gmra.mxu0 %v3398
    %v3478 = vpop.f32.mrf.mxu0
    %v3479 = vadd.f32 %v3419, %v3478
    %v3480 = vpop.f32.mrf.mxu0
    %v3481 = vadd.f32 %v3419, %v3480
    %3482 = vdwg.mxu0
    %v3483 = vmul.f32 %v3479, 1.702
    %v3484 = vmul.f32 %v3481, 1.702
    %v3485 = vxor.u32 %v3483, 2147483648
    %v3486 = vxor.u32 %v3484, 2147483648
    %v3487 = vmul.f32 %v3485, 1.442695
    %v3488 = vpow.pop %v3487
    %v3489 = vmul.f32 %v3486, 1.442695
    %v3490 = vpow.pop %v3489
    %v3491 = vadd.f32 %v3488, 1.0
    %v3492 = vadd.f32 %v3490, 1.0
    %v3493 = vrcp.pop %v3491
    %v3494 = vmul.f32 %v3491, %v3493
    %v3495 = vsub.f32 1.0, %v3494
    %v3496 = vmul.f32 %v3493, %v3495
    %v3497 = vadd.f32 %v3493, %v3496
    %vm3498 = vweird.f32 %v3491
    %vm3499 = vweird.f32 %v3493
    %vm3500 = vmor %vm3498, %vm3499
    %v3501 = vsel %vm3500, %v3493, %v3497
    %v3502 = vand.u32 2147483647, %v3491
    %vm3503 = vcmp.eq.f32.partialorder %v3502, 8.507059e+37
    %v3504 = vand.u32 %v3491, 2147483648
    %v3505 = vor.u32 1.1754944e-38, %v3504
    %v3506 = vsel %vm3503, %v3505, %v3501
    %v3507 = vmul.f32 1.0, %v3506
    %v3508 = vrcp.pop %v3492
    %v3509 = vmul.f32 %v3492, %v3508
    %v3510 = vsub.f32 1.0, %v3509
    %v3511 = vmul.f32 %v3508, %v3510
    %v3512 = vadd.f32 %v3508, %v3511
    %vm3513 = vweird.f32 %v3492
    %vm3514 = vweird.f32 %v3508
    %vm3515 = vmor %vm3513, %vm3514
    %v3516 = vsel %vm3515, %v3508, %v3512
    %v3517 = vand.u32 2147483647, %v3492
    %vm3518 = vcmp.eq.f32.partialorder %v3517, 8.507059e+37
    %v3519 = vand.u32 %v3492, 2147483648
    %v3520 = vor.u32 1.1754944e-38, %v3519
    %v3521 = vsel %vm3518, %v3520, %v3516
    %v3522 = vmul.f32 1.0, %v3521
    %v3523 = vmul.f32 %v3479, %v3507
    %v3524 = vmul.f32 %v3481, %v3522
    %v3525 = vpack.c.bf16 %v3524, %v3523
    %s3526 = scalar_lea.vmem [#allocation17], 64
    %v3527 = vld [vmem:[%s3526] sm:$0xf]
    %v3528 = vld [vmem:[%s3526 + $0x4] sm:$0xf]
    %v3529 = vld [vmem:[%s3526 + $0x8] sm:$0xf]
    %v3530 = vld [vmem:[%s3526 + $0xc] sm:$0xf]
    %v3531 = vld [vmem:[%s3526 + $0x10] sm:$0xf]
    %v3532 = vld [vmem:[%s3526 + $0x14] sm:$0xf]
    %v3533 = vld [vmem:[%s3526 + $0x18] sm:$0xf]
    %v3534 = vld [vmem:[%s3526 + $0x1c] sm:$0xf]
    %v3535 = vld [vmem:[%s3526 + $0x20] sm:$0xf]
    %v3536 = vld [vmem:[%s3526 + $0x24] sm:$0xf]
    %v3537 = vld [vmem:[%s3526 + $0x28] sm:$0xf]
    %v3538 = vld [vmem:[%s3526 + $0x2c] sm:$0xf]
    %v3539 = vld [vmem:[%s3526 + $0x30] sm:$0xf]
    %v3540 = vld [vmem:[%s3526 + $0x34] sm:$0xf]
    %v3541 = vld [vmem:[%s3526 + $0x38] sm:$0xf]
    %v3542 = vld [vmem:[%s3526 + $0x3c] sm:$0xf]
    %s3543 = scalar_lea.vmem %s14, 1
    %v3544 = vld [vmem:[%s3543] sm:$0x1]
    %v3546 = vperm.slane %v3544, 0
    %v3564 = vunpack.c.l.b16 %v3527
    %v3565 = vunpack.c.l.b16 %v3528
    %v3566 = vunpack.c.l.b16 %v3529
    %v3567 = vunpack.c.l.b16 %v3530
    %v3568 = vunpack.c.l.b16 %v3531
    %v3569 = vunpack.c.l.b16 %v3532
    %v3570 = vunpack.c.l.b16 %v3533
    %v3571 = vunpack.c.l.b16 %v3534
    %v3572 = vunpack.c.l.b16 %v3535
    %v3573 = vunpack.c.l.b16 %v3536
    %v3574 = vunpack.c.l.b16 %v3537
    %v3575 = vunpack.c.l.b16 %v3538
    %v3576 = vunpack.c.l.b16 %v3539
    %v3577 = vunpack.c.l.b16 %v3540
    %v3578 = vunpack.c.l.b16 %v3541
    %v3579 = vunpack.c.l.b16 %v3542
    %v3580 = vpack.c.b16 %v3565, %v3564
    %v3581 = vpack.c.b16 %v3567, %v3566
    %v3582 = vpack.c.b16 %v3569, %v3568
    %v3583 = vpack.c.b16 %v3571, %v3570
    %v3584 = vpack.c.b16 %v3573, %v3572
    %v3585 = vpack.c.b16 %v3575, %v3574
    %v3586 = vpack.c.b16 %v3577, %v3576
    %v3587 = vpack.c.b16 %v3579, %v3578
    %3596 = vmatpush.bf16.msra.mxu0 %v3587
    %3597 = vmatpush.bf16.msra.mxu0 %v3586
    %3598 = vmatpush.bf16.msra.mxu0 %v3585
    %3599 = vmatpush.bf16.msra.mxu0 %v3584
    %3600 = vmatpush.bf16.msra.mxu0 %v3583
    %3601 = vmatpush.bf16.msra.mxu0 %v3582
    %3602 = vmatpush.bf16.msra.mxu0 %v3581
    %3603 = vmatpush.bf16.msra.mxu0 %v3580
    %3604 = vmatmul.bf16.gmra.mxu0 %v3525
    %v3605 = vpop.f32.mrf.mxu0
    %v3606 = vadd.f32 %v3546, %v3605
    %v3607 = vpop.f32.mrf.mxu0
    %v3608 = vadd.f32 %v3546, %v3607
    %3609 = vdwg.mxu0
    %v3610 = vadd.f32 %v3338, %v3606
    %v3611 = vadd.f32 %v3339, %v3608
    %v3612 = vld [vmem:[%s15] sm:$0x1]
    %v3613 = vld [vmem:[%s16] sm:$0x1]
    %3614 = vadd.xlane.f32.xlu0 %v3610
    %v3615 = vpop.xlane.xlu0 %3614
    %3616 = vadd.xlane.f32.xlu0 %v3611
    %v3617 = vpop.xlane.xlu0 %3616
    %v3618 = vmul.f32 %v3615, 0.03125
    %v3619 = vmul.f32 %v3617, 0.03125
    %v3620 = vmul.f32 %v3610, %v3610
    %v3621 = vmul.f32 %v3611, %v3611
    %3622 = vadd.xlane.f32.xlu0 %v3620
    %v3623 = vpop.xlane.xlu0 %3622
    %3624 = vadd.xlane.f32.xlu0 %v3621
    %v3625 = vpop.xlane.xlu0 %3624
    %v3626 = vmul.f32 %v3623, 0.03125
    %v3627 = vmul.f32 %v3625, 0.03125
    %v3628 = vmul.f32 %v3618, %v3618
    %v3629 = vmul.f32 %v3619, %v3619
    %v3630 = vsub.f32 %v3626, %v3628
    %v3631 = vsub.f32 %v3627, %v3629
    %v3632 = vsub.f32 %v3610, %v3618
    %v3633 = vsub.f32 %v3611, %v3619
    %v3634 = vadd.f32 %v3630, 1e-05
    %v3635 = vadd.f32 %v3631, 1e-05
    %v3636 = vrsqrt.pop %v3634
    %v3637 = vmul.f32 %v3636, %v3634
    %v3638 = vmul.f32 %v3637, %v3636
    %v3639 = vmul.f32 0.5, %v3638
    %v3640 = vsub.f32 1.5, %v3639
    %v3641 = vmul.f32 %v3636, %v3640
    %vm3642 = vweird.f32 %v3634
    %vm3643 = vweird.f32 %v3636
    %vm3644 = vmor %vm3642, %vm3643
    %v3645 = vsel %vm3644, %v3636, %v3641
    %v3646 = vrsqrt.pop %v3635
    %v3647 = vmul.f32 %v3646, %v3635
    %v3648 = vmul.f32 %v3647, %v3646
    %v3649 = vmul.f32 0.5, %v3648
    %v3650 = vsub.f32 1.5, %v3649
    %v3651 = vmul.f32 %v3646, %v3650
    %vm3652 = vweird.f32 %v3635
    %vm3653 = vweird.f32 %v3646
    %vm3654 = vmor %vm3652, %vm3653
    %v3655 = vsel %vm3654, %v3646, %v3651
    %v3656 = vmul.f32 %v3632, %v3645
    %v3657 = vmul.f32 %v3633, %v3655
    %v3659 = vperm.slane %v3612, 0
    %v3661 = vmul.f32 %v3656, %v3659
    %v3662 = vmul.f32 %v3657, %v3659
    %v3664 = vperm.slane %v3613, 0
    %v3666 = vadd.f32 %v3661, %v3664
    %v3667 = vadd.f32 %v3662, %v3664
    %3668 = vst [vmem:[#allocation19] sm:$0xff] %v3666
    %3669 = vst [vmem:[#allocation19 + $0x8] sm:$0xff] %v3667
    // Predicated region
    $region106: #{tpu_custom_call.1} parent=1 // pred_check
      _
    $region107: #{tpu_custom_call.1} parent=1 // pred_check_branch
      %3671 = sbr.rel (0) target = $region109
    $region108: #{tpu_custom_call.1} parent=1 // pred_region
      %3673 = vsyncadd [#allocation5], 0
      %s3674 = sshll.u32 [#allocation19], 4
      %s3675 = int_to_ptr.vmem [resolvable:$true] %s3674
      %s3676 = sshll.u32 %s17, 4
      %s3677 = int_to_ptr.hbm [resolvable:$true] %s3676
      %3682 = dma.vmem_to_hbm [thread:$0]  %s3675, 256, %s3677, [#allocation5], 128, 128, 8
    $region109: #{tpu_custom_call.1} parent=1 // pred_fallthru
      _
    // Predicated region
    $region110: #{tpu_custom_call.1} parent=1 // pred_check
      _
    $region111: #{tpu_custom_call.1} parent=1 // pred_check_branch
      %3684 = sbr.rel (0) target = $region113
    $region112: #{tpu_custom_call.1} parent=1 // pred_region
      %3686 = dma.done [#allocation5], 256
    $region113: #{tpu_custom_call.1} parent=1 // pred_fallthru
      _
    %3687 = vsyncpa [#allocation4], 1
    %3688 = vsyncpa [#allocation9], 1
    %3689 = vsyncpa [#allocation12], 1
    %3690 = vsyncpa [#allocation15], 1
    %3691 = vsyncpa [#allocation18], 1
    %3692 = vsyncpa [#allocation5], 1
    %3693 = vsyncpa [#allocation6], 1

</llo_original>
